<compile_context>
chip_gen: v7x
topology: tpu7x:2x2x1
jax: 0.10.0
libtpu: 0.0.40
codegen_flags: <defaults>
</compile_context>

<pallas_src>
import functools

import jax
import jax.numpy as jnp
import numpy as np
from jax import lax
from jax.experimental import pallas as pl
from jax.experimental.pallas import tpu as pltpu


def _moe_kernel(xa_ref, w1_ref, b1_ref, w2_ref, b2_ref, out_ref, *,
                num_experts, hidden, eh, e_pad, mu):
    xa = xa_ref[...]                                           # [bn, D+T]
    eh_pad = w2_ref.shape[1]
    out_pad = out_ref.shape[1]

    # Fused layer-1 + gating matmul (f32 accumulation):
    #   lanes [0, eh)            : expert layer-1 pre-activations
    #   lanes [eh, eh + e_pad)   : gating logits (pad experts carry -1e30)
    pre = (jnp.dot(xa, w1_ref[...], preferred_element_type=jnp.float32)
           + b1_ref[...])                                      # [bn, eh_pad]

    # --- Gating softmax over the e_pad gating lanes (exact divide).
    logits = pre[:, eh:eh + e_pad]                             # [bn, e_pad]
    m = jnp.max(logits, axis=-1, keepdims=True)
    e = jnp.exp(logits - m)
    s = jnp.sum(e, axis=-1, keepdims=True)
    w = e / s                                                  # pads are exactly 0

    # --- Experts layer 1 -> 2.  Gating lanes of h1 are garbage but the
    # block-diagonal W2 has zero rows there, so they never reach h2.
    h1 = jnp.maximum(pre, 0.0)
    h2 = jnp.maximum(
        jnp.dot(h1.astype(w2_ref.dtype), w2_ref[...],
                preferred_element_type=jnp.float32) + b2_ref[...], 0.0)

    # --- Mixture via two tiny static 0/1 MXU pushes (no per-expert lane slicing).
    r = lax.broadcasted_iota(jnp.int32, (e_pad, eh_pad), 0)
    c = lax.broadcasted_iota(jnp.int32, (e_pad, eh_pad), 1)
    erep = jnp.where((c >= r * hidden) & (c < (r + 1) * hidden)
                     & (r < num_experts), 1.0, 0.0)            # [e_pad, eh_pad]
    wexp = jnp.dot(w, erep, preferred_element_type=jnp.float32)
    weighted = h2 * wexp                                       # [bn, eh_pad]

    r2 = lax.broadcasted_iota(jnp.int32, (eh_pad, out_pad), 0)
    c2 = lax.broadcasted_iota(jnp.int32, (eh_pad, out_pad), 1)
    hit = (r2 == c2)
    for k in range(1, num_experts):
        hit = hit | (r2 == c2 + k * hidden)
    rsum = jnp.where(hit & (c2 < hidden), 1.0, 0.0)            # [eh_pad, out_pad]
    tower = jnp.dot(weighted, rsum, preferred_element_type=jnp.float32)

    # --- Regulariser from the log-softmax identity (one log per row, exact).
    lane = lax.broadcasted_iota(jnp.int32, logits.shape, 1)
    sum_logits = jnp.sum(jnp.where(lane < num_experts, logits, 0.0),
                         axis=-1, keepdims=True)
    lse = m + jnp.log(s)
    reg = (-(mu / num_experts)) * (sum_logits - num_experts * lse)   # [bn, 1]

    # --- Single lane-dense store: tower in lanes [0, H), reg in lane H.
    out_lane = lax.broadcasted_iota(jnp.int32, tower.shape, 1)
    out_ref[...] = jnp.where(out_lane == hidden, reg, tower)


def pack_moe_params(params, *, input_dim, hidden, num_experts, num_tasks,
                    compute_dtype=jnp.bfloat16):
    """One-time host-side weight packing (lane-padded, expert+gating-fused)."""
    d, h, e, t = input_dim, hidden, num_experts, num_tasks
    e_pad = max(8, int(pl.next_power_of_2(e)))
    eh = e * h
    eh_pad = 128 * pl.cdiv(eh + e_pad, 128)
    out_pad = 128 * pl.cdiv(h + 1, 128)

    rm = params["routing_matrix"].astype(jnp.float32)          # [D + TE, E]
    # Per-task gating bias table; pad expert lanes get -1e30 -> softmax weight 0.
    task_bias = jnp.full((t, e_pad), -1e30, jnp.float32)
    task_bias = task_bias.at[:, :e].set(
        params["task_embeddings"].astype(jnp.float32) @ rm[d:])

    # Fused [D + T, eh_pad] matrix:
    #   rows [0, D)   : expert L1 weights (cols [0, eh)) + x-part of routing (cols [eh, eh+E))
    #   rows [D, D+T) : per-task gating bias in cols [eh, eh+e_pad); zeros elsewhere
    w1f = jnp.zeros((d + t, eh_pad), jnp.float32)
    w1f = w1f.at[:d, :eh].set(
        jnp.transpose(params["w1"], (1, 0, 2)).reshape(d, eh).astype(jnp.float32))
    w1f = w1f.at[:d, eh:eh + e].set(rm[:d])
    w1f = w1f.at[d:, eh:eh + e_pad].set(task_bias)

    b1 = jnp.zeros((1, eh_pad), jnp.float32).at[:, :eh].set(
        params["b1"].reshape(1, eh).astype(jnp.float32))

    w2 = jnp.zeros((eh_pad, eh_pad), jnp.float32)
    for k in range(e):
        w2 = w2.at[k * h:(k + 1) * h, k * h:(k + 1) * h].set(
            params["w2"][k].astype(jnp.float32))
    b2 = jnp.zeros((1, eh_pad), jnp.float32).at[:, :eh].set(
        params["b2"].reshape(1, eh).astype(jnp.float32))

    return {
        "w1": w1f.astype(compute_dtype),     # bf16 (default) or f32
        "b1": b1,                            # biases / accumulation stay f32
        "w2": w2.astype(compute_dtype),
        "b2": b2,
        "meta": dict(input_dim=d, hidden=h, num_experts=e, num_tasks=t,
                     e_pad=e_pad, eh=eh, eh_pad=eh_pad, out_pad=out_pad,
                     compute_dtype=compute_dtype),
    }


def _default_block_n(n, cap=2048):
    # v5e / v6e: single TensorCore -> one grid step (kills per-step overhead).
    # v7x: two TensorCores -> exactly two "parallel" grid steps.
    n_cores = 1
    try:
        kind = (getattr(jax.devices()[0], "device_kind", "") or "").lower()
        if "v7" in kind:
            n_cores = 2
    except Exception:
        pass
    bn = min(pl.cdiv(n, n_cores), cap)
    return max(16 * pl.cdiv(bn, 16), 16)      # multiple of 16 (bf16 sublanes)


def moe_forward(x, task, packed, *, mu, block_n=None):
    meta = packed["meta"]
    d, h, e, t = (meta["input_dim"], meta["hidden"], meta["num_experts"],
                  meta["num_tasks"])
    e_pad, eh, eh_pad, out_pad = (meta["e_pad"], meta["eh"], meta["eh_pad"],
                                  meta["out_pad"])
    cdt = meta["compute_dtype"]
    n = x.shape[0]

    # One-hot task block appended to x: the per-task gating bias then comes out
    # of the same fused MXU push (no separate gating-bias input stream).
    xa = jnp.concatenate([x.astype(cdt), jax.nn.one_hot(task, t, dtype=cdt)],
                         axis=-1)                               # [N, D + T]

    if block_n is None:
        block_n = _default_block_n(n)
    block_n = min(block_n, n)
    if block_n < n:
        block_n = 16 * pl.cdiv(block_n, 16)
    grid = (pl.cdiv(n, block_n),)

    kernel = functools.partial(_moe_kernel, num_experts=e, hidden=h,
                               eh=eh, e_pad=e_pad, mu=mu)

    flops = 2 * n * ((d + t) * eh_pad + eh_pad * eh_pad
                     + e_pad * eh_pad + eh_pad * out_pad) + 6 * n * eh_pad
    transcendentals = n * (e_pad + 2)
    bytes_accessed = (xa.size * xa.dtype.itemsize
                      + sum(v.size * v.dtype.itemsize
                            for k, v in packed.items() if k != "meta")
                      + n * out_pad * 4)

    out = pl.pallas_call(
        kernel,
        grid=grid,
        in_specs=[
            pl.BlockSpec((block_n, d + t), lambda i: (i, 0)),   # xa (tiled over N)
            # Constant index_maps -> weights stay VMEM-resident across the grid.
            # TODO(synk): at production E*H sizes, add pipeline_mode=pl.Buffered(1)
            # on these specs and set vmem_limit_bytes (v7x has only 64 MiB VMEM).
            pl.BlockSpec((d + t, eh_pad), lambda i: (0, 0)),    # fused W1 + gating
            pl.BlockSpec((1, eh_pad), lambda i: (0, 0)),        # b1 (f32)
            pl.BlockSpec((eh_pad, eh_pad), lambda i: (0, 0)),   # block-diag W2
            pl.BlockSpec((1, eh_pad), lambda i: (0, 0)),        # b2 (f32)
        ],
        out_specs=pl.BlockSpec((block_n, out_pad), lambda i: (i, 0)),
        out_shape=jax.ShapeDtypeStruct((n, out_pad), jnp.float32),
        compiler_params=pltpu.CompilerParams(
            dimension_semantics=("parallel",)),
        cost_estimate=pl.CostEstimate(flops=flops,
                                      transcendentals=transcendentals,
                                      bytes_accessed=bytes_accessed),
    )(xa, packed["w1"], packed["b1"], packed["w2"], packed["b2"])

    tower = out[:, :h]
    reg = out[:, h]
    return tower, reg


def moe_reference(x, task, params, *, num_experts, mu):
    """Pure-JAX reference mirroring the PyTorch forward."""
    emb_sel = params["task_embeddings"][task]
    logits = jnp.concatenate([x, emb_sel], axis=-1) @ params["routing_matrix"]
    w = jax.nn.softmax(logits, axis=-1)
    outs = []
    for k in range(num_experts):
        h1 = jax.nn.relu(x @ params["w1"][k] + params["b1"][k, 0])
        h2 = jax.nn.relu(h1 @ params["w2"][k] + params["b2"][k, 0])
        outs.append(h2)
    outs = jnp.stack(outs, axis=1)                              # [N, E, H]
    tower = jnp.einsum("ke,kei->ki", w, outs)
    reg = -(mu / num_experts) * jnp.sum(jnp.log(w + 1e-6), axis=-1)
    return tower, reg


if __name__ == "__main__":
    # Small shapes consistent with the module's __init__.
    N, D, H = 512, 32, 32        # batch, input_dim, hidden_size
    T, E, TE = 4, 3, 32          # num_tasks, num_experts, task_embeddings_dim
    MU = 0.01

    key = jax.random.PRNGKey(0)
    ks = jax.random.split(key, 8)

    def uinit(k, shape, fan_in):
        bound = 1.0 / np.sqrt(fan_in)
        return jax.random.uniform(k, shape, jnp.float32, -bound, bound)

    params = {
        "task_embeddings": uinit(ks[0], (T, TE), TE),
        "routing_matrix":  uinit(ks[1], (D + TE, E), D + TE),
        "w1": uinit(ks[2], (E, D, H), D),    # expert layer-1, stored as [E, in, out]
        "b1": uinit(ks[3], (E, 1, H), D),
        "w2": uinit(ks[4], (E, H, H), H),    # expert layer-2
        "b2": uinit(ks[5], (E, 1, H), H),
        # basis_matrix is unused in forward(); omitted.
    }

    x = jax.random.normal(ks[6], (N, D), jnp.float32)
    task = jax.random.randint(ks[7], (N,), 0, T)

    tower_ref, reg_ref = moe_reference(x, task, params, num_experts=E, mu=MU)

    # f32 compute path: tight correctness check.
    packed_f32 = pack_moe_params(params, input_dim=D, hidden=H, num_experts=E,
                                 num_tasks=T, compute_dtype=jnp.float32)
    tower, reg = moe_forward(x, task, packed_f32, mu=MU)
    jax.block_until_ready((tower, reg))
    assert tower.shape == (N, H) and reg.shape == (N,)
    assert np.allclose(np.asarray(tower), np.asarray(tower_ref),
                       atol=2e-3, rtol=2e-3)
    assert np.allclose(np.asarray(reg), np.asarray(reg_ref),
                       atol=1e-4, rtol=1e-3)

    # bf16 default compute path (f32 accumulation / epilogue): looser check.
    packed_bf16 = pack_moe_params(params, input_dim=D, hidden=H, num_experts=E,
                                  num_tasks=T)   # compute_dtype=bfloat16 default
    tower_bf, reg_bf = moe_forward(x, task, packed_bf16, mu=MU)
    jax.block_until_ready((tower_bf, reg_bf))
    assert np.allclose(np.asarray(tower_bf), np.asarray(tower_ref),
                       atol=3e-2, rtol=3e-2)
    assert np.allclose(np.asarray(reg_bf), np.asarray(reg_ref),
                       atol=2e-3, rtol=2e-2)

    print("KERNEL_OK")
</pallas_src>

<mosaic_0001>
module attributes {stable_mosaic.version = 11 : i64} {
  func.func @_moe_kernel(%arg0: i32, %arg1: memref<512x36xf32, #tpu.memory_space<vmem>>, %arg2: memref<36x128xf32, #tpu.memory_space<vmem>>, %arg3: memref<1x128xf32, #tpu.memory_space<vmem>>, %arg4: memref<128x128xf32, #tpu.memory_space<vmem>>, %arg5: memref<1x128xf32, #tpu.memory_space<vmem>>, %arg6: memref<512x128xf32, #tpu.memory_space<vmem>>) attributes {dimension_semantics = [#tpu.dimension_semantics<parallel>], iteration_bounds = array<i64: 1>, scalar_prefetch = 0 : i64, scratch_operands = 0 : i64, tpu.core_type = #tpu.core_type<tc>, window_params = [{transform_indices = @transform_0, window_bounds = array<i64: 512, 36>}, {pipeline_mode = #tpu.pipeline_mode<synchronous>, transform_indices = @transform_1, window_bounds = array<i64: 36, 128>}, {pipeline_mode = #tpu.pipeline_mode<synchronous>, transform_indices = @transform_2, window_bounds = array<i64: 1, 128>}, {pipeline_mode = #tpu.pipeline_mode<synchronous>, transform_indices = @transform_3, window_bounds = array<i64: 128, 128>}, {pipeline_mode = #tpu.pipeline_mode<synchronous>, transform_indices = @transform_4, window_bounds = array<i64: 1, 128>}, {transform_indices = @transform_5, window_bounds = array<i64: 512, 128>}]} {
    %c0 = arith.constant 0 : index
    %c0_0 = arith.constant 0 : index
    %0 = vector.load %arg1[%c0, %c0_0] : memref<512x36xf32, #tpu.memory_space<vmem>>, vector<512x36xf32>
    %c0_1 = arith.constant 0 : index
    %c0_2 = arith.constant 0 : index
    %1 = vector.load %arg2[%c0_1, %c0_2] : memref<36x128xf32, #tpu.memory_space<vmem>>, vector<36x128xf32>
    %cst = arith.constant dense<0.000000e+00> : vector<512x128xf32>
    %2 = tpu.matmul %0, %1, %cst {dimension_numbers = #tpu.dot_dimension_numbers<[1], [0], [0], [1], [0, 0, 1, 1], [], []>} : vector<512x36xf32>, vector<36x128xf32>, vector<512x128xf32> -> vector<512x128xf32>
    %c0_3 = arith.constant 0 : index
    %c0_4 = arith.constant 0 : index
    %3 = vector.load %arg3[%c0_3, %c0_4] : memref<1x128xf32, #tpu.memory_space<vmem>>, vector<1x128xf32>
    %4 = vector.broadcast %3 : vector<1x128xf32> to vector<512x128xf32>
    %5 = arith.addf %2, %4 : vector<512x128xf32>
    %6 = vector.extract_strided_slice %5 {offsets = [0, 96], sizes = [512, 8], strides = [1, 1]} : vector<512x128xf32> to vector<512x8xf32>
    %cst_5 = arith.constant dense<0xFF800000> : vector<512xf32>
    %7 = vector.multi_reduction <maximumf>, %6, %cst_5 [1] : vector<512x8xf32> to vector<512xf32>
    %8 = vector.shape_cast %7 : vector<512xf32> to vector<512x1xf32>
    %9 = vector.broadcast %8 : vector<512x1xf32> to vector<512x8xf32>
    %10 = arith.subf %6, %9 : vector<512x8xf32>
    %11 = math.exp %10 : vector<512x8xf32>
    %cst_6 = arith.constant dense<0.000000e+00> : vector<512xf32>
    %12 = vector.multi_reduction <add>, %11, %cst_6 [1] : vector<512x8xf32> to vector<512xf32>
    %13 = vector.shape_cast %12 : vector<512xf32> to vector<512x1xf32>
    %14 = vector.broadcast %13 : vector<512x1xf32> to vector<512x8xf32>
    %15 = arith.divf %11, %14 : vector<512x8xf32>
    %cst_7 = arith.constant 0.000000e+00 : f32
    %16 = vector.broadcast %cst_7 : f32 to vector<512x128xf32>
    %17 = arith.maximumf %5, %16 : vector<512x128xf32>
    %c0_8 = arith.constant 0 : index
    %c0_9 = arith.constant 0 : index
    %18 = vector.load %arg4[%c0_8, %c0_9] : memref<128x128xf32, #tpu.memory_space<vmem>>, vector<128x128xf32>
    %cst_10 = arith.constant dense<0.000000e+00> : vector<512x128xf32>
    %19 = tpu.matmul %17, %18, %cst_10 {dimension_numbers = #tpu.dot_dimension_numbers<[1], [0], [0], [1], [0, 0, 1, 1], [], []>} : vector<512x128xf32>, vector<128x128xf32>, vector<512x128xf32> -> vector<512x128xf32>
    %c0_11 = arith.constant 0 : index
    %c0_12 = arith.constant 0 : index
    %20 = vector.load %arg5[%c0_11, %c0_12] : memref<1x128xf32, #tpu.memory_space<vmem>>, vector<1x128xf32>
    %21 = vector.broadcast %20 : vector<1x128xf32> to vector<512x128xf32>
    %22 = arith.addf %19, %21 : vector<512x128xf32>
    %cst_13 = arith.constant 0.000000e+00 : f32
    %23 = vector.broadcast %cst_13 : f32 to vector<512x128xf32>
    %24 = arith.maximumf %22, %23 : vector<512x128xf32>
    %25 = tpu.iota {dimensions = array<i32: 0>} : vector<8x128xi32>
    %26 = tpu.iota {dimensions = array<i32: 1>} : vector<8x128xi32>
    %c32_i32 = arith.constant 32 : i32
    %27 = vector.broadcast %c32_i32 : i32 to vector<8x128xi32>
    %28 = arith.muli %25, %27 : vector<8x128xi32>
    %29 = arith.cmpi sge, %26, %28 : vector<8x128xi32>
    %c1_i32 = arith.constant 1 : i32
    %30 = vector.broadcast %c1_i32 : i32 to vector<8x128xi32>
    %31 = arith.addi %25, %30 : vector<8x128xi32>
    %c32_i32_14 = arith.constant 32 : i32
    %32 = vector.broadcast %c32_i32_14 : i32 to vector<8x128xi32>
    %33 = arith.muli %31, %32 : vector<8x128xi32>
    %34 = arith.cmpi slt, %26, %33 : vector<8x128xi32>
    %35 = arith.andi %29, %34 : vector<8x128xi1>
    %c3_i32 = arith.constant 3 : i32
    %36 = vector.broadcast %c3_i32 : i32 to vector<8x128xi32>
    %37 = arith.cmpi slt, %25, %36 : vector<8x128xi32>
    %38 = arith.andi %35, %37 : vector<8x128xi1>
    %cst_15 = arith.constant 1.000000e+00 : f32
    %cst_16 = arith.constant 0.000000e+00 : f32
    %39 = vector.broadcast %cst_15 : f32 to vector<8x128xf32>
    %40 = vector.broadcast %cst_16 : f32 to vector<8x128xf32>
    %41 = arith.select %38, %39, %40 : vector<8x128xi1>, vector<8x128xf32>
    %cst_17 = arith.constant dense<0.000000e+00> : vector<512x128xf32>
    %42 = tpu.matmul %15, %41, %cst_17 {dimension_numbers = #tpu.dot_dimension_numbers<[1], [0], [0], [1], [0, 0, 1, 1], [], []>} : vector<512x8xf32>, vector<8x128xf32>, vector<512x128xf32> -> vector<512x128xf32>
    %43 = arith.mulf %24, %42 : vector<512x128xf32>
    %44 = tpu.iota {dimensions = array<i32: 0>} : vector<128x128xi32>
    %45 = tpu.iota {dimensions = array<i32: 1>} : vector<128x128xi32>
    %46 = arith.cmpi eq, %44, %45 : vector<128x128xi32>
    %c32_i32_18 = arith.constant 32 : i32
    %47 = vector.broadcast %c32_i32_18 : i32 to vector<128x128xi32>
    %48 = arith.addi %45, %47 : vector<128x128xi32>
    %49 = arith.cmpi eq, %44, %48 : vector<128x128xi32>
    %50 = arith.ori %46, %49 : vector<128x128xi1>
    %c64_i32 = arith.constant 64 : i32
    %51 = vector.broadcast %c64_i32 : i32 to vector<128x128xi32>
    %52 = arith.addi %45, %51 : vector<128x128xi32>
    %53 = arith.cmpi eq, %44, %52 : vector<128x128xi32>
    %54 = arith.ori %50, %53 : vector<128x128xi1>
    %c32_i32_19 = arith.constant 32 : i32
    %55 = vector.broadcast %c32_i32_19 : i32 to vector<128x128xi32>
    %56 = arith.cmpi slt, %45, %55 : vector<128x128xi32>
    %57 = arith.andi %54, %56 : vector<128x128xi1>
    %cst_20 = arith.constant 1.000000e+00 : f32
    %cst_21 = arith.constant 0.000000e+00 : f32
    %58 = vector.broadcast %cst_20 : f32 to vector<128x128xf32>
    %59 = vector.broadcast %cst_21 : f32 to vector<128x128xf32>
    %60 = arith.select %57, %58, %59 : vector<128x128xi1>, vector<128x128xf32>
    %cst_22 = arith.constant dense<0.000000e+00> : vector<512x128xf32>
    %61 = tpu.matmul %43, %60, %cst_22 {dimension_numbers = #tpu.dot_dimension_numbers<[1], [0], [0], [1], [0, 0, 1, 1], [], []>} : vector<512x128xf32>, vector<128x128xf32>, vector<512x128xf32> -> vector<512x128xf32>
    %62 = tpu.iota {dimensions = array<i32: 1>} : vector<512x8xi32>
    %c3_i32_23 = arith.constant 3 : i32
    %63 = vector.broadcast %c3_i32_23 : i32 to vector<512x8xi32>
    %64 = arith.cmpi slt, %62, %63 : vector<512x8xi32>
    %cst_24 = arith.constant 0.000000e+00 : f32
    %65 = vector.broadcast %cst_24 : f32 to vector<512x8xf32>
    %66 = arith.select %64, %6, %65 : vector<512x8xi1>, vector<512x8xf32>
    %cst_25 = arith.constant dense<0.000000e+00> : vector<512xf32>
    %67 = vector.multi_reduction <add>, %66, %cst_25 [1] : vector<512x8xf32> to vector<512xf32>
    %68 = vector.shape_cast %67 : vector<512xf32> to vector<512x1xf32>
    %69 = math.log %13 : vector<512x1xf32>
    %70 = arith.addf %8, %69 : vector<512x1xf32>
    %cst_26 = arith.constant 3.000000e+00 : f32
    %71 = vector.broadcast %cst_26 : f32 to vector<512x1xf32>
    %72 = arith.mulf %71, %70 : vector<512x1xf32>
    %73 = arith.subf %68, %72 : vector<512x1xf32>
    %cst_27 = arith.constant -0.00333333341 : f32
    %74 = vector.broadcast %cst_27 : f32 to vector<512x1xf32>
    %75 = arith.mulf %74, %73 : vector<512x1xf32>
    %76 = tpu.iota {dimensions = array<i32: 1>} : vector<512x128xi32>
    %c32_i32_28 = arith.constant 32 : i32
    %77 = vector.broadcast %c32_i32_28 : i32 to vector<512x128xi32>
    %78 = arith.cmpi eq, %76, %77 : vector<512x128xi32>
    %79 = vector.shape_cast %75 : vector<512x1xf32> to vector<512x1xf32>
    %80 = vector.broadcast %79 : vector<512x1xf32> to vector<512x128xf32>
    %81 = arith.select %78, %80, %61 : vector<512x128xi1>, vector<512x128xf32>
    %c0_29 = arith.constant 0 : index
    %c0_30 = arith.constant 0 : index
    %82 = vector.load %arg6[%c0_29, %c0_30] : memref<512x128xf32, #tpu.memory_space<vmem>>, vector<512x128xf32>
    tpu.vector_store %arg6[%c0_29, %c0_30], %81 {strides = array<i32>} : memref<512x128xf32, #tpu.memory_space<vmem>>, vector<512x128xf32>,
    return
  }
  func.func @transform_0(%arg0: i32) -> (i32, i32) {
    %c0_i32 = arith.constant 0 : i32
    %c0_i32_0 = arith.constant 0 : i32
    return %arg0, %c0_i32 : i32, i32
  }
  func.func @transform_1(%arg0: i32) -> (i32, i32) {
    %c0_i32 = arith.constant 0 : i32
    %c0_i32_0 = arith.constant 0 : i32
    %c0_i32_1 = arith.constant 0 : i32
    return %c0_i32, %c0_i32_0 : i32, i32
  }
  func.func @transform_2(%arg0: i32) -> (i32, i32) {
    %c0_i32 = arith.constant 0 : i32
    %c0_i32_0 = arith.constant 0 : i32
    %c0_i32_1 = arith.constant 0 : i32
    return %c0_i32, %c0_i32_0 : i32, i32
  }
  func.func @transform_3(%arg0: i32) -> (i32, i32) {
    %c0_i32 = arith.constant 0 : i32
    %c0_i32_0 = arith.constant 0 : i32
    %c0_i32_1 = arith.constant 0 : i32
    return %c0_i32, %c0_i32_0 : i32, i32
  }
  func.func @transform_4(%arg0: i32) -> (i32, i32) {
    %c0_i32 = arith.constant 0 : i32
    %c0_i32_0 = arith.constant 0 : i32
    %c0_i32_1 = arith.constant 0 : i32
    return %c0_i32, %c0_i32_0 : i32, i32
  }
  func.func @transform_5(%arg0: i32) -> (i32, i32) {
    %c0_i32 = arith.constant 0 : i32
    %c0_i32_0 = arith.constant 0 : i32
    return %arg0, %c0_i32 : i32, i32
  }
}

</mosaic_0001>

<llo_original>
// kernel: tpu_custom_call.1
$region0: #{tpu_custom_call.1}
  #allocation0 [shape = 'u32[]', space=smem, size = 0x4, offset = 0x4, fixed_abs, tag = 'smem constant byte address 0x4 - core index']
  #allocation1 [shape = 'u32[144,128]{1,0:T(1,128)}', space=vmem, size = 0x12000, scoped, tag = 'internal scratch']
  %s0 = inlined_call_operand.vmem [shape: f32[512,36], index: 0, kind: input, shape index: {}]
  %s1 = inlined_call_operand.vmem [shape: f32[36,128], index: 1, kind: input, shape index: {}]
  %s2 = inlined_call_operand.vmem [shape: f32[1,128], index: 2, kind: input, shape index: {}]
  %s3 = inlined_call_operand.vmem [shape: f32[128,128], index: 3, kind: input, shape index: {}]
  %s4 = inlined_call_operand.vmem [shape: f32[1,128], index: 4, kind: input, shape index: {}]
  %s5 = inlined_call_operand.hbm [shape: f32[512,128], index: 5, kind: output, shape index: {}]
  %s6 = sld [smem:[#allocation0]]
  $region30: #{tpu_custom_call.1} parent=0
    _
  %s8 = ssub.s32 1, %s6
  %s9 = scalar_select 0, %s8, %s6
  $region1: #{tpu_custom_call.1} parent=0
    #allocation2 [shape = 'u8[262144]{0}', space=vmem, size = 0x40000, scoped, tag = 'output window, operand 0, single buffered']
    #allocation3 [shape = 's32[1]{0}', space=sflag, size = 0x4, scoped, tag = 'scoped memory for tpu_custom_call.1']
    %10 = vsyncpa [#allocation3], 0
    // Predicated region
    $region2: #{tpu_custom_call.1} parent=1 // pred_check
      _
    $region3: #{tpu_custom_call.1} parent=1 // pred_check_branch
      %12 = sbr.rel (0) target = $region5
    $region4: #{tpu_custom_call.1} parent=1 // pred_region
      _
    $region5: #{tpu_custom_call.1} parent=1 // pred_fallthru
      _
    // Predicated region
    $region6: #{tpu_custom_call.1} parent=1 // pred_check
      _
    $region7: #{tpu_custom_call.1} parent=1 // pred_check_branch
      %14 = sbr.rel (0) target = $region9
    $region8: #{tpu_custom_call.1} parent=1 // pred_region
      _
    $region9: #{tpu_custom_call.1} parent=1 // pred_fallthru
      _
    // Predicated region
    $region10: #{tpu_custom_call.1} parent=1 // pred_check
      _
    $region11: #{tpu_custom_call.1} parent=1 // pred_check_branch
      %16 = sbr.rel (0) target = $region13
    $region12: #{tpu_custom_call.1} parent=1 // pred_region
      _
    $region13: #{tpu_custom_call.1} parent=1 // pred_fallthru
      _
    // Predicated region
    $region14: #{tpu_custom_call.1} parent=1 // pred_check
      _
    $region15: #{tpu_custom_call.1} parent=1 // pred_check_branch
      %18 = sbr.rel (0) target = $region17
    $region16: #{tpu_custom_call.1} parent=1 // pred_region
      _
    $region17: #{tpu_custom_call.1} parent=1 // pred_fallthru
      _
    // Predicated region
    $region18: #{tpu_custom_call.1} parent=1 // pred_check
      _
    $region19: #{tpu_custom_call.1} parent=1 // pred_check_branch
      %20 = sbr.rel (0) target = $region21
    $region20: #{tpu_custom_call.1} parent=1 // pred_region
      _
    $region21: #{tpu_custom_call.1} parent=1 // pred_fallthru
      _
    %v21 = vld [vmem:[%s0] sm:$0xff]
    %v22 = vld [vmem:[%s0 + $0x8] sm:$0xff]
    %v23 = vld [vmem:[%s0 + $0x10] sm:$0xff]
    %v24 = vld [vmem:[%s0 + $0x18] sm:$0xff]
    %v25 = vld [vmem:[%s0 + $0x20] sm:$0xff]
    %v26 = vld [vmem:[%s0 + $0x28] sm:$0xff]
    %v27 = vld [vmem:[%s0 + $0x30] sm:$0xff]
    %v28 = vld [vmem:[%s0 + $0x38] sm:$0xff]
    %v29 = vld [vmem:[%s0 + $0x40] sm:$0xff]
    %v30 = vld [vmem:[%s0 + $0x48] sm:$0xff]
    %v31 = vld [vmem:[%s0 + $0x50] sm:$0xff]
    %v32 = vld [vmem:[%s0 + $0x58] sm:$0xff]
    %v33 = vld [vmem:[%s0 + $0x60] sm:$0xff]
    %v34 = vld [vmem:[%s0 + $0x68] sm:$0xff]
    %v35 = vld [vmem:[%s0 + $0x70] sm:$0xff]
    %v36 = vld [vmem:[%s0 + $0x78] sm:$0xff]
    %v37 = vld [vmem:[%s0 + $0x80] sm:$0xff]
    %v38 = vld [vmem:[%s0 + $0x88] sm:$0xff]
    %v39 = vld [vmem:[%s0 + $0x90] sm:$0xff]
    %v40 = vld [vmem:[%s0 + $0x98] sm:$0xff]
    %v41 = vld [vmem:[%s0 + $0xa0] sm:$0xff]
    %v42 = vld [vmem:[%s0 + $0xa8] sm:$0xff]
    %v43 = vld [vmem:[%s0 + $0xb0] sm:$0xff]
    %v44 = vld [vmem:[%s0 + $0xb8] sm:$0xff]
    %v45 = vld [vmem:[%s0 + $0xc0] sm:$0xff]
    %v46 = vld [vmem:[%s0 + $0xc8] sm:$0xff]
    %v47 = vld [vmem:[%s0 + $0xd0] sm:$0xff]
    %v48 = vld [vmem:[%s0 + $0xd8] sm:$0xff]
    %v49 = vld [vmem:[%s0 + $0xe0] sm:$0xff]
    %v50 = vld [vmem:[%s0 + $0xe8] sm:$0xff]
    %v51 = vld [vmem:[%s0 + $0xf0] sm:$0xff]
    %v52 = vld [vmem:[%s0 + $0xf8] sm:$0xff]
    %v53 = vld [vmem:[%s0 + $0x100] sm:$0xff]
    %v54 = vld [vmem:[%s0 + $0x108] sm:$0xff]
    %v55 = vld [vmem:[%s0 + $0x110] sm:$0xff]
    %v56 = vld [vmem:[%s0 + $0x118] sm:$0xff]
    %v57 = vld [vmem:[%s0 + $0x120] sm:$0xff]
    %v58 = vld [vmem:[%s0 + $0x128] sm:$0xff]
    %v59 = vld [vmem:[%s0 + $0x130] sm:$0xff]
    %v60 = vld [vmem:[%s0 + $0x138] sm:$0xff]
    %v61 = vld [vmem:[%s0 + $0x140] sm:$0xff]
    %v62 = vld [vmem:[%s0 + $0x148] sm:$0xff]
    %v63 = vld [vmem:[%s0 + $0x150] sm:$0xff]
    %v64 = vld [vmem:[%s0 + $0x158] sm:$0xff]
    %v65 = vld [vmem:[%s0 + $0x160] sm:$0xff]
    %v66 = vld [vmem:[%s0 + $0x168] sm:$0xff]
    %v67 = vld [vmem:[%s0 + $0x170] sm:$0xff]
    %v68 = vld [vmem:[%s0 + $0x178] sm:$0xff]
    %v69 = vld [vmem:[%s0 + $0x180] sm:$0xff]
    %v70 = vld [vmem:[%s0 + $0x188] sm:$0xff]
    %v71 = vld [vmem:[%s0 + $0x190] sm:$0xff]
    %v72 = vld [vmem:[%s0 + $0x198] sm:$0xff]
    %v73 = vld [vmem:[%s0 + $0x1a0] sm:$0xff]
    %v74 = vld [vmem:[%s0 + $0x1a8] sm:$0xff]
    %v75 = vld [vmem:[%s0 + $0x1b0] sm:$0xff]
    %v76 = vld [vmem:[%s0 + $0x1b8] sm:$0xff]
    %v77 = vld [vmem:[%s0 + $0x1c0] sm:$0xff]
    %v78 = vld [vmem:[%s0 + $0x1c8] sm:$0xff]
    %v79 = vld [vmem:[%s0 + $0x1d0] sm:$0xff]
    %v80 = vld [vmem:[%s0 + $0x1d8] sm:$0xff]
    %v81 = vld [vmem:[%s0 + $0x1e0] sm:$0xff]
    %v82 = vld [vmem:[%s0 + $0x1e8] sm:$0xff]
    %v83 = vld [vmem:[%s0 + $0x1f0] sm:$0xff]
    %v84 = vld [vmem:[%s0 + $0x1f8] sm:$0xff]
    %v85 = vld [vmem:[%s1] sm:$0xff]
    %v86 = vld [vmem:[%s1 + $0x8] sm:$0xff]
    %v87 = vld [vmem:[%s1 + $0x10] sm:$0xff]
    %v88 = vld [vmem:[%s1 + $0x18] sm:$0xff]
    %v89 = vld [vmem:[%s1 + $0x20] sm:$0xf]
    %v90 = vld [vmem:[%s2] sm:$0x1]
    %v92 = vlaneseq
    %v93 = vshrl.u32 %v92, 7
    %v94 = vsub.s32 0, %v93
    %v95 = vrot.slane %v90, %v94
    %vm97 = vcmask 293888
    %v99 = vsel %vm97, %v21, 0
    %v102 = vsel %vm97, %v22, 0
    %v105 = vsel %vm97, %v23, 0
    %v108 = vsel %vm97, %v24, 0
    %v111 = vsel %vm97, %v25, 0
    %v114 = vsel %vm97, %v26, 0
    %v117 = vsel %vm97, %v27, 0
    %v120 = vsel %vm97, %v28, 0
    %v123 = vsel %vm97, %v29, 0
    %v126 = vsel %vm97, %v30, 0
    %v129 = vsel %vm97, %v31, 0
    %v132 = vsel %vm97, %v32, 0
    %v135 = vsel %vm97, %v33, 0
    %v138 = vsel %vm97, %v34, 0
    %v141 = vsel %vm97, %v35, 0
    %v144 = vsel %vm97, %v36, 0
    %v147 = vsel %vm97, %v37, 0
    %v150 = vsel %vm97, %v38, 0
    %v153 = vsel %vm97, %v39, 0
    %v156 = vsel %vm97, %v40, 0
    %v159 = vsel %vm97, %v41, 0
    %v162 = vsel %vm97, %v42, 0
    %v165 = vsel %vm97, %v43, 0
    %v168 = vsel %vm97, %v44, 0
    %v171 = vsel %vm97, %v45, 0
    %v174 = vsel %vm97, %v46, 0
    %v177 = vsel %vm97, %v47, 0
    %v180 = vsel %vm97, %v48, 0
    %v183 = vsel %vm97, %v49, 0
    %v186 = vsel %vm97, %v50, 0
    %v189 = vsel %vm97, %v51, 0
    %v192 = vsel %vm97, %v52, 0
    %v195 = vsel %vm97, %v53, 0
    %v198 = vsel %vm97, %v54, 0
    %v201 = vsel %vm97, %v55, 0
    %v204 = vsel %vm97, %v56, 0
    %v207 = vsel %vm97, %v57, 0
    %v210 = vsel %vm97, %v58, 0
    %v213 = vsel %vm97, %v59, 0
    %v216 = vsel %vm97, %v60, 0
    %v219 = vsel %vm97, %v61, 0
    %v222 = vsel %vm97, %v62, 0
    %v225 = vsel %vm97, %v63, 0
    %v228 = vsel %vm97, %v64, 0
    %v231 = vsel %vm97, %v65, 0
    %v234 = vsel %vm97, %v66, 0
    %v237 = vsel %vm97, %v67, 0
    %v240 = vsel %vm97, %v68, 0
    %v243 = vsel %vm97, %v69, 0
    %v246 = vsel %vm97, %v70, 0
    %v249 = vsel %vm97, %v71, 0
    %v252 = vsel %vm97, %v72, 0
    %v255 = vsel %vm97, %v73, 0
    %v258 = vsel %vm97, %v74, 0
    %v261 = vsel %vm97, %v75, 0
    %v264 = vsel %vm97, %v76, 0
    %v267 = vsel %vm97, %v77, 0
    %v270 = vsel %vm97, %v78, 0
    %v273 = vsel %vm97, %v79, 0
    %v276 = vsel %vm97, %v80, 0
    %v279 = vsel %vm97, %v81, 0
    %v282 = vsel %vm97, %v82, 0
    %v285 = vsel %vm97, %v83, 0
    %v288 = vsel %vm97, %v84, 0
    %vm290 = vcmask 1043456
    %v292 = vsel %vm290, %v89, 0
    %294 = vmatprep.subr.mxu0 0.0
    %295 = vmatpush1.msra.mxu0 %v85
    %296 = vmatprep.subr.mxu0 0.0
    %297 = vmatpush1.msra.mxu0 %v86
    %298 = vmatprep.subr.mxu0 0.0
    %299 = vmatpush1.msra.mxu0 %v87
    %300 = vmatprep.subr.mxu0 0.0
    %301 = vmatpush1.msra.mxu0 %v88
    %302 = vmatprep.subr.mxu0 0.0
    %303 = vmatpush1.msra.mxu0 %v292
    %304 = vmatprep.subr.mxu0 0.0
    %305 = vmatpush1.msra.mxu0 0.0
    %306 = vmatprep.subr.mxu0 0.0
    %307 = vmatpush1.msra.mxu0 0.0
    %308 = vmatprep.subr.mxu0 0.0
    %309 = vmatpush1.msra.mxu0 0.0
    %310 = vmatprep.subr.mxu0 0.0
    %311 = vmatpush1.msra.mxu0 0.0
    %312 = vmatprep.subr.mxu0 0.0
    %313 = vmatpush1.msra.mxu0 0.0
    %314 = vmatprep.subr.mxu0 0.0
    %315 = vmatpush1.msra.mxu0 0.0
    %316 = vmatprep.subr.mxu0 0.0
    %317 = vmatpush1.msra.mxu0 0.0
    %318 = vmatprep.subr.mxu0 0.0
    %319 = vmatpush1.msra.mxu0 0.0
    %320 = vmatprep.subr.mxu0 0.0
    %321 = vmatpush1.msra.mxu0 0.0
    %322 = vmatprep.subr.mxu0 0.0
    %323 = vmatpush1.msra.mxu0 0.0
    %324 = vmatprep.subr.mxu0 0.0
    %325 = vmatpush1.msra.mxu0 0.0
    %326 = vmatprep.subr.mxu0 0.0
    %327 = vmatpush1.msra.mxu0 0.0
    %328 = vmatprep.subr.mxu0 0.0
    %329 = vmatpush1.msra.mxu0 0.0
    %330 = vmatprep.subr.mxu0 0.0
    %331 = vmatpush1.msra.mxu0 0.0
    %332 = vmatprep.subr.mxu0 0.0
    %333 = vmatpush1.msra.mxu0 0.0
    %334 = vmatprep.subr.mxu0 0.0
    %335 = vmatpush1.msra.mxu0 0.0
    %336 = vmatprep.subr.mxu0 0.0
    %337 = vmatpush1.msra.mxu0 0.0
    %338 = vmatprep.subr.mxu0 0.0
    %339 = vmatpush1.msra.mxu0 0.0
    %340 = vmatprep.subr.mxu0 0.0
    %341 = vmatpush1.msra.mxu0 0.0
    %342 = vmatprep.subr.mxu0 0.0
    %343 = vmatpush1.msra.mxu0 0.0
    %344 = vmatprep.subr.mxu0 0.0
    %345 = vmatpush1.msra.mxu0 0.0
    %346 = vmatprep.subr.mxu0 0.0
    %347 = vmatpush1.msra.mxu0 0.0
    %348 = vmatprep.subr.mxu0 0.0
    %349 = vmatpush1.msra.mxu0 0.0
    %350 = vmatprep.subr.mxu0 0.0
    %351 = vmatpush1.msra.mxu0 0.0
    %352 = vmatprep.subr.mxu0 0.0
    %353 = vmatpush1.msra.mxu0 0.0
    %354 = vmatprep.subr.mxu0 0.0
    %355 = vmatpush1.msra.mxu0 0.0
    %356 = vmatprep.subr.mxu0 0.0
    %357 = vmatpush1.msra.mxu0 0.0
    %358 = vmatprep.mubr.f32.mxu0 0.0
    %359 = vmatmul.mubr.f32.gmra.mrb[0].mxu0 %v99
    %v360 = vpop.f32.mrb[0].mxu0
    %v361 = vadd.f32 %v95, %v360
    %v362 = vpop.f32.mrb[0].mxu0
    %363 = vmatprep.mubr.f32.mxu0 0.0
    %364 = vmatmul.mubr.f32.gmra.mrb[0].mxu0 %v102
    %v365 = vpop.f32.mrb[0].mxu0
    %v366 = vadd.f32 %v95, %v365
    %v367 = vpop.f32.mrb[0].mxu0
    %368 = vmatprep.mubr.f32.mxu0 0.0
    %369 = vmatmul.mubr.f32.gmra.mrb[0].mxu0 %v105
    %v370 = vpop.f32.mrb[0].mxu0
    %v371 = vadd.f32 %v95, %v370
    %v372 = vpop.f32.mrb[0].mxu0
    %373 = vmatprep.mubr.f32.mxu0 0.0
    %374 = vmatmul.mubr.f32.gmra.mrb[0].mxu0 %v108
    %v375 = vpop.f32.mrb[0].mxu0
    %v376 = vadd.f32 %v95, %v375
    %v377 = vpop.f32.mrb[0].mxu0
    %378 = vmatprep.mubr.f32.mxu0 0.0
    %379 = vmatmul.mubr.f32.gmra.mrb[0].mxu0 %v111
    %v380 = vpop.f32.mrb[0].mxu0
    %v381 = vadd.f32 %v95, %v380
    %v382 = vpop.f32.mrb[0].mxu0
    %383 = vmatprep.mubr.f32.mxu0 0.0
    %384 = vmatmul.mubr.f32.gmra.mrb[0].mxu0 %v114
    %v385 = vpop.f32.mrb[0].mxu0
    %v386 = vadd.f32 %v95, %v385
    %v387 = vpop.f32.mrb[0].mxu0
    %388 = vmatprep.mubr.f32.mxu0 0.0
    %389 = vmatmul.mubr.f32.gmra.mrb[0].mxu0 %v117
    %v390 = vpop.f32.mrb[0].mxu0
    %v391 = vadd.f32 %v95, %v390
    %v392 = vpop.f32.mrb[0].mxu0
    %393 = vmatprep.mubr.f32.mxu0 0.0
    %394 = vmatmul.mubr.f32.gmra.mrb[0].mxu0 %v120
    %v395 = vpop.f32.mrb[0].mxu0
    %v396 = vadd.f32 %v95, %v395
    %v397 = vpop.f32.mrb[0].mxu0
    %398 = vmatprep.mubr.f32.mxu0 0.0
    %399 = vmatmul.mubr.f32.gmra.mrb[0].mxu0 %v123
    %v400 = vpop.f32.mrb[0].mxu0
    %v401 = vadd.f32 %v95, %v400
    %v402 = vpop.f32.mrb[0].mxu0
    %403 = vmatprep.mubr.f32.mxu0 0.0
    %404 = vmatmul.mubr.f32.gmra.mrb[0].mxu0 %v126
    %v405 = vpop.f32.mrb[0].mxu0
    %v406 = vadd.f32 %v95, %v405
    %v407 = vpop.f32.mrb[0].mxu0
    %408 = vmatprep.mubr.f32.mxu0 0.0
    %409 = vmatmul.mubr.f32.gmra.mrb[0].mxu0 %v129
    %v410 = vpop.f32.mrb[0].mxu0
    %v411 = vadd.f32 %v95, %v410
    %v412 = vpop.f32.mrb[0].mxu0
    %413 = vmatprep.mubr.f32.mxu0 0.0
    %414 = vmatmul.mubr.f32.gmra.mrb[0].mxu0 %v132
    %v415 = vpop.f32.mrb[0].mxu0
    %v416 = vadd.f32 %v95, %v415
    %v417 = vpop.f32.mrb[0].mxu0
    %418 = vmatprep.mubr.f32.mxu0 0.0
    %419 = vmatmul.mubr.f32.gmra.mrb[0].mxu0 %v135
    %v420 = vpop.f32.mrb[0].mxu0
    %v421 = vadd.f32 %v95, %v420
    %v422 = vpop.f32.mrb[0].mxu0
    %423 = vmatprep.mubr.f32.mxu0 0.0
    %424 = vmatmul.mubr.f32.gmra.mrb[0].mxu0 %v138
    %v425 = vpop.f32.mrb[0].mxu0
    %v426 = vadd.f32 %v95, %v425
    %v427 = vpop.f32.mrb[0].mxu0
    %428 = vmatprep.mubr.f32.mxu0 0.0
    %429 = vmatmul.mubr.f32.gmra.mrb[0].mxu0 %v141
    %v430 = vpop.f32.mrb[0].mxu0
    %v431 = vadd.f32 %v95, %v430
    %v432 = vpop.f32.mrb[0].mxu0
    %433 = vmatprep.mubr.f32.mxu0 0.0
    %434 = vmatmul.mubr.f32.gmra.mrb[0].mxu0 %v144
    %v435 = vpop.f32.mrb[0].mxu0
    %v436 = vadd.f32 %v95, %v435
    %v437 = vpop.f32.mrb[0].mxu0
    %438 = vmatprep.mubr.f32.mxu0 0.0
    %439 = vmatmul.mubr.f32.gmra.mrb[0].mxu0 %v147
    %v440 = vpop.f32.mrb[0].mxu0
    %v441 = vadd.f32 %v95, %v440
    %v442 = vpop.f32.mrb[0].mxu0
    %443 = vmatprep.mubr.f32.mxu0 0.0
    %444 = vmatmul.mubr.f32.gmra.mrb[0].mxu0 %v150
    %v445 = vpop.f32.mrb[0].mxu0
    %v446 = vadd.f32 %v95, %v445
    %v447 = vpop.f32.mrb[0].mxu0
    %448 = vmatprep.mubr.f32.mxu0 0.0
    %449 = vmatmul.mubr.f32.gmra.mrb[0].mxu0 %v153
    %v450 = vpop.f32.mrb[0].mxu0
    %v451 = vadd.f32 %v95, %v450
    %v452 = vpop.f32.mrb[0].mxu0
    %453 = vmatprep.mubr.f32.mxu0 0.0
    %454 = vmatmul.mubr.f32.gmra.mrb[0].mxu0 %v156
    %v455 = vpop.f32.mrb[0].mxu0
    %v456 = vadd.f32 %v95, %v455
    %v457 = vpop.f32.mrb[0].mxu0
    %458 = vmatprep.mubr.f32.mxu0 0.0
    %459 = vmatmul.mubr.f32.gmra.mrb[0].mxu0 %v159
    %v460 = vpop.f32.mrb[0].mxu0
    %v461 = vadd.f32 %v95, %v460
    %v462 = vpop.f32.mrb[0].mxu0
    %463 = vmatprep.mubr.f32.mxu0 0.0
    %464 = vmatmul.mubr.f32.gmra.mrb[0].mxu0 %v162
    %v465 = vpop.f32.mrb[0].mxu0
    %v466 = vadd.f32 %v95, %v465
    %v467 = vpop.f32.mrb[0].mxu0
    %468 = vmatprep.mubr.f32.mxu0 0.0
    %469 = vmatmul.mubr.f32.gmra.mrb[0].mxu0 %v165
    %v470 = vpop.f32.mrb[0].mxu0
    %v471 = vadd.f32 %v95, %v470
    %v472 = vpop.f32.mrb[0].mxu0
    %473 = vmatprep.mubr.f32.mxu0 0.0
    %474 = vmatmul.mubr.f32.gmra.mrb[0].mxu0 %v168
    %v475 = vpop.f32.mrb[0].mxu0
    %v476 = vadd.f32 %v95, %v475
    %v477 = vpop.f32.mrb[0].mxu0
    %478 = vmatprep.mubr.f32.mxu0 0.0
    %479 = vmatmul.mubr.f32.gmra.mrb[0].mxu0 %v171
    %v480 = vpop.f32.mrb[0].mxu0
    %v481 = vadd.f32 %v95, %v480
    %v482 = vpop.f32.mrb[0].mxu0
    %483 = vmatprep.mubr.f32.mxu0 0.0
    %484 = vmatmul.mubr.f32.gmra.mrb[0].mxu0 %v174
    %v485 = vpop.f32.mrb[0].mxu0
    %v486 = vadd.f32 %v95, %v485
    %v487 = vpop.f32.mrb[0].mxu0
    %488 = vmatprep.mubr.f32.mxu0 0.0
    %489 = vmatmul.mubr.f32.gmra.mrb[0].mxu0 %v177
    %v490 = vpop.f32.mrb[0].mxu0
    %v491 = vadd.f32 %v95, %v490
    %v492 = vpop.f32.mrb[0].mxu0
    %493 = vmatprep.mubr.f32.mxu0 0.0
    %494 = vmatmul.mubr.f32.gmra.mrb[0].mxu0 %v180
    %v495 = vpop.f32.mrb[0].mxu0
    %v496 = vadd.f32 %v95, %v495
    %v497 = vpop.f32.mrb[0].mxu0
    %498 = vmatprep.mubr.f32.mxu0 0.0
    %499 = vmatmul.mubr.f32.gmra.mrb[0].mxu0 %v183
    %v500 = vpop.f32.mrb[0].mxu0
    %v501 = vadd.f32 %v95, %v500
    %v502 = vpop.f32.mrb[0].mxu0
    %503 = vmatprep.mubr.f32.mxu0 0.0
    %504 = vmatmul.mubr.f32.gmra.mrb[0].mxu0 %v186
    %v505 = vpop.f32.mrb[0].mxu0
    %v506 = vadd.f32 %v95, %v505
    %v507 = vpop.f32.mrb[0].mxu0
    %508 = vmatprep.mubr.f32.mxu0 0.0
    %509 = vmatmul.mubr.f32.gmra.mrb[0].mxu0 %v189
    %v510 = vpop.f32.mrb[0].mxu0
    %v511 = vadd.f32 %v95, %v510
    %v512 = vpop.f32.mrb[0].mxu0
    %513 = vmatprep.mubr.f32.mxu0 0.0
    %514 = vmatmul.mubr.f32.gmra.mrb[0].mxu0 %v192
    %v515 = vpop.f32.mrb[0].mxu0
    %v516 = vadd.f32 %v95, %v515
    %v517 = vpop.f32.mrb[0].mxu0
    %518 = vmatprep.mubr.f32.mxu0 0.0
    %519 = vmatmul.mubr.f32.gmra.mrb[0].mxu0 %v195
    %v520 = vpop.f32.mrb[0].mxu0
    %v521 = vadd.f32 %v95, %v520
    %v522 = vpop.f32.mrb[0].mxu0
    %523 = vmatprep.mubr.f32.mxu0 0.0
    %524 = vmatmul.mubr.f32.gmra.mrb[0].mxu0 %v198
    %v525 = vpop.f32.mrb[0].mxu0
    %v526 = vadd.f32 %v95, %v525
    %v527 = vpop.f32.mrb[0].mxu0
    %528 = vmatprep.mubr.f32.mxu0 0.0
    %529 = vmatmul.mubr.f32.gmra.mrb[0].mxu0 %v201
    %v530 = vpop.f32.mrb[0].mxu0
    %v531 = vadd.f32 %v95, %v530
    %v532 = vpop.f32.mrb[0].mxu0
    %533 = vmatprep.mubr.f32.mxu0 0.0
    %534 = vmatmul.mubr.f32.gmra.mrb[0].mxu0 %v204
    %v535 = vpop.f32.mrb[0].mxu0
    %v536 = vadd.f32 %v95, %v535
    %v537 = vpop.f32.mrb[0].mxu0
    %538 = vmatprep.mubr.f32.mxu0 0.0
    %539 = vmatmul.mubr.f32.gmra.mrb[0].mxu0 %v207
    %v540 = vpop.f32.mrb[0].mxu0
    %v541 = vadd.f32 %v95, %v540
    %v542 = vpop.f32.mrb[0].mxu0
    %543 = vmatprep.mubr.f32.mxu0 0.0
    %544 = vmatmul.mubr.f32.gmra.mrb[0].mxu0 %v210
    %v545 = vpop.f32.mrb[0].mxu0
    %v546 = vadd.f32 %v95, %v545
    %v547 = vpop.f32.mrb[0].mxu0
    %548 = vmatprep.mubr.f32.mxu0 0.0
    %549 = vmatmul.mubr.f32.gmra.mrb[0].mxu0 %v213
    %v550 = vpop.f32.mrb[0].mxu0
    %v551 = vadd.f32 %v95, %v550
    %v552 = vpop.f32.mrb[0].mxu0
    %553 = vmatprep.mubr.f32.mxu0 0.0
    %554 = vmatmul.mubr.f32.gmra.mrb[0].mxu0 %v216
    %v555 = vpop.f32.mrb[0].mxu0
    %v556 = vadd.f32 %v95, %v555
    %v557 = vpop.f32.mrb[0].mxu0
    %558 = vmatprep.mubr.f32.mxu0 0.0
    %559 = vmatmul.mubr.f32.gmra.mrb[0].mxu0 %v219
    %v560 = vpop.f32.mrb[0].mxu0
    %v561 = vadd.f32 %v95, %v560
    %v562 = vpop.f32.mrb[0].mxu0
    %563 = vmatprep.mubr.f32.mxu0 0.0
    %564 = vmatmul.mubr.f32.gmra.mrb[0].mxu0 %v222
    %v565 = vpop.f32.mrb[0].mxu0
    %v566 = vadd.f32 %v95, %v565
    %v567 = vpop.f32.mrb[0].mxu0
    %568 = vmatprep.mubr.f32.mxu0 0.0
    %569 = vmatmul.mubr.f32.gmra.mrb[0].mxu0 %v225
    %v570 = vpop.f32.mrb[0].mxu0
    %v571 = vadd.f32 %v95, %v570
    %v572 = vpop.f32.mrb[0].mxu0
    %573 = vmatprep.mubr.f32.mxu0 0.0
    %574 = vmatmul.mubr.f32.gmra.mrb[0].mxu0 %v228
    %v575 = vpop.f32.mrb[0].mxu0
    %v576 = vadd.f32 %v95, %v575
    %v577 = vpop.f32.mrb[0].mxu0
    %578 = vmatprep.mubr.f32.mxu0 0.0
    %579 = vmatmul.mubr.f32.gmra.mrb[0].mxu0 %v231
    %v580 = vpop.f32.mrb[0].mxu0
    %v581 = vadd.f32 %v95, %v580
    %v582 = vpop.f32.mrb[0].mxu0
    %583 = vmatprep.mubr.f32.mxu0 0.0
    %584 = vmatmul.mubr.f32.gmra.mrb[0].mxu0 %v234
    %v585 = vpop.f32.mrb[0].mxu0
    %v586 = vadd.f32 %v95, %v585
    %v587 = vpop.f32.mrb[0].mxu0
    %588 = vmatprep.mubr.f32.mxu0 0.0
    %589 = vmatmul.mubr.f32.gmra.mrb[0].mxu0 %v237
    %v590 = vpop.f32.mrb[0].mxu0
    %v591 = vadd.f32 %v95, %v590
    %v592 = vpop.f32.mrb[0].mxu0
    %593 = vmatprep.mubr.f32.mxu0 0.0
    %594 = vmatmul.mubr.f32.gmra.mrb[0].mxu0 %v240
    %v595 = vpop.f32.mrb[0].mxu0
    %v596 = vadd.f32 %v95, %v595
    %v597 = vpop.f32.mrb[0].mxu0
    %598 = vmatprep.mubr.f32.mxu0 0.0
    %599 = vmatmul.mubr.f32.gmra.mrb[0].mxu0 %v243
    %v600 = vpop.f32.mrb[0].mxu0
    %v601 = vadd.f32 %v95, %v600
    %v602 = vpop.f32.mrb[0].mxu0
    %603 = vmatprep.mubr.f32.mxu0 0.0
    %604 = vmatmul.mubr.f32.gmra.mrb[0].mxu0 %v246
    %v605 = vpop.f32.mrb[0].mxu0
    %v606 = vadd.f32 %v95, %v605
    %v607 = vpop.f32.mrb[0].mxu0
    %608 = vmatprep.mubr.f32.mxu0 0.0
    %609 = vmatmul.mubr.f32.gmra.mrb[0].mxu0 %v249
    %v610 = vpop.f32.mrb[0].mxu0
    %v611 = vadd.f32 %v95, %v610
    %v612 = vpop.f32.mrb[0].mxu0
    %613 = vmatprep.mubr.f32.mxu0 0.0
    %614 = vmatmul.mubr.f32.gmra.mrb[0].mxu0 %v252
    %v615 = vpop.f32.mrb[0].mxu0
    %v616 = vadd.f32 %v95, %v615
    %v617 = vpop.f32.mrb[0].mxu0
    %618 = vmatprep.mubr.f32.mxu0 0.0
    %619 = vmatmul.mubr.f32.gmra.mrb[0].mxu0 %v255
    %v620 = vpop.f32.mrb[0].mxu0
    %v621 = vadd.f32 %v95, %v620
    %v622 = vpop.f32.mrb[0].mxu0
    %623 = vmatprep.mubr.f32.mxu0 0.0
    %624 = vmatmul.mubr.f32.gmra.mrb[0].mxu0 %v258
    %v625 = vpop.f32.mrb[0].mxu0
    %v626 = vadd.f32 %v95, %v625
    %v627 = vpop.f32.mrb[0].mxu0
    %628 = vmatprep.mubr.f32.mxu0 0.0
    %629 = vmatmul.mubr.f32.gmra.mrb[0].mxu0 %v261
    %v630 = vpop.f32.mrb[0].mxu0
    %v631 = vadd.f32 %v95, %v630
    %v632 = vpop.f32.mrb[0].mxu0
    %633 = vmatprep.mubr.f32.mxu0 0.0
    %634 = vmatmul.mubr.f32.gmra.mrb[0].mxu0 %v264
    %v635 = vpop.f32.mrb[0].mxu0
    %v636 = vadd.f32 %v95, %v635
    %v637 = vpop.f32.mrb[0].mxu0
    %638 = vmatprep.mubr.f32.mxu0 0.0
    %639 = vmatmul.mubr.f32.gmra.mrb[0].mxu0 %v267
    %v640 = vpop.f32.mrb[0].mxu0
    %v641 = vadd.f32 %v95, %v640
    %v642 = vpop.f32.mrb[0].mxu0
    %643 = vmatprep.mubr.f32.mxu0 0.0
    %644 = vmatmul.mubr.f32.gmra.mrb[0].mxu0 %v270
    %v645 = vpop.f32.mrb[0].mxu0
    %v646 = vadd.f32 %v95, %v645
    %v647 = vpop.f32.mrb[0].mxu0
    %648 = vmatprep.mubr.f32.mxu0 0.0
    %649 = vmatmul.mubr.f32.gmra.mrb[0].mxu0 %v273
    %v650 = vpop.f32.mrb[0].mxu0
    %v651 = vadd.f32 %v95, %v650
    %v652 = vpop.f32.mrb[0].mxu0
    %653 = vmatprep.mubr.f32.mxu0 0.0
    %654 = vmatmul.mubr.f32.gmra.mrb[0].mxu0 %v276
    %v655 = vpop.f32.mrb[0].mxu0
    %v656 = vadd.f32 %v95, %v655
    %v657 = vpop.f32.mrb[0].mxu0
    %658 = vmatprep.mubr.f32.mxu0 0.0
    %659 = vmatmul.mubr.f32.gmra.mrb[0].mxu0 %v279
    %v660 = vpop.f32.mrb[0].mxu0
    %v661 = vadd.f32 %v95, %v660
    %v662 = vpop.f32.mrb[0].mxu0
    %663 = vmatprep.mubr.f32.mxu0 0.0
    %664 = vmatmul.mubr.f32.gmra.mrb[0].mxu0 %v282
    %v665 = vpop.f32.mrb[0].mxu0
    %v666 = vadd.f32 %v95, %v665
    %v667 = vpop.f32.mrb[0].mxu0
    %668 = vmatprep.mubr.f32.mxu0 0.0
    %669 = vmatmul.mubr.f32.gmra.mrb[0].mxu0 %v285
    %v670 = vpop.f32.mrb[0].mxu0
    %v671 = vadd.f32 %v95, %v670
    %v672 = vpop.f32.mrb[0].mxu0
    %673 = vmatprep.mubr.f32.mxu0 0.0
    %674 = vmatmul.mubr.f32.gmra.mrb[0].mxu0 %v288
    %v675 = vpop.f32.mrb[0].mxu0
    %v676 = vadd.f32 %v95, %v675
    %v677 = vpop.f32.mrb[0].mxu0
    %678 = vdwg.mxu0
    %vm679 = vcmask 851712
    %v680 = vsel %vm679, %v361, -inf
    %681 = vmax.xlane.f32.xlu0 %v680
    %v682 = vpop.xlane.xlu0 %681
    %v683 = vsel %vm679, %v366, -inf
    %684 = vmax.xlane.f32.xlu0 %v683
    %v685 = vpop.xlane.xlu0 %684
    %v686 = vsel %vm679, %v371, -inf
    %687 = vmax.xlane.f32.xlu0 %v686
    %v688 = vpop.xlane.xlu0 %687
    %v689 = vsel %vm679, %v376, -inf
    %690 = vmax.xlane.f32.xlu0 %v689
    %v691 = vpop.xlane.xlu0 %690
    %v692 = vsel %vm679, %v381, -inf
    %693 = vmax.xlane.f32.xlu0 %v692
    %v694 = vpop.xlane.xlu0 %693
    %v695 = vsel %vm679, %v386, -inf
    %696 = vmax.xlane.f32.xlu0 %v695
    %v697 = vpop.xlane.xlu0 %696
    %v698 = vsel %vm679, %v391, -inf
    %699 = vmax.xlane.f32.xlu0 %v698
    %v700 = vpop.xlane.xlu0 %699
    %v701 = vsel %vm679, %v396, -inf
    %702 = vmax.xlane.f32.xlu0 %v701
    %v703 = vpop.xlane.xlu0 %702
    %v704 = vsel %vm679, %v401, -inf
    %705 = vmax.xlane.f32.xlu0 %v704
    %v706 = vpop.xlane.xlu0 %705
    %v707 = vsel %vm679, %v406, -inf
    %708 = vmax.xlane.f32.xlu0 %v707
    %v709 = vpop.xlane.xlu0 %708
    %v710 = vsel %vm679, %v411, -inf
    %711 = vmax.xlane.f32.xlu0 %v710
    %v712 = vpop.xlane.xlu0 %711
    %v713 = vsel %vm679, %v416, -inf
    %714 = vmax.xlane.f32.xlu0 %v713
    %v715 = vpop.xlane.xlu0 %714
    %v716 = vsel %vm679, %v421, -inf
    %717 = vmax.xlane.f32.xlu0 %v716
    %v718 = vpop.xlane.xlu0 %717
    %v719 = vsel %vm679, %v426, -inf
    %720 = vmax.xlane.f32.xlu0 %v719
    %v721 = vpop.xlane.xlu0 %720
    %v722 = vsel %vm679, %v431, -inf
    %723 = vmax.xlane.f32.xlu0 %v722
    %v724 = vpop.xlane.xlu0 %723
    %v725 = vsel %vm679, %v436, -inf
    %726 = vmax.xlane.f32.xlu0 %v725
    %v727 = vpop.xlane.xlu0 %726
    %v728 = vsel %vm679, %v441, -inf
    %729 = vmax.xlane.f32.xlu0 %v728
    %v730 = vpop.xlane.xlu0 %729
    %v731 = vsel %vm679, %v446, -inf
    %732 = vmax.xlane.f32.xlu0 %v731
    %v733 = vpop.xlane.xlu0 %732
    %v734 = vsel %vm679, %v451, -inf
    %735 = vmax.xlane.f32.xlu0 %v734
    %v736 = vpop.xlane.xlu0 %735
    %v737 = vsel %vm679, %v456, -inf
    %738 = vmax.xlane.f32.xlu0 %v737
    %v739 = vpop.xlane.xlu0 %738
    %v740 = vsel %vm679, %v461, -inf
    %741 = vmax.xlane.f32.xlu0 %v740
    %v742 = vpop.xlane.xlu0 %741
    %v743 = vsel %vm679, %v466, -inf
    %744 = vmax.xlane.f32.xlu0 %v743
    %v745 = vpop.xlane.xlu0 %744
    %v746 = vsel %vm679, %v471, -inf
    %747 = vmax.xlane.f32.xlu0 %v746
    %v748 = vpop.xlane.xlu0 %747
    %v749 = vsel %vm679, %v476, -inf
    %750 = vmax.xlane.f32.xlu0 %v749
    %v751 = vpop.xlane.xlu0 %750
    %v752 = vsel %vm679, %v481, -inf
    %753 = vmax.xlane.f32.xlu0 %v752
    %v754 = vpop.xlane.xlu0 %753
    %v755 = vsel %vm679, %v486, -inf
    %756 = vmax.xlane.f32.xlu0 %v755
    %v757 = vpop.xlane.xlu0 %756
    %v758 = vsel %vm679, %v491, -inf
    %759 = vmax.xlane.f32.xlu0 %v758
    %v760 = vpop.xlane.xlu0 %759
    %v761 = vsel %vm679, %v496, -inf
    %762 = vmax.xlane.f32.xlu0 %v761
    %v763 = vpop.xlane.xlu0 %762
    %v764 = vsel %vm679, %v501, -inf
    %765 = vmax.xlane.f32.xlu0 %v764
    %v766 = vpop.xlane.xlu0 %765
    %v767 = vsel %vm679, %v506, -inf
    %768 = vmax.xlane.f32.xlu0 %v767
    %v769 = vpop.xlane.xlu0 %768
    %v770 = vsel %vm679, %v511, -inf
    %771 = vmax.xlane.f32.xlu0 %v770
    %v772 = vpop.xlane.xlu0 %771
    %v773 = vsel %vm679, %v516, -inf
    %774 = vmax.xlane.f32.xlu0 %v773
    %v775 = vpop.xlane.xlu0 %774
    %v776 = vsel %vm679, %v521, -inf
    %777 = vmax.xlane.f32.xlu0 %v776
    %v778 = vpop.xlane.xlu0 %777
    %v779 = vsel %vm679, %v526, -inf
    %780 = vmax.xlane.f32.xlu0 %v779
    %v781 = vpop.xlane.xlu0 %780
    %v782 = vsel %vm679, %v531, -inf
    %783 = vmax.xlane.f32.xlu0 %v782
    %v784 = vpop.xlane.xlu0 %783
    %v785 = vsel %vm679, %v536, -inf
    %786 = vmax.xlane.f32.xlu0 %v785
    %v787 = vpop.xlane.xlu0 %786
    %v788 = vsel %vm679, %v541, -inf
    %789 = vmax.xlane.f32.xlu0 %v788
    %v790 = vpop.xlane.xlu0 %789
    %v791 = vsel %vm679, %v546, -inf
    %792 = vmax.xlane.f32.xlu0 %v791
    %v793 = vpop.xlane.xlu0 %792
    %v794 = vsel %vm679, %v551, -inf
    %795 = vmax.xlane.f32.xlu0 %v794
    %v796 = vpop.xlane.xlu0 %795
    %v797 = vsel %vm679, %v556, -inf
    %798 = vmax.xlane.f32.xlu0 %v797
    %v799 = vpop.xlane.xlu0 %798
    %v800 = vsel %vm679, %v561, -inf
    %801 = vmax.xlane.f32.xlu0 %v800
    %v802 = vpop.xlane.xlu0 %801
    %v803 = vsel %vm679, %v566, -inf
    %804 = vmax.xlane.f32.xlu0 %v803
    %v805 = vpop.xlane.xlu0 %804
    %v806 = vsel %vm679, %v571, -inf
    %807 = vmax.xlane.f32.xlu0 %v806
    %v808 = vpop.xlane.xlu0 %807
    %v809 = vsel %vm679, %v576, -inf
    %810 = vmax.xlane.f32.xlu0 %v809
    %v811 = vpop.xlane.xlu0 %810
    %v812 = vsel %vm679, %v581, -inf
    %813 = vmax.xlane.f32.xlu0 %v812
    %v814 = vpop.xlane.xlu0 %813
    %v815 = vsel %vm679, %v586, -inf
    %816 = vmax.xlane.f32.xlu0 %v815
    %v817 = vpop.xlane.xlu0 %816
    %v818 = vsel %vm679, %v591, -inf
    %819 = vmax.xlane.f32.xlu0 %v818
    %v820 = vpop.xlane.xlu0 %819
    %v821 = vsel %vm679, %v596, -inf
    %822 = vmax.xlane.f32.xlu0 %v821
    %v823 = vpop.xlane.xlu0 %822
    %v824 = vsel %vm679, %v601, -inf
    %825 = vmax.xlane.f32.xlu0 %v824
    %v826 = vpop.xlane.xlu0 %825
    %v827 = vsel %vm679, %v606, -inf
    %828 = vmax.xlane.f32.xlu0 %v827
    %v829 = vpop.xlane.xlu0 %828
    %v830 = vsel %vm679, %v611, -inf
    %831 = vmax.xlane.f32.xlu0 %v830
    %v832 = vpop.xlane.xlu0 %831
    %v833 = vsel %vm679, %v616, -inf
    %834 = vmax.xlane.f32.xlu0 %v833
    %v835 = vpop.xlane.xlu0 %834
    %v836 = vsel %vm679, %v621, -inf
    %837 = vmax.xlane.f32.xlu0 %v836
    %v838 = vpop.xlane.xlu0 %837
    %v839 = vsel %vm679, %v626, -inf
    %840 = vmax.xlane.f32.xlu0 %v839
    %v841 = vpop.xlane.xlu0 %840
    %v842 = vsel %vm679, %v631, -inf
    %843 = vmax.xlane.f32.xlu0 %v842
    %v844 = vpop.xlane.xlu0 %843
    %v845 = vsel %vm679, %v636, -inf
    %846 = vmax.xlane.f32.xlu0 %v845
    %v847 = vpop.xlane.xlu0 %846
    %v848 = vsel %vm679, %v641, -inf
    %849 = vmax.xlane.f32.xlu0 %v848
    %v850 = vpop.xlane.xlu0 %849
    %v851 = vsel %vm679, %v646, -inf
    %852 = vmax.xlane.f32.xlu0 %v851
    %v853 = vpop.xlane.xlu0 %852
    %v854 = vsel %vm679, %v651, -inf
    %855 = vmax.xlane.f32.xlu0 %v854
    %v856 = vpop.xlane.xlu0 %855
    %v857 = vsel %vm679, %v656, -inf
    %858 = vmax.xlane.f32.xlu0 %v857
    %v859 = vpop.xlane.xlu0 %858
    %v860 = vsel %vm679, %v661, -inf
    %861 = vmax.xlane.f32.xlu0 %v860
    %v862 = vpop.xlane.xlu0 %861
    %v863 = vsel %vm679, %v666, -inf
    %864 = vmax.xlane.f32.xlu0 %v863
    %v865 = vpop.xlane.xlu0 %864
    %v866 = vsel %vm679, %v671, -inf
    %867 = vmax.xlane.f32.xlu0 %v866
    %v868 = vpop.xlane.xlu0 %867
    %v869 = vsel %vm679, %v676, -inf
    %870 = vmax.xlane.f32.xlu0 %v869
    %v871 = vpop.xlane.xlu0 %870
    %v872 = vsub.f32 %v361, %v682
    %v873 = vsub.f32 %v366, %v685
    %v874 = vsub.f32 %v371, %v688
    %v875 = vsub.f32 %v376, %v691
    %v876 = vsub.f32 %v381, %v694
    %v877 = vsub.f32 %v386, %v697
    %v878 = vsub.f32 %v391, %v700
    %v879 = vsub.f32 %v396, %v703
    %v880 = vsub.f32 %v401, %v706
    %v881 = vsub.f32 %v406, %v709
    %v882 = vsub.f32 %v411, %v712
    %v883 = vsub.f32 %v416, %v715
    %v884 = vsub.f32 %v421, %v718
    %v885 = vsub.f32 %v426, %v721
    %v886 = vsub.f32 %v431, %v724
    %v887 = vsub.f32 %v436, %v727
    %v888 = vsub.f32 %v441, %v730
    %v889 = vsub.f32 %v446, %v733
    %v890 = vsub.f32 %v451, %v736
    %v891 = vsub.f32 %v456, %v739
    %v892 = vsub.f32 %v461, %v742
    %v893 = vsub.f32 %v466, %v745
    %v894 = vsub.f32 %v471, %v748
    %v895 = vsub.f32 %v476, %v751
    %v896 = vsub.f32 %v481, %v754
    %v897 = vsub.f32 %v486, %v757
    %v898 = vsub.f32 %v491, %v760
    %v899 = vsub.f32 %v496, %v763
    %v900 = vsub.f32 %v501, %v766
    %v901 = vsub.f32 %v506, %v769
    %v902 = vsub.f32 %v511, %v772
    %v903 = vsub.f32 %v516, %v775
    %v904 = vsub.f32 %v521, %v778
    %v905 = vsub.f32 %v526, %v781
    %v906 = vsub.f32 %v531, %v784
    %v907 = vsub.f32 %v536, %v787
    %v908 = vsub.f32 %v541, %v790
    %v909 = vsub.f32 %v546, %v793
    %v910 = vsub.f32 %v551, %v796
    %v911 = vsub.f32 %v556, %v799
    %v912 = vsub.f32 %v561, %v802
    %v913 = vsub.f32 %v566, %v805
    %v914 = vsub.f32 %v571, %v808
    %v915 = vsub.f32 %v576, %v811
    %v916 = vsub.f32 %v581, %v814
    %v917 = vsub.f32 %v586, %v817
    %v918 = vsub.f32 %v591, %v820
    %v919 = vsub.f32 %v596, %v823
    %v920 = vsub.f32 %v601, %v826
    %v921 = vsub.f32 %v606, %v829
    %v922 = vsub.f32 %v611, %v832
    %v923 = vsub.f32 %v616, %v835
    %v924 = vsub.f32 %v621, %v838
    %v925 = vsub.f32 %v626, %v841
    %v926 = vsub.f32 %v631, %v844
    %v927 = vsub.f32 %v636, %v847
    %v928 = vsub.f32 %v641, %v850
    %v929 = vsub.f32 %v646, %v853
    %v930 = vsub.f32 %v651, %v856
    %v931 = vsub.f32 %v656, %v859
    %v932 = vsub.f32 %v661, %v862
    %v933 = vsub.f32 %v666, %v865
    %v934 = vsub.f32 %v671, %v868
    %v935 = vsub.f32 %v676, %v871
    %v936 = vmul.f32 %v872, 1.442695
    %v937 = vpow.pop %v936
    %v938 = vmul.f32 %v873, 1.442695
    %v939 = vpow.pop %v938
    %v940 = vmul.f32 %v874, 1.442695
    %v941 = vpow.pop %v940
    %v942 = vmul.f32 %v875, 1.442695
    %v943 = vpow.pop %v942
    %v944 = vmul.f32 %v876, 1.442695
    %v945 = vpow.pop %v944
    %v946 = vmul.f32 %v877, 1.442695
    %v947 = vpow.pop %v946
    %v948 = vmul.f32 %v878, 1.442695
    %v949 = vpow.pop %v948
    %v950 = vmul.f32 %v879, 1.442695
    %v951 = vpow.pop %v950
    %v952 = vmul.f32 %v880, 1.442695
    %v953 = vpow.pop %v952
    %v954 = vmul.f32 %v881, 1.442695
    %v955 = vpow.pop %v954
    %v956 = vmul.f32 %v882, 1.442695
    %v957 = vpow.pop %v956
    %v958 = vmul.f32 %v883, 1.442695
    %v959 = vpow.pop %v958
    %v960 = vmul.f32 %v884, 1.442695
    %v961 = vpow.pop %v960
    %v962 = vmul.f32 %v885, 1.442695
    %v963 = vpow.pop %v962
    %v964 = vmul.f32 %v886, 1.442695
    %v965 = vpow.pop %v964
    %v966 = vmul.f32 %v887, 1.442695
    %v967 = vpow.pop %v966
    %v968 = vmul.f32 %v888, 1.442695
    %v969 = vpow.pop %v968
    %v970 = vmul.f32 %v889, 1.442695
    %v971 = vpow.pop %v970
    %v972 = vmul.f32 %v890, 1.442695
    %v973 = vpow.pop %v972
    %v974 = vmul.f32 %v891, 1.442695
    %v975 = vpow.pop %v974
    %v976 = vmul.f32 %v892, 1.442695
    %v977 = vpow.pop %v976
    %v978 = vmul.f32 %v893, 1.442695
    %v979 = vpow.pop %v978
    %v980 = vmul.f32 %v894, 1.442695
    %v981 = vpow.pop %v980
    %v982 = vmul.f32 %v895, 1.442695
    %v983 = vpow.pop %v982
    %v984 = vmul.f32 %v896, 1.442695
    %v985 = vpow.pop %v984
    %v986 = vmul.f32 %v897, 1.442695
    %v987 = vpow.pop %v986
    %v988 = vmul.f32 %v898, 1.442695
    %v989 = vpow.pop %v988
    %v990 = vmul.f32 %v899, 1.442695
    %v991 = vpow.pop %v990
    %v992 = vmul.f32 %v900, 1.442695
    %v993 = vpow.pop %v992
    %v994 = vmul.f32 %v901, 1.442695
    %v995 = vpow.pop %v994
    %v996 = vmul.f32 %v902, 1.442695
    %v997 = vpow.pop %v996
    %v998 = vmul.f32 %v903, 1.442695
    %v999 = vpow.pop %v998
    %v1000 = vmul.f32 %v904, 1.442695
    %v1001 = vpow.pop %v1000
    %v1002 = vmul.f32 %v905, 1.442695
    %v1003 = vpow.pop %v1002
    %v1004 = vmul.f32 %v906, 1.442695
    %v1005 = vpow.pop %v1004
    %v1006 = vmul.f32 %v907, 1.442695
    %v1007 = vpow.pop %v1006
    %v1008 = vmul.f32 %v908, 1.442695
    %v1009 = vpow.pop %v1008
    %v1010 = vmul.f32 %v909, 1.442695
    %v1011 = vpow.pop %v1010
    %v1012 = vmul.f32 %v910, 1.442695
    %v1013 = vpow.pop %v1012
    %v1014 = vmul.f32 %v911, 1.442695
    %v1015 = vpow.pop %v1014
    %v1016 = vmul.f32 %v912, 1.442695
    %v1017 = vpow.pop %v1016
    %v1018 = vmul.f32 %v913, 1.442695
    %v1019 = vpow.pop %v1018
    %v1020 = vmul.f32 %v914, 1.442695
    %v1021 = vpow.pop %v1020
    %v1022 = vmul.f32 %v915, 1.442695
    %v1023 = vpow.pop %v1022
    %v1024 = vmul.f32 %v916, 1.442695
    %v1025 = vpow.pop %v1024
    %v1026 = vmul.f32 %v917, 1.442695
    %v1027 = vpow.pop %v1026
    %v1028 = vmul.f32 %v918, 1.442695
    %v1029 = vpow.pop %v1028
    %v1030 = vmul.f32 %v919, 1.442695
    %v1031 = vpow.pop %v1030
    %v1032 = vmul.f32 %v920, 1.442695
    %v1033 = vpow.pop %v1032
    %v1034 = vmul.f32 %v921, 1.442695
    %v1035 = vpow.pop %v1034
    %v1036 = vmul.f32 %v922, 1.442695
    %v1037 = vpow.pop %v1036
    %v1038 = vmul.f32 %v923, 1.442695
    %v1039 = vpow.pop %v1038
    %v1040 = vmul.f32 %v924, 1.442695
    %v1041 = vpow.pop %v1040
    %v1042 = vmul.f32 %v925, 1.442695
    %v1043 = vpow.pop %v1042
    %v1044 = vmul.f32 %v926, 1.442695
    %v1045 = vpow.pop %v1044
    %v1046 = vmul.f32 %v927, 1.442695
    %v1047 = vpow.pop %v1046
    %v1048 = vmul.f32 %v928, 1.442695
    %v1049 = vpow.pop %v1048
    %v1050 = vmul.f32 %v929, 1.442695
    %v1051 = vpow.pop %v1050
    %v1052 = vmul.f32 %v930, 1.442695
    %v1053 = vpow.pop %v1052
    %v1054 = vmul.f32 %v931, 1.442695
    %v1055 = vpow.pop %v1054
    %v1056 = vmul.f32 %v932, 1.442695
    %v1057 = vpow.pop %v1056
    %v1058 = vmul.f32 %v933, 1.442695
    %v1059 = vpow.pop %v1058
    %v1060 = vmul.f32 %v934, 1.442695
    %v1061 = vpow.pop %v1060
    %v1062 = vmul.f32 %v935, 1.442695
    %v1063 = vpow.pop %v1062
    %1128 = vrot.lane.b32.xlu0 %v937, 32
    %v1129 = vpop.permute.xlu0 %1128
    %1130 = vrot.lane.b32.xlu0 %v939, 32
    %v1131 = vpop.permute.xlu0 %1130
    %1132 = vrot.lane.b32.xlu0 %v941, 32
    %v1133 = vpop.permute.xlu0 %1132
    %1134 = vrot.lane.b32.xlu0 %v943, 32
    %v1135 = vpop.permute.xlu0 %1134
    %1136 = vrot.lane.b32.xlu0 %v945, 32
    %v1137 = vpop.permute.xlu0 %1136
    %1138 = vrot.lane.b32.xlu0 %v947, 32
    %v1139 = vpop.permute.xlu0 %1138
    %1140 = vrot.lane.b32.xlu0 %v949, 32
    %v1141 = vpop.permute.xlu0 %1140
    %1142 = vrot.lane.b32.xlu0 %v951, 32
    %v1143 = vpop.permute.xlu0 %1142
    %1144 = vrot.lane.b32.xlu0 %v953, 32
    %v1145 = vpop.permute.xlu0 %1144
    %1146 = vrot.lane.b32.xlu0 %v955, 32
    %v1147 = vpop.permute.xlu0 %1146
    %1148 = vrot.lane.b32.xlu0 %v957, 32
    %v1149 = vpop.permute.xlu0 %1148
    %1150 = vrot.lane.b32.xlu0 %v959, 32
    %v1151 = vpop.permute.xlu0 %1150
    %1152 = vrot.lane.b32.xlu0 %v961, 32
    %v1153 = vpop.permute.xlu0 %1152
    %1154 = vrot.lane.b32.xlu0 %v963, 32
    %v1155 = vpop.permute.xlu0 %1154
    %1156 = vrot.lane.b32.xlu0 %v965, 32
    %v1157 = vpop.permute.xlu0 %1156
    %1158 = vrot.lane.b32.xlu0 %v967, 32
    %v1159 = vpop.permute.xlu0 %1158
    %1160 = vrot.lane.b32.xlu0 %v969, 32
    %v1161 = vpop.permute.xlu0 %1160
    %1162 = vrot.lane.b32.xlu0 %v971, 32
    %v1163 = vpop.permute.xlu0 %1162
    %1164 = vrot.lane.b32.xlu0 %v973, 32
    %v1165 = vpop.permute.xlu0 %1164
    %1166 = vrot.lane.b32.xlu0 %v975, 32
    %v1167 = vpop.permute.xlu0 %1166
    %1168 = vrot.lane.b32.xlu0 %v977, 32
    %v1169 = vpop.permute.xlu0 %1168
    %1170 = vrot.lane.b32.xlu0 %v979, 32
    %v1171 = vpop.permute.xlu0 %1170
    %1172 = vrot.lane.b32.xlu0 %v981, 32
    %v1173 = vpop.permute.xlu0 %1172
    %1174 = vrot.lane.b32.xlu0 %v983, 32
    %v1175 = vpop.permute.xlu0 %1174
    %1176 = vrot.lane.b32.xlu0 %v985, 32
    %v1177 = vpop.permute.xlu0 %1176
    %1178 = vrot.lane.b32.xlu0 %v987, 32
    %v1179 = vpop.permute.xlu0 %1178
    %1180 = vrot.lane.b32.xlu0 %v989, 32
    %v1181 = vpop.permute.xlu0 %1180
    %1182 = vrot.lane.b32.xlu0 %v991, 32
    %v1183 = vpop.permute.xlu0 %1182
    %1184 = vrot.lane.b32.xlu0 %v993, 32
    %v1185 = vpop.permute.xlu0 %1184
    %1186 = vrot.lane.b32.xlu0 %v995, 32
    %v1187 = vpop.permute.xlu0 %1186
    %1188 = vrot.lane.b32.xlu0 %v997, 32
    %v1189 = vpop.permute.xlu0 %1188
    %1190 = vrot.lane.b32.xlu0 %v999, 32
    %v1191 = vpop.permute.xlu0 %1190
    %1192 = vrot.lane.b32.xlu0 %v1001, 32
    %v1193 = vpop.permute.xlu0 %1192
    %1194 = vrot.lane.b32.xlu0 %v1003, 32
    %v1195 = vpop.permute.xlu0 %1194
    %1196 = vrot.lane.b32.xlu0 %v1005, 32
    %v1197 = vpop.permute.xlu0 %1196
    %1198 = vrot.lane.b32.xlu0 %v1007, 32
    %v1199 = vpop.permute.xlu0 %1198
    %1200 = vrot.lane.b32.xlu0 %v1009, 32
    %v1201 = vpop.permute.xlu0 %1200
    %1202 = vrot.lane.b32.xlu0 %v1011, 32
    %v1203 = vpop.permute.xlu0 %1202
    %1204 = vrot.lane.b32.xlu0 %v1013, 32
    %v1205 = vpop.permute.xlu0 %1204
    %1206 = vrot.lane.b32.xlu0 %v1015, 32
    %v1207 = vpop.permute.xlu0 %1206
    %1208 = vrot.lane.b32.xlu0 %v1017, 32
    %v1209 = vpop.permute.xlu0 %1208
    %1210 = vrot.lane.b32.xlu0 %v1019, 32
    %v1211 = vpop.permute.xlu0 %1210
    %1212 = vrot.lane.b32.xlu0 %v1021, 32
    %v1213 = vpop.permute.xlu0 %1212
    %1214 = vrot.lane.b32.xlu0 %v1023, 32
    %v1215 = vpop.permute.xlu0 %1214
    %1216 = vrot.lane.b32.xlu0 %v1025, 32
    %v1217 = vpop.permute.xlu0 %1216
    %1218 = vrot.lane.b32.xlu0 %v1027, 32
    %v1219 = vpop.permute.xlu0 %1218
    %1220 = vrot.lane.b32.xlu0 %v1029, 32
    %v1221 = vpop.permute.xlu0 %1220
    %1222 = vrot.lane.b32.xlu0 %v1031, 32
    %v1223 = vpop.permute.xlu0 %1222
    %1224 = vrot.lane.b32.xlu0 %v1033, 32
    %v1225 = vpop.permute.xlu0 %1224
    %1226 = vrot.lane.b32.xlu0 %v1035, 32
    %v1227 = vpop.permute.xlu0 %1226
    %1228 = vrot.lane.b32.xlu0 %v1037, 32
    %v1229 = vpop.permute.xlu0 %1228
    %1230 = vrot.lane.b32.xlu0 %v1039, 32
    %v1231 = vpop.permute.xlu0 %1230
    %1232 = vrot.lane.b32.xlu0 %v1041, 32
    %v1233 = vpop.permute.xlu0 %1232
    %1234 = vrot.lane.b32.xlu0 %v1043, 32
    %v1235 = vpop.permute.xlu0 %1234
    %1236 = vrot.lane.b32.xlu0 %v1045, 32
    %v1237 = vpop.permute.xlu0 %1236
    %1238 = vrot.lane.b32.xlu0 %v1047, 32
    %v1239 = vpop.permute.xlu0 %1238
    %1240 = vrot.lane.b32.xlu0 %v1049, 32
    %v1241 = vpop.permute.xlu0 %1240
    %1242 = vrot.lane.b32.xlu0 %v1051, 32
    %v1243 = vpop.permute.xlu0 %1242
    %1244 = vrot.lane.b32.xlu0 %v1053, 32
    %v1245 = vpop.permute.xlu0 %1244
    %1246 = vrot.lane.b32.xlu0 %v1055, 32
    %v1247 = vpop.permute.xlu0 %1246
    %1248 = vrot.lane.b32.xlu0 %v1057, 32
    %v1249 = vpop.permute.xlu0 %1248
    %1250 = vrot.lane.b32.xlu0 %v1059, 32
    %v1251 = vpop.permute.xlu0 %1250
    %1252 = vrot.lane.b32.xlu0 %v1061, 32
    %v1253 = vpop.permute.xlu0 %1252
    %1254 = vrot.lane.b32.xlu0 %v1063, 32
    %v1255 = vpop.permute.xlu0 %1254
    %vm1320 = vcmask 64512
    %v1321 = vsel %vm1320, %v1129, 0.0
    %1322 = vadd.xlane.f32.xlu0 %v1321
    %v1323 = vpop.xlane.xlu0 %1322
    %v1324 = vsel %vm1320, %v1131, 0.0
    %1325 = vadd.xlane.f32.xlu0 %v1324
    %v1326 = vpop.xlane.xlu0 %1325
    %v1327 = vsel %vm1320, %v1133, 0.0
    %1328 = vadd.xlane.f32.xlu0 %v1327
    %v1329 = vpop.xlane.xlu0 %1328
    %v1330 = vsel %vm1320, %v1135, 0.0
    %1331 = vadd.xlane.f32.xlu0 %v1330
    %v1332 = vpop.xlane.xlu0 %1331
    %v1333 = vsel %vm1320, %v1137, 0.0
    %1334 = vadd.xlane.f32.xlu0 %v1333
    %v1335 = vpop.xlane.xlu0 %1334
    %v1336 = vsel %vm1320, %v1139, 0.0
    %1337 = vadd.xlane.f32.xlu0 %v1336
    %v1338 = vpop.xlane.xlu0 %1337
    %v1339 = vsel %vm1320, %v1141, 0.0
    %1340 = vadd.xlane.f32.xlu0 %v1339
    %v1341 = vpop.xlane.xlu0 %1340
    %v1342 = vsel %vm1320, %v1143, 0.0
    %1343 = vadd.xlane.f32.xlu0 %v1342
    %v1344 = vpop.xlane.xlu0 %1343
    %v1345 = vsel %vm1320, %v1145, 0.0
    %1346 = vadd.xlane.f32.xlu0 %v1345
    %v1347 = vpop.xlane.xlu0 %1346
    %v1348 = vsel %vm1320, %v1147, 0.0
    %1349 = vadd.xlane.f32.xlu0 %v1348
    %v1350 = vpop.xlane.xlu0 %1349
    %v1351 = vsel %vm1320, %v1149, 0.0
    %1352 = vadd.xlane.f32.xlu0 %v1351
    %v1353 = vpop.xlane.xlu0 %1352
    %v1354 = vsel %vm1320, %v1151, 0.0
    %1355 = vadd.xlane.f32.xlu0 %v1354
    %v1356 = vpop.xlane.xlu0 %1355
    %v1357 = vsel %vm1320, %v1153, 0.0
    %1358 = vadd.xlane.f32.xlu0 %v1357
    %v1359 = vpop.xlane.xlu0 %1358
    %v1360 = vsel %vm1320, %v1155, 0.0
    %1361 = vadd.xlane.f32.xlu0 %v1360
    %v1362 = vpop.xlane.xlu0 %1361
    %v1363 = vsel %vm1320, %v1157, 0.0
    %1364 = vadd.xlane.f32.xlu0 %v1363
    %v1365 = vpop.xlane.xlu0 %1364
    %v1366 = vsel %vm1320, %v1159, 0.0
    %1367 = vadd.xlane.f32.xlu0 %v1366
    %v1368 = vpop.xlane.xlu0 %1367
    %v1369 = vsel %vm1320, %v1161, 0.0
    %1370 = vadd.xlane.f32.xlu0 %v1369
    %v1371 = vpop.xlane.xlu0 %1370
    %v1372 = vsel %vm1320, %v1163, 0.0
    %1373 = vadd.xlane.f32.xlu0 %v1372
    %v1374 = vpop.xlane.xlu0 %1373
    %v1375 = vsel %vm1320, %v1165, 0.0
    %1376 = vadd.xlane.f32.xlu0 %v1375
    %v1377 = vpop.xlane.xlu0 %1376
    %v1378 = vsel %vm1320, %v1167, 0.0
    %1379 = vadd.xlane.f32.xlu0 %v1378
    %v1380 = vpop.xlane.xlu0 %1379
    %v1381 = vsel %vm1320, %v1169, 0.0
    %1382 = vadd.xlane.f32.xlu0 %v1381
    %v1383 = vpop.xlane.xlu0 %1382
    %v1384 = vsel %vm1320, %v1171, 0.0
    %1385 = vadd.xlane.f32.xlu0 %v1384
    %v1386 = vpop.xlane.xlu0 %1385
    %v1387 = vsel %vm1320, %v1173, 0.0
    %1388 = vadd.xlane.f32.xlu0 %v1387
    %v1389 = vpop.xlane.xlu0 %1388
    %v1390 = vsel %vm1320, %v1175, 0.0
    %1391 = vadd.xlane.f32.xlu0 %v1390
    %v1392 = vpop.xlane.xlu0 %1391
    %v1393 = vsel %vm1320, %v1177, 0.0
    %1394 = vadd.xlane.f32.xlu0 %v1393
    %v1395 = vpop.xlane.xlu0 %1394
    %v1396 = vsel %vm1320, %v1179, 0.0
    %1397 = vadd.xlane.f32.xlu0 %v1396
    %v1398 = vpop.xlane.xlu0 %1397
    %v1399 = vsel %vm1320, %v1181, 0.0
    %1400 = vadd.xlane.f32.xlu0 %v1399
    %v1401 = vpop.xlane.xlu0 %1400
    %v1402 = vsel %vm1320, %v1183, 0.0
    %1403 = vadd.xlane.f32.xlu0 %v1402
    %v1404 = vpop.xlane.xlu0 %1403
    %v1405 = vsel %vm1320, %v1185, 0.0
    %1406 = vadd.xlane.f32.xlu0 %v1405
    %v1407 = vpop.xlane.xlu0 %1406
    %v1408 = vsel %vm1320, %v1187, 0.0
    %1409 = vadd.xlane.f32.xlu0 %v1408
    %v1410 = vpop.xlane.xlu0 %1409
    %v1411 = vsel %vm1320, %v1189, 0.0
    %1412 = vadd.xlane.f32.xlu0 %v1411
    %v1413 = vpop.xlane.xlu0 %1412
    %v1414 = vsel %vm1320, %v1191, 0.0
    %1415 = vadd.xlane.f32.xlu0 %v1414
    %v1416 = vpop.xlane.xlu0 %1415
    %v1417 = vsel %vm1320, %v1193, 0.0
    %1418 = vadd.xlane.f32.xlu0 %v1417
    %v1419 = vpop.xlane.xlu0 %1418
    %v1420 = vsel %vm1320, %v1195, 0.0
    %1421 = vadd.xlane.f32.xlu0 %v1420
    %v1422 = vpop.xlane.xlu0 %1421
    %v1423 = vsel %vm1320, %v1197, 0.0
    %1424 = vadd.xlane.f32.xlu0 %v1423
    %v1425 = vpop.xlane.xlu0 %1424
    %v1426 = vsel %vm1320, %v1199, 0.0
    %1427 = vadd.xlane.f32.xlu0 %v1426
    %v1428 = vpop.xlane.xlu0 %1427
    %v1429 = vsel %vm1320, %v1201, 0.0
    %1430 = vadd.xlane.f32.xlu0 %v1429
    %v1431 = vpop.xlane.xlu0 %1430
    %v1432 = vsel %vm1320, %v1203, 0.0
    %1433 = vadd.xlane.f32.xlu0 %v1432
    %v1434 = vpop.xlane.xlu0 %1433
    %v1435 = vsel %vm1320, %v1205, 0.0
    %1436 = vadd.xlane.f32.xlu0 %v1435
    %v1437 = vpop.xlane.xlu0 %1436
    %v1438 = vsel %vm1320, %v1207, 0.0
    %1439 = vadd.xlane.f32.xlu0 %v1438
    %v1440 = vpop.xlane.xlu0 %1439
    %v1441 = vsel %vm1320, %v1209, 0.0
    %1442 = vadd.xlane.f32.xlu0 %v1441
    %v1443 = vpop.xlane.xlu0 %1442
    %v1444 = vsel %vm1320, %v1211, 0.0
    %1445 = vadd.xlane.f32.xlu0 %v1444
    %v1446 = vpop.xlane.xlu0 %1445
    %v1447 = vsel %vm1320, %v1213, 0.0
    %1448 = vadd.xlane.f32.xlu0 %v1447
    %v1449 = vpop.xlane.xlu0 %1448
    %v1450 = vsel %vm1320, %v1215, 0.0
    %1451 = vadd.xlane.f32.xlu0 %v1450
    %v1452 = vpop.xlane.xlu0 %1451
    %v1453 = vsel %vm1320, %v1217, 0.0
    %1454 = vadd.xlane.f32.xlu0 %v1453
    %v1455 = vpop.xlane.xlu0 %1454
    %v1456 = vsel %vm1320, %v1219, 0.0
    %1457 = vadd.xlane.f32.xlu0 %v1456
    %v1458 = vpop.xlane.xlu0 %1457
    %v1459 = vsel %vm1320, %v1221, 0.0
    %1460 = vadd.xlane.f32.xlu0 %v1459
    %v1461 = vpop.xlane.xlu0 %1460
    %v1462 = vsel %vm1320, %v1223, 0.0
    %1463 = vadd.xlane.f32.xlu0 %v1462
    %v1464 = vpop.xlane.xlu0 %1463
    %v1465 = vsel %vm1320, %v1225, 0.0
    %1466 = vadd.xlane.f32.xlu0 %v1465
    %v1467 = vpop.xlane.xlu0 %1466
    %v1468 = vsel %vm1320, %v1227, 0.0
    %1469 = vadd.xlane.f32.xlu0 %v1468
    %v1470 = vpop.xlane.xlu0 %1469
    %v1471 = vsel %vm1320, %v1229, 0.0
    %1472 = vadd.xlane.f32.xlu0 %v1471
    %v1473 = vpop.xlane.xlu0 %1472
    %v1474 = vsel %vm1320, %v1231, 0.0
    %1475 = vadd.xlane.f32.xlu0 %v1474
    %v1476 = vpop.xlane.xlu0 %1475
    %v1477 = vsel %vm1320, %v1233, 0.0
    %1478 = vadd.xlane.f32.xlu0 %v1477
    %v1479 = vpop.xlane.xlu0 %1478
    %v1480 = vsel %vm1320, %v1235, 0.0
    %1481 = vadd.xlane.f32.xlu0 %v1480
    %v1482 = vpop.xlane.xlu0 %1481
    %v1483 = vsel %vm1320, %v1237, 0.0
    %1484 = vadd.xlane.f32.xlu0 %v1483
    %v1485 = vpop.xlane.xlu0 %1484
    %v1486 = vsel %vm1320, %v1239, 0.0
    %1487 = vadd.xlane.f32.xlu0 %v1486
    %v1488 = vpop.xlane.xlu0 %1487
    %v1489 = vsel %vm1320, %v1241, 0.0
    %1490 = vadd.xlane.f32.xlu0 %v1489
    %v1491 = vpop.xlane.xlu0 %1490
    %v1492 = vsel %vm1320, %v1243, 0.0
    %1493 = vadd.xlane.f32.xlu0 %v1492
    %v1494 = vpop.xlane.xlu0 %1493
    %v1495 = vsel %vm1320, %v1245, 0.0
    %1496 = vadd.xlane.f32.xlu0 %v1495
    %v1497 = vpop.xlane.xlu0 %1496
    %v1498 = vsel %vm1320, %v1247, 0.0
    %1499 = vadd.xlane.f32.xlu0 %v1498
    %v1500 = vpop.xlane.xlu0 %1499
    %v1501 = vsel %vm1320, %v1249, 0.0
    %1502 = vadd.xlane.f32.xlu0 %v1501
    %v1503 = vpop.xlane.xlu0 %1502
    %v1504 = vsel %vm1320, %v1251, 0.0
    %1505 = vadd.xlane.f32.xlu0 %v1504
    %v1506 = vpop.xlane.xlu0 %1505
    %v1507 = vsel %vm1320, %v1253, 0.0
    %1508 = vadd.xlane.f32.xlu0 %v1507
    %v1509 = vpop.xlane.xlu0 %1508
    %v1510 = vsel %vm1320, %v1255, 0.0
    %1511 = vadd.xlane.f32.xlu0 %v1510
    %v1512 = vpop.xlane.xlu0 %1511
    %v1513 = vrcp.pop %v1323
    %v1514 = vmul.f32 %v937, %v1513
    %v1515 = vrcp.pop %v1326
    %v1516 = vmul.f32 %v939, %v1515
    %v1517 = vrcp.pop %v1329
    %v1518 = vmul.f32 %v941, %v1517
    %v1519 = vrcp.pop %v1332
    %v1520 = vmul.f32 %v943, %v1519
    %v1521 = vrcp.pop %v1335
    %v1522 = vmul.f32 %v945, %v1521
    %v1523 = vrcp.pop %v1338
    %v1524 = vmul.f32 %v947, %v1523
    %v1525 = vrcp.pop %v1341
    %v1526 = vmul.f32 %v949, %v1525
    %v1527 = vrcp.pop %v1344
    %v1528 = vmul.f32 %v951, %v1527
    %v1529 = vrcp.pop %v1347
    %v1530 = vmul.f32 %v953, %v1529
    %v1531 = vrcp.pop %v1350
    %v1532 = vmul.f32 %v955, %v1531
    %v1533 = vrcp.pop %v1353
    %v1534 = vmul.f32 %v957, %v1533
    %v1535 = vrcp.pop %v1356
    %v1536 = vmul.f32 %v959, %v1535
    %v1537 = vrcp.pop %v1359
    %v1538 = vmul.f32 %v961, %v1537
    %v1539 = vrcp.pop %v1362
    %v1540 = vmul.f32 %v963, %v1539
    %v1541 = vrcp.pop %v1365
    %v1542 = vmul.f32 %v965, %v1541
    %v1543 = vrcp.pop %v1368
    %v1544 = vmul.f32 %v967, %v1543
    %v1545 = vrcp.pop %v1371
    %v1546 = vmul.f32 %v969, %v1545
    %v1547 = vrcp.pop %v1374
    %v1548 = vmul.f32 %v971, %v1547
    %v1549 = vrcp.pop %v1377
    %v1550 = vmul.f32 %v973, %v1549
    %v1551 = vrcp.pop %v1380
    %v1552 = vmul.f32 %v975, %v1551
    %v1553 = vrcp.pop %v1383
    %v1554 = vmul.f32 %v977, %v1553
    %v1555 = vrcp.pop %v1386
    %v1556 = vmul.f32 %v979, %v1555
    %v1557 = vrcp.pop %v1389
    %v1558 = vmul.f32 %v981, %v1557
    %v1559 = vrcp.pop %v1392
    %v1560 = vmul.f32 %v983, %v1559
    %v1561 = vrcp.pop %v1395
    %v1562 = vmul.f32 %v985, %v1561
    %v1563 = vrcp.pop %v1398
    %v1564 = vmul.f32 %v987, %v1563
    %v1565 = vrcp.pop %v1401
    %v1566 = vmul.f32 %v989, %v1565
    %v1567 = vrcp.pop %v1404
    %v1568 = vmul.f32 %v991, %v1567
    %v1569 = vrcp.pop %v1407
    %v1570 = vmul.f32 %v993, %v1569
    %v1571 = vrcp.pop %v1410
    %v1572 = vmul.f32 %v995, %v1571
    %v1573 = vrcp.pop %v1413
    %v1574 = vmul.f32 %v997, %v1573
    %v1575 = vrcp.pop %v1416
    %v1576 = vmul.f32 %v999, %v1575
    %v1577 = vrcp.pop %v1419
    %v1578 = vmul.f32 %v1001, %v1577
    %v1579 = vrcp.pop %v1422
    %v1580 = vmul.f32 %v1003, %v1579
    %v1581 = vrcp.pop %v1425
    %v1582 = vmul.f32 %v1005, %v1581
    %v1583 = vrcp.pop %v1428
    %v1584 = vmul.f32 %v1007, %v1583
    %v1585 = vrcp.pop %v1431
    %v1586 = vmul.f32 %v1009, %v1585
    %v1587 = vrcp.pop %v1434
    %v1588 = vmul.f32 %v1011, %v1587
    %v1589 = vrcp.pop %v1437
    %v1590 = vmul.f32 %v1013, %v1589
    %v1591 = vrcp.pop %v1440
    %v1592 = vmul.f32 %v1015, %v1591
    %v1593 = vrcp.pop %v1443
    %v1594 = vmul.f32 %v1017, %v1593
    %v1595 = vrcp.pop %v1446
    %v1596 = vmul.f32 %v1019, %v1595
    %v1597 = vrcp.pop %v1449
    %v1598 = vmul.f32 %v1021, %v1597
    %v1599 = vrcp.pop %v1452
    %v1600 = vmul.f32 %v1023, %v1599
    %v1601 = vrcp.pop %v1455
    %v1602 = vmul.f32 %v1025, %v1601
    %v1603 = vrcp.pop %v1458
    %v1604 = vmul.f32 %v1027, %v1603
    %v1605 = vrcp.pop %v1461
    %v1606 = vmul.f32 %v1029, %v1605
    %v1607 = vrcp.pop %v1464
    %v1608 = vmul.f32 %v1031, %v1607
    %v1609 = vrcp.pop %v1467
    %v1610 = vmul.f32 %v1033, %v1609
    %v1611 = vrcp.pop %v1470
    %v1612 = vmul.f32 %v1035, %v1611
    %v1613 = vrcp.pop %v1473
    %v1614 = vmul.f32 %v1037, %v1613
    %v1615 = vrcp.pop %v1476
    %v1616 = vmul.f32 %v1039, %v1615
    %v1617 = vrcp.pop %v1479
    %v1618 = vmul.f32 %v1041, %v1617
    %v1619 = vrcp.pop %v1482
    %v1620 = vmul.f32 %v1043, %v1619
    %v1621 = vrcp.pop %v1485
    %v1622 = vmul.f32 %v1045, %v1621
    %v1623 = vrcp.pop %v1488
    %v1624 = vmul.f32 %v1047, %v1623
    %v1625 = vrcp.pop %v1491
    %v1626 = vmul.f32 %v1049, %v1625
    %v1627 = vrcp.pop %v1494
    %v1628 = vmul.f32 %v1051, %v1627
    %v1629 = vrcp.pop %v1497
    %v1630 = vmul.f32 %v1053, %v1629
    %v1631 = vrcp.pop %v1500
    %v1632 = vmul.f32 %v1055, %v1631
    %v1633 = vrcp.pop %v1503
    %v1634 = vmul.f32 %v1057, %v1633
    %v1635 = vrcp.pop %v1506
    %v1636 = vmul.f32 %v1059, %v1635
    %v1637 = vrcp.pop %v1509
    %v1638 = vmul.f32 %v1061, %v1637
    %v1639 = vrcp.pop %v1512
    %v1640 = vmul.f32 %v1063, %v1639
    %v1641 = vmax.f32 %v361, 0.0
    %v1642 = vmax.f32 %v366, 0.0
    %v1643 = vmax.f32 %v371, 0.0
    %v1644 = vmax.f32 %v376, 0.0
    %v1645 = vmax.f32 %v381, 0.0
    %v1646 = vmax.f32 %v386, 0.0
    %v1647 = vmax.f32 %v391, 0.0
    %v1648 = vmax.f32 %v396, 0.0
    %v1649 = vmax.f32 %v401, 0.0
    %v1650 = vmax.f32 %v406, 0.0
    %v1651 = vmax.f32 %v411, 0.0
    %v1652 = vmax.f32 %v416, 0.0
    %v1653 = vmax.f32 %v421, 0.0
    %v1654 = vmax.f32 %v426, 0.0
    %v1655 = vmax.f32 %v431, 0.0
    %v1656 = vmax.f32 %v436, 0.0
    %v1657 = vmax.f32 %v441, 0.0
    %v1658 = vmax.f32 %v446, 0.0
    %v1659 = vmax.f32 %v451, 0.0
    %v1660 = vmax.f32 %v456, 0.0
    %v1661 = vmax.f32 %v461, 0.0
    %v1662 = vmax.f32 %v466, 0.0
    %v1663 = vmax.f32 %v471, 0.0
    %v1664 = vmax.f32 %v476, 0.0
    %v1665 = vmax.f32 %v481, 0.0
    %v1666 = vmax.f32 %v486, 0.0
    %v1667 = vmax.f32 %v491, 0.0
    %v1668 = vmax.f32 %v496, 0.0
    %v1669 = vmax.f32 %v501, 0.0
    %v1670 = vmax.f32 %v506, 0.0
    %v1671 = vmax.f32 %v511, 0.0
    %v1672 = vmax.f32 %v516, 0.0
    %v1673 = vmax.f32 %v521, 0.0
    %v1674 = vmax.f32 %v526, 0.0
    %v1675 = vmax.f32 %v531, 0.0
    %v1676 = vmax.f32 %v536, 0.0
    %v1677 = vmax.f32 %v541, 0.0
    %v1678 = vmax.f32 %v546, 0.0
    %v1679 = vmax.f32 %v551, 0.0
    %v1680 = vmax.f32 %v556, 0.0
    %v1681 = vmax.f32 %v561, 0.0
    %v1682 = vmax.f32 %v566, 0.0
    %v1683 = vmax.f32 %v571, 0.0
    %v1684 = vmax.f32 %v576, 0.0
    %v1685 = vmax.f32 %v581, 0.0
    %v1686 = vmax.f32 %v586, 0.0
    %v1687 = vmax.f32 %v591, 0.0
    %v1688 = vmax.f32 %v596, 0.0
    %v1689 = vmax.f32 %v601, 0.0
    %v1690 = vmax.f32 %v606, 0.0
    %v1691 = vmax.f32 %v611, 0.0
    %v1692 = vmax.f32 %v616, 0.0
    %v1693 = vmax.f32 %v621, 0.0
    %v1694 = vmax.f32 %v626, 0.0
    %v1695 = vmax.f32 %v631, 0.0
    %v1696 = vmax.f32 %v636, 0.0
    %v1697 = vmax.f32 %v641, 0.0
    %v1698 = vmax.f32 %v646, 0.0
    %v1699 = vmax.f32 %v651, 0.0
    %v1700 = vmax.f32 %v656, 0.0
    %v1701 = vmax.f32 %v661, 0.0
    %v1702 = vmax.f32 %v666, 0.0
    %v1703 = vmax.f32 %v671, 0.0
    %v1704 = vmax.f32 %v676, 0.0
    %v1705 = vld [vmem:[%s3] sm:$0xff]
    %v1706 = vld [vmem:[%s3 + $0x8] sm:$0xff]
    %v1707 = vld [vmem:[%s3 + $0x10] sm:$0xff]
    %v1708 = vld [vmem:[%s3 + $0x18] sm:$0xff]
    %v1709 = vld [vmem:[%s3 + $0x20] sm:$0xff]
    %v1710 = vld [vmem:[%s3 + $0x28] sm:$0xff]
    %v1711 = vld [vmem:[%s3 + $0x30] sm:$0xff]
    %v1712 = vld [vmem:[%s3 + $0x38] sm:$0xff]
    %v1713 = vld [vmem:[%s3 + $0x40] sm:$0xff]
    %v1714 = vld [vmem:[%s3 + $0x48] sm:$0xff]
    %v1715 = vld [vmem:[%s3 + $0x50] sm:$0xff]
    %v1716 = vld [vmem:[%s3 + $0x58] sm:$0xff]
    %v1717 = vld [vmem:[%s3 + $0x60] sm:$0xff]
    %v1718 = vld [vmem:[%s3 + $0x68] sm:$0xff]
    %v1719 = vld [vmem:[%s3 + $0x70] sm:$0xff]
    %v1720 = vld [vmem:[%s3 + $0x78] sm:$0xff]
    %v1721 = vld [vmem:[%s4] sm:$0x1]
    %v1723 = vlaneseq
    %v1724 = vshrl.u32 %v1723, 7
    %v1725 = vsub.s32 0, %v1724
    %v1726 = vrot.slane %v1721, %v1725
    %1728 = vmatprep.subr.mxu0 0.0
    %1729 = vmatpush1.msra.mxu0 %v1705
    %1730 = vmatprep.subr.mxu0 0.0
    %1731 = vmatpush1.msra.mxu0 %v1706
    %1732 = vmatprep.subr.mxu0 0.0
    %1733 = vmatpush1.msra.mxu0 %v1707
    %1734 = vmatprep.subr.mxu0 0.0
    %1735 = vmatpush1.msra.mxu0 %v1708
    %1736 = vmatprep.subr.mxu0 0.0
    %1737 = vmatpush1.msra.mxu0 %v1709
    %1738 = vmatprep.subr.mxu0 0.0
    %1739 = vmatpush1.msra.mxu0 %v1710
    %1740 = vmatprep.subr.mxu0 0.0
    %1741 = vmatpush1.msra.mxu0 %v1711
    %1742 = vmatprep.subr.mxu0 0.0
    %1743 = vmatpush1.msra.mxu0 %v1712
    %1744 = vmatprep.subr.mxu0 0.0
    %1745 = vmatpush1.msra.mxu0 %v1713
    %1746 = vmatprep.subr.mxu0 0.0
    %1747 = vmatpush1.msra.mxu0 %v1714
    %1748 = vmatprep.subr.mxu0 0.0
    %1749 = vmatpush1.msra.mxu0 %v1715
    %1750 = vmatprep.subr.mxu0 0.0
    %1751 = vmatpush1.msra.mxu0 %v1716
    %1752 = vmatprep.subr.mxu0 0.0
    %1753 = vmatpush1.msra.mxu0 %v1717
    %1754 = vmatprep.subr.mxu0 0.0
    %1755 = vmatpush1.msra.mxu0 %v1718
    %1756 = vmatprep.subr.mxu0 0.0
    %1757 = vmatpush1.msra.mxu0 %v1719
    %1758 = vmatprep.subr.mxu0 0.0
    %1759 = vmatpush1.msra.mxu0 %v1720
    %1760 = vmatprep.subr.mxu0 0.0
    %1761 = vmatpush1.msra.mxu0 0.0
    %1762 = vmatprep.subr.mxu0 0.0
    %1763 = vmatpush1.msra.mxu0 0.0
    %1764 = vmatprep.subr.mxu0 0.0
    %1765 = vmatpush1.msra.mxu0 0.0
    %1766 = vmatprep.subr.mxu0 0.0
    %1767 = vmatpush1.msra.mxu0 0.0
    %1768 = vmatprep.subr.mxu0 0.0
    %1769 = vmatpush1.msra.mxu0 0.0
    %1770 = vmatprep.subr.mxu0 0.0
    %1771 = vmatpush1.msra.mxu0 0.0
    %1772 = vmatprep.subr.mxu0 0.0
    %1773 = vmatpush1.msra.mxu0 0.0
    %1774 = vmatprep.subr.mxu0 0.0
    %1775 = vmatpush1.msra.mxu0 0.0
    %1776 = vmatprep.subr.mxu0 0.0
    %1777 = vmatpush1.msra.mxu0 0.0
    %1778 = vmatprep.subr.mxu0 0.0
    %1779 = vmatpush1.msra.mxu0 0.0
    %1780 = vmatprep.subr.mxu0 0.0
    %1781 = vmatpush1.msra.mxu0 0.0
    %1782 = vmatprep.subr.mxu0 0.0
    %1783 = vmatpush1.msra.mxu0 0.0
    %1784 = vmatprep.subr.mxu0 0.0
    %1785 = vmatpush1.msra.mxu0 0.0
    %1786 = vmatprep.subr.mxu0 0.0
    %1787 = vmatpush1.msra.mxu0 0.0
    %1788 = vmatprep.subr.mxu0 0.0
    %1789 = vmatpush1.msra.mxu0 0.0
    %1790 = vmatprep.subr.mxu0 0.0
    %1791 = vmatpush1.msra.mxu0 0.0
    %1792 = vmatprep.mubr.f32.mxu0 0.0
    %1793 = vmatmul.mubr.f32.gmra.mrb[0].mxu0 %v1641
    %v1794 = vpop.f32.mrb[0].mxu0
    %v1795 = vadd.f32 %v1726, %v1794
    %v1796 = vpop.f32.mrb[0].mxu0
    %1797 = vmatprep.mubr.f32.mxu0 0.0
    %1798 = vmatmul.mubr.f32.gmra.mrb[0].mxu0 %v1642
    %v1799 = vpop.f32.mrb[0].mxu0
    %v1800 = vadd.f32 %v1726, %v1799
    %v1801 = vpop.f32.mrb[0].mxu0
    %1802 = vmatprep.mubr.f32.mxu0 0.0
    %1803 = vmatmul.mubr.f32.gmra.mrb[0].mxu0 %v1643
    %v1804 = vpop.f32.mrb[0].mxu0
    %v1805 = vadd.f32 %v1726, %v1804
    %v1806 = vpop.f32.mrb[0].mxu0
    %1807 = vmatprep.mubr.f32.mxu0 0.0
    %1808 = vmatmul.mubr.f32.gmra.mrb[0].mxu0 %v1644
    %v1809 = vpop.f32.mrb[0].mxu0
    %v1810 = vadd.f32 %v1726, %v1809
    %v1811 = vpop.f32.mrb[0].mxu0
    %1812 = vmatprep.mubr.f32.mxu0 0.0
    %1813 = vmatmul.mubr.f32.gmra.mrb[0].mxu0 %v1645
    %v1814 = vpop.f32.mrb[0].mxu0
    %v1815 = vadd.f32 %v1726, %v1814
    %v1816 = vpop.f32.mrb[0].mxu0
    %1817 = vmatprep.mubr.f32.mxu0 0.0
    %1818 = vmatmul.mubr.f32.gmra.mrb[0].mxu0 %v1646
    %v1819 = vpop.f32.mrb[0].mxu0
    %v1820 = vadd.f32 %v1726, %v1819
    %v1821 = vpop.f32.mrb[0].mxu0
    %1822 = vmatprep.mubr.f32.mxu0 0.0
    %1823 = vmatmul.mubr.f32.gmra.mrb[0].mxu0 %v1647
    %v1824 = vpop.f32.mrb[0].mxu0
    %v1825 = vadd.f32 %v1726, %v1824
    %v1826 = vpop.f32.mrb[0].mxu0
    %1827 = vmatprep.mubr.f32.mxu0 0.0
    %1828 = vmatmul.mubr.f32.gmra.mrb[0].mxu0 %v1648
    %v1829 = vpop.f32.mrb[0].mxu0
    %v1830 = vadd.f32 %v1726, %v1829
    %v1831 = vpop.f32.mrb[0].mxu0
    %1832 = vmatprep.mubr.f32.mxu0 0.0
    %1833 = vmatmul.mubr.f32.gmra.mrb[0].mxu0 %v1649
    %v1834 = vpop.f32.mrb[0].mxu0
    %v1835 = vadd.f32 %v1726, %v1834
    %v1836 = vpop.f32.mrb[0].mxu0
    %1837 = vmatprep.mubr.f32.mxu0 0.0
    %1838 = vmatmul.mubr.f32.gmra.mrb[0].mxu0 %v1650
    %v1839 = vpop.f32.mrb[0].mxu0
    %v1840 = vadd.f32 %v1726, %v1839
    %v1841 = vpop.f32.mrb[0].mxu0
    %1842 = vmatprep.mubr.f32.mxu0 0.0
    %1843 = vmatmul.mubr.f32.gmra.mrb[0].mxu0 %v1651
    %v1844 = vpop.f32.mrb[0].mxu0
    %v1845 = vadd.f32 %v1726, %v1844
    %v1846 = vpop.f32.mrb[0].mxu0
    %1847 = vmatprep.mubr.f32.mxu0 0.0
    %1848 = vmatmul.mubr.f32.gmra.mrb[0].mxu0 %v1652
    %v1849 = vpop.f32.mrb[0].mxu0
    %v1850 = vadd.f32 %v1726, %v1849
    %v1851 = vpop.f32.mrb[0].mxu0
    %1852 = vmatprep.mubr.f32.mxu0 0.0
    %1853 = vmatmul.mubr.f32.gmra.mrb[0].mxu0 %v1653
    %v1854 = vpop.f32.mrb[0].mxu0
    %v1855 = vadd.f32 %v1726, %v1854
    %v1856 = vpop.f32.mrb[0].mxu0
    %1857 = vmatprep.mubr.f32.mxu0 0.0
    %1858 = vmatmul.mubr.f32.gmra.mrb[0].mxu0 %v1654
    %v1859 = vpop.f32.mrb[0].mxu0
    %v1860 = vadd.f32 %v1726, %v1859
    %v1861 = vpop.f32.mrb[0].mxu0
    %1862 = vmatprep.mubr.f32.mxu0 0.0
    %1863 = vmatmul.mubr.f32.gmra.mrb[0].mxu0 %v1655
    %v1864 = vpop.f32.mrb[0].mxu0
    %v1865 = vadd.f32 %v1726, %v1864
    %v1866 = vpop.f32.mrb[0].mxu0
    %1867 = vmatprep.mubr.f32.mxu0 0.0
    %1868 = vmatmul.mubr.f32.gmra.mrb[0].mxu0 %v1656
    %v1869 = vpop.f32.mrb[0].mxu0
    %v1870 = vadd.f32 %v1726, %v1869
    %v1871 = vpop.f32.mrb[0].mxu0
    %1872 = vmatprep.mubr.f32.mxu0 0.0
    %1873 = vmatmul.mubr.f32.gmra.mrb[0].mxu0 %v1657
    %v1874 = vpop.f32.mrb[0].mxu0
    %v1875 = vadd.f32 %v1726, %v1874
    %v1876 = vpop.f32.mrb[0].mxu0
    %1877 = vmatprep.mubr.f32.mxu0 0.0
    %1878 = vmatmul.mubr.f32.gmra.mrb[0].mxu0 %v1658
    %v1879 = vpop.f32.mrb[0].mxu0
    %v1880 = vadd.f32 %v1726, %v1879
    %v1881 = vpop.f32.mrb[0].mxu0
    %1882 = vmatprep.mubr.f32.mxu0 0.0
    %1883 = vmatmul.mubr.f32.gmra.mrb[0].mxu0 %v1659
    %v1884 = vpop.f32.mrb[0].mxu0
    %v1885 = vadd.f32 %v1726, %v1884
    %v1886 = vpop.f32.mrb[0].mxu0
    %1887 = vmatprep.mubr.f32.mxu0 0.0
    %1888 = vmatmul.mubr.f32.gmra.mrb[0].mxu0 %v1660
    %v1889 = vpop.f32.mrb[0].mxu0
    %v1890 = vadd.f32 %v1726, %v1889
    %v1891 = vpop.f32.mrb[0].mxu0
    %1892 = vmatprep.mubr.f32.mxu0 0.0
    %1893 = vmatmul.mubr.f32.gmra.mrb[0].mxu0 %v1661
    %v1894 = vpop.f32.mrb[0].mxu0
    %v1895 = vadd.f32 %v1726, %v1894
    %v1896 = vpop.f32.mrb[0].mxu0
    %1897 = vmatprep.mubr.f32.mxu0 0.0
    %1898 = vmatmul.mubr.f32.gmra.mrb[0].mxu0 %v1662
    %v1899 = vpop.f32.mrb[0].mxu0
    %v1900 = vadd.f32 %v1726, %v1899
    %v1901 = vpop.f32.mrb[0].mxu0
    %1902 = vmatprep.mubr.f32.mxu0 0.0
    %1903 = vmatmul.mubr.f32.gmra.mrb[0].mxu0 %v1663
    %v1904 = vpop.f32.mrb[0].mxu0
    %v1905 = vadd.f32 %v1726, %v1904
    %v1906 = vpop.f32.mrb[0].mxu0
    %1907 = vmatprep.mubr.f32.mxu0 0.0
    %1908 = vmatmul.mubr.f32.gmra.mrb[0].mxu0 %v1664
    %v1909 = vpop.f32.mrb[0].mxu0
    %v1910 = vadd.f32 %v1726, %v1909
    %v1911 = vpop.f32.mrb[0].mxu0
    %1912 = vmatprep.mubr.f32.mxu0 0.0
    %1913 = vmatmul.mubr.f32.gmra.mrb[0].mxu0 %v1665
    %v1914 = vpop.f32.mrb[0].mxu0
    %v1915 = vadd.f32 %v1726, %v1914
    %v1916 = vpop.f32.mrb[0].mxu0
    %1917 = vmatprep.mubr.f32.mxu0 0.0
    %1918 = vmatmul.mubr.f32.gmra.mrb[0].mxu0 %v1666
    %v1919 = vpop.f32.mrb[0].mxu0
    %v1920 = vadd.f32 %v1726, %v1919
    %v1921 = vpop.f32.mrb[0].mxu0
    %1922 = vmatprep.mubr.f32.mxu0 0.0
    %1923 = vmatmul.mubr.f32.gmra.mrb[0].mxu0 %v1667
    %v1924 = vpop.f32.mrb[0].mxu0
    %v1925 = vadd.f32 %v1726, %v1924
    %v1926 = vpop.f32.mrb[0].mxu0
    %1927 = vmatprep.mubr.f32.mxu0 0.0
    %1928 = vmatmul.mubr.f32.gmra.mrb[0].mxu0 %v1668
    %v1929 = vpop.f32.mrb[0].mxu0
    %v1930 = vadd.f32 %v1726, %v1929
    %v1931 = vpop.f32.mrb[0].mxu0
    %1932 = vmatprep.mubr.f32.mxu0 0.0
    %1933 = vmatmul.mubr.f32.gmra.mrb[0].mxu0 %v1669
    %v1934 = vpop.f32.mrb[0].mxu0
    %v1935 = vadd.f32 %v1726, %v1934
    %v1936 = vpop.f32.mrb[0].mxu0
    %1937 = vmatprep.mubr.f32.mxu0 0.0
    %1938 = vmatmul.mubr.f32.gmra.mrb[0].mxu0 %v1670
    %v1939 = vpop.f32.mrb[0].mxu0
    %v1940 = vadd.f32 %v1726, %v1939
    %v1941 = vpop.f32.mrb[0].mxu0
    %1942 = vmatprep.mubr.f32.mxu0 0.0
    %1943 = vmatmul.mubr.f32.gmra.mrb[0].mxu0 %v1671
    %v1944 = vpop.f32.mrb[0].mxu0
    %v1945 = vadd.f32 %v1726, %v1944
    %v1946 = vpop.f32.mrb[0].mxu0
    %1947 = vmatprep.mubr.f32.mxu0 0.0
    %1948 = vmatmul.mubr.f32.gmra.mrb[0].mxu0 %v1672
    %v1949 = vpop.f32.mrb[0].mxu0
    %v1950 = vadd.f32 %v1726, %v1949
    %v1951 = vpop.f32.mrb[0].mxu0
    %1952 = vmatprep.mubr.f32.mxu0 0.0
    %1953 = vmatmul.mubr.f32.gmra.mrb[0].mxu0 %v1673
    %v1954 = vpop.f32.mrb[0].mxu0
    %v1955 = vadd.f32 %v1726, %v1954
    %v1956 = vpop.f32.mrb[0].mxu0
    %1957 = vmatprep.mubr.f32.mxu0 0.0
    %1958 = vmatmul.mubr.f32.gmra.mrb[0].mxu0 %v1674
    %v1959 = vpop.f32.mrb[0].mxu0
    %v1960 = vadd.f32 %v1726, %v1959
    %v1961 = vpop.f32.mrb[0].mxu0
    %1962 = vmatprep.mubr.f32.mxu0 0.0
    %1963 = vmatmul.mubr.f32.gmra.mrb[0].mxu0 %v1675
    %v1964 = vpop.f32.mrb[0].mxu0
    %v1965 = vadd.f32 %v1726, %v1964
    %v1966 = vpop.f32.mrb[0].mxu0
    %1967 = vmatprep.mubr.f32.mxu0 0.0
    %1968 = vmatmul.mubr.f32.gmra.mrb[0].mxu0 %v1676
    %v1969 = vpop.f32.mrb[0].mxu0
    %v1970 = vadd.f32 %v1726, %v1969
    %v1971 = vpop.f32.mrb[0].mxu0
    %1972 = vmatprep.mubr.f32.mxu0 0.0
    %1973 = vmatmul.mubr.f32.gmra.mrb[0].mxu0 %v1677
    %v1974 = vpop.f32.mrb[0].mxu0
    %v1975 = vadd.f32 %v1726, %v1974
    %v1976 = vpop.f32.mrb[0].mxu0
    %1977 = vmatprep.mubr.f32.mxu0 0.0
    %1978 = vmatmul.mubr.f32.gmra.mrb[0].mxu0 %v1678
    %v1979 = vpop.f32.mrb[0].mxu0
    %v1980 = vadd.f32 %v1726, %v1979
    %v1981 = vpop.f32.mrb[0].mxu0
    %1982 = vmatprep.mubr.f32.mxu0 0.0
    %1983 = vmatmul.mubr.f32.gmra.mrb[0].mxu0 %v1679
    %v1984 = vpop.f32.mrb[0].mxu0
    %v1985 = vadd.f32 %v1726, %v1984
    %v1986 = vpop.f32.mrb[0].mxu0
    %1987 = vmatprep.mubr.f32.mxu0 0.0
    %1988 = vmatmul.mubr.f32.gmra.mrb[0].mxu0 %v1680
    %v1989 = vpop.f32.mrb[0].mxu0
    %v1990 = vadd.f32 %v1726, %v1989
    %v1991 = vpop.f32.mrb[0].mxu0
    %1992 = vmatprep.mubr.f32.mxu0 0.0
    %1993 = vmatmul.mubr.f32.gmra.mrb[0].mxu0 %v1681
    %v1994 = vpop.f32.mrb[0].mxu0
    %v1995 = vadd.f32 %v1726, %v1994
    %v1996 = vpop.f32.mrb[0].mxu0
    %1997 = vmatprep.mubr.f32.mxu0 0.0
    %1998 = vmatmul.mubr.f32.gmra.mrb[0].mxu0 %v1682
    %v1999 = vpop.f32.mrb[0].mxu0
    %v2000 = vadd.f32 %v1726, %v1999
    %v2001 = vpop.f32.mrb[0].mxu0
    %2002 = vmatprep.mubr.f32.mxu0 0.0
    %2003 = vmatmul.mubr.f32.gmra.mrb[0].mxu0 %v1683
    %v2004 = vpop.f32.mrb[0].mxu0
    %v2005 = vadd.f32 %v1726, %v2004
    %v2006 = vpop.f32.mrb[0].mxu0
    %2007 = vmatprep.mubr.f32.mxu0 0.0
    %2008 = vmatmul.mubr.f32.gmra.mrb[0].mxu0 %v1684
    %v2009 = vpop.f32.mrb[0].mxu0
    %v2010 = vadd.f32 %v1726, %v2009
    %v2011 = vpop.f32.mrb[0].mxu0
    %2012 = vmatprep.mubr.f32.mxu0 0.0
    %2013 = vmatmul.mubr.f32.gmra.mrb[0].mxu0 %v1685
    %v2014 = vpop.f32.mrb[0].mxu0
    %v2015 = vadd.f32 %v1726, %v2014
    %v2016 = vpop.f32.mrb[0].mxu0
    %2017 = vmatprep.mubr.f32.mxu0 0.0
    %2018 = vmatmul.mubr.f32.gmra.mrb[0].mxu0 %v1686
    %v2019 = vpop.f32.mrb[0].mxu0
    %v2020 = vadd.f32 %v1726, %v2019
    %v2021 = vpop.f32.mrb[0].mxu0
    %2022 = vmatprep.mubr.f32.mxu0 0.0
    %2023 = vmatmul.mubr.f32.gmra.mrb[0].mxu0 %v1687
    %v2024 = vpop.f32.mrb[0].mxu0
    %v2025 = vadd.f32 %v1726, %v2024
    %v2026 = vpop.f32.mrb[0].mxu0
    %2027 = vmatprep.mubr.f32.mxu0 0.0
    %2028 = vmatmul.mubr.f32.gmra.mrb[0].mxu0 %v1688
    %v2029 = vpop.f32.mrb[0].mxu0
    %v2030 = vadd.f32 %v1726, %v2029
    %v2031 = vpop.f32.mrb[0].mxu0
    %2032 = vmatprep.mubr.f32.mxu0 0.0
    %2033 = vmatmul.mubr.f32.gmra.mrb[0].mxu0 %v1689
    %v2034 = vpop.f32.mrb[0].mxu0
    %v2035 = vadd.f32 %v1726, %v2034
    %v2036 = vpop.f32.mrb[0].mxu0
    %2037 = vmatprep.mubr.f32.mxu0 0.0
    %2038 = vmatmul.mubr.f32.gmra.mrb[0].mxu0 %v1690
    %v2039 = vpop.f32.mrb[0].mxu0
    %v2040 = vadd.f32 %v1726, %v2039
    %v2041 = vpop.f32.mrb[0].mxu0
    %2042 = vmatprep.mubr.f32.mxu0 0.0
    %2043 = vmatmul.mubr.f32.gmra.mrb[0].mxu0 %v1691
    %v2044 = vpop.f32.mrb[0].mxu0
    %v2045 = vadd.f32 %v1726, %v2044
    %v2046 = vpop.f32.mrb[0].mxu0
    %2047 = vmatprep.mubr.f32.mxu0 0.0
    %2048 = vmatmul.mubr.f32.gmra.mrb[0].mxu0 %v1692
    %v2049 = vpop.f32.mrb[0].mxu0
    %v2050 = vadd.f32 %v1726, %v2049
    %v2051 = vpop.f32.mrb[0].mxu0
    %2052 = vmatprep.mubr.f32.mxu0 0.0
    %2053 = vmatmul.mubr.f32.gmra.mrb[0].mxu0 %v1693
    %v2054 = vpop.f32.mrb[0].mxu0
    %v2055 = vadd.f32 %v1726, %v2054
    %v2056 = vpop.f32.mrb[0].mxu0
    %2057 = vmatprep.mubr.f32.mxu0 0.0
    %2058 = vmatmul.mubr.f32.gmra.mrb[0].mxu0 %v1694
    %v2059 = vpop.f32.mrb[0].mxu0
    %v2060 = vadd.f32 %v1726, %v2059
    %v2061 = vpop.f32.mrb[0].mxu0
    %2062 = vmatprep.mubr.f32.mxu0 0.0
    %2063 = vmatmul.mubr.f32.gmra.mrb[0].mxu0 %v1695
    %v2064 = vpop.f32.mrb[0].mxu0
    %v2065 = vadd.f32 %v1726, %v2064
    %v2066 = vpop.f32.mrb[0].mxu0
    %2067 = vmatprep.mubr.f32.mxu0 0.0
    %2068 = vmatmul.mubr.f32.gmra.mrb[0].mxu0 %v1696
    %v2069 = vpop.f32.mrb[0].mxu0
    %v2070 = vadd.f32 %v1726, %v2069
    %v2071 = vpop.f32.mrb[0].mxu0
    %2072 = vmatprep.mubr.f32.mxu0 0.0
    %2073 = vmatmul.mubr.f32.gmra.mrb[0].mxu0 %v1697
    %v2074 = vpop.f32.mrb[0].mxu0
    %v2075 = vadd.f32 %v1726, %v2074
    %v2076 = vpop.f32.mrb[0].mxu0
    %2077 = vmatprep.mubr.f32.mxu0 0.0
    %2078 = vmatmul.mubr.f32.gmra.mrb[0].mxu0 %v1698
    %v2079 = vpop.f32.mrb[0].mxu0
    %v2080 = vadd.f32 %v1726, %v2079
    %v2081 = vpop.f32.mrb[0].mxu0
    %2082 = vmatprep.mubr.f32.mxu0 0.0
    %2083 = vmatmul.mubr.f32.gmra.mrb[0].mxu0 %v1699
    %v2084 = vpop.f32.mrb[0].mxu0
    %v2085 = vadd.f32 %v1726, %v2084
    %v2086 = vpop.f32.mrb[0].mxu0
    %2087 = vmatprep.mubr.f32.mxu0 0.0
    %2088 = vmatmul.mubr.f32.gmra.mrb[0].mxu0 %v1700
    %v2089 = vpop.f32.mrb[0].mxu0
    %v2090 = vadd.f32 %v1726, %v2089
    %v2091 = vpop.f32.mrb[0].mxu0
    %2092 = vmatprep.mubr.f32.mxu0 0.0
    %2093 = vmatmul.mubr.f32.gmra.mrb[0].mxu0 %v1701
    %v2094 = vpop.f32.mrb[0].mxu0
    %v2095 = vadd.f32 %v1726, %v2094
    %v2096 = vpop.f32.mrb[0].mxu0
    %2097 = vmatprep.mubr.f32.mxu0 0.0
    %2098 = vmatmul.mubr.f32.gmra.mrb[0].mxu0 %v1702
    %v2099 = vpop.f32.mrb[0].mxu0
    %v2100 = vadd.f32 %v1726, %v2099
    %v2101 = vpop.f32.mrb[0].mxu0
    %2102 = vmatprep.mubr.f32.mxu0 0.0
    %2103 = vmatmul.mubr.f32.gmra.mrb[0].mxu0 %v1703
    %v2104 = vpop.f32.mrb[0].mxu0
    %v2105 = vadd.f32 %v1726, %v2104
    %v2106 = vpop.f32.mrb[0].mxu0
    %2107 = vmatprep.mubr.f32.mxu0 0.0
    %2108 = vmatmul.mubr.f32.gmra.mrb[0].mxu0 %v1704
    %v2109 = vpop.f32.mrb[0].mxu0
    %v2110 = vadd.f32 %v1726, %v2109
    %v2111 = vpop.f32.mrb[0].mxu0
    %2112 = vdwg.mxu0
    %v2113 = vmax.f32 %v1795, 0.0
    %v2114 = vmax.f32 %v1800, 0.0
    %v2115 = vmax.f32 %v1805, 0.0
    %v2116 = vmax.f32 %v1810, 0.0
    %v2117 = vmax.f32 %v1815, 0.0
    %v2118 = vmax.f32 %v1820, 0.0
    %v2119 = vmax.f32 %v1825, 0.0
    %v2120 = vmax.f32 %v1830, 0.0
    %v2121 = vmax.f32 %v1835, 0.0
    %v2122 = vmax.f32 %v1840, 0.0
    %v2123 = vmax.f32 %v1845, 0.0
    %v2124 = vmax.f32 %v1850, 0.0
    %v2125 = vmax.f32 %v1855, 0.0
    %v2126 = vmax.f32 %v1860, 0.0
    %v2127 = vmax.f32 %v1865, 0.0
    %v2128 = vmax.f32 %v1870, 0.0
    %v2129 = vmax.f32 %v1875, 0.0
    %v2130 = vmax.f32 %v1880, 0.0
    %v2131 = vmax.f32 %v1885, 0.0
    %v2132 = vmax.f32 %v1890, 0.0
    %v2133 = vmax.f32 %v1895, 0.0
    %v2134 = vmax.f32 %v1900, 0.0
    %v2135 = vmax.f32 %v1905, 0.0
    %v2136 = vmax.f32 %v1910, 0.0
    %v2137 = vmax.f32 %v1915, 0.0
    %v2138 = vmax.f32 %v1920, 0.0
    %v2139 = vmax.f32 %v1925, 0.0
    %v2140 = vmax.f32 %v1930, 0.0
    %v2141 = vmax.f32 %v1935, 0.0
    %v2142 = vmax.f32 %v1940, 0.0
    %v2143 = vmax.f32 %v1945, 0.0
    %v2144 = vmax.f32 %v1950, 0.0
    %v2145 = vmax.f32 %v1955, 0.0
    %v2146 = vmax.f32 %v1960, 0.0
    %v2147 = vmax.f32 %v1965, 0.0
    %v2148 = vmax.f32 %v1970, 0.0
    %v2149 = vmax.f32 %v1975, 0.0
    %v2150 = vmax.f32 %v1980, 0.0
    %v2151 = vmax.f32 %v1985, 0.0
    %v2152 = vmax.f32 %v1990, 0.0
    %v2153 = vmax.f32 %v1995, 0.0
    %v2154 = vmax.f32 %v2000, 0.0
    %v2155 = vmax.f32 %v2005, 0.0
    %v2156 = vmax.f32 %v2010, 0.0
    %v2157 = vmax.f32 %v2015, 0.0
    %v2158 = vmax.f32 %v2020, 0.0
    %v2159 = vmax.f32 %v2025, 0.0
    %v2160 = vmax.f32 %v2030, 0.0
    %v2161 = vmax.f32 %v2035, 0.0
    %v2162 = vmax.f32 %v2040, 0.0
    %v2163 = vmax.f32 %v2045, 0.0
    %v2164 = vmax.f32 %v2050, 0.0
    %v2165 = vmax.f32 %v2055, 0.0
    %v2166 = vmax.f32 %v2060, 0.0
    %v2167 = vmax.f32 %v2065, 0.0
    %v2168 = vmax.f32 %v2070, 0.0
    %v2169 = vmax.f32 %v2075, 0.0
    %v2170 = vmax.f32 %v2080, 0.0
    %v2171 = vmax.f32 %v2085, 0.0
    %v2172 = vmax.f32 %v2090, 0.0
    %v2173 = vmax.f32 %v2095, 0.0
    %v2174 = vmax.f32 %v2100, 0.0
    %v2175 = vmax.f32 %v2105, 0.0
    %v2176 = vmax.f32 %v2110, 0.0
    %v2177 = vlaneseq
    %v2178 = vshrl.u32 %v2177, 7
    %v2179 = vlaneseq
    %v2180 = vand.u32 %v2179, 127
    %v2181 = vmul.u32 %v2178, 32
    %vm2182 = vcmp.ge.s32.totalorder %v2180, %v2181
    %v2183 = vadd.s32 %v2178, 1
    %v2184 = vmul.u32 %v2183, 32
    %vm2185 = vcmp.lt.s32.totalorder %v2180, %v2184
    %vm2186 = vmand %vm2182, %vm2185
    %vm2187 = vcmp.lt.s32.totalorder %v2178, 3
    %vm2188 = vmand %vm2186, %vm2187
    %v2189 = vsel %vm2188, 1.0, 0.0
    %2254 = vrot.lane.b32.xlu0 %v1514, 32
    %v2255 = vpop.permute.xlu0 %2254
    %2256 = vrot.lane.b32.xlu0 %v1516, 32
    %v2257 = vpop.permute.xlu0 %2256
    %2258 = vrot.lane.b32.xlu0 %v1518, 32
    %v2259 = vpop.permute.xlu0 %2258
    %2260 = vrot.lane.b32.xlu0 %v1520, 32
    %v2261 = vpop.permute.xlu0 %2260
    %2262 = vrot.lane.b32.xlu0 %v1522, 32
    %v2263 = vpop.permute.xlu0 %2262
    %2264 = vrot.lane.b32.xlu0 %v1524, 32
    %v2265 = vpop.permute.xlu0 %2264
    %2266 = vrot.lane.b32.xlu0 %v1526, 32
    %v2267 = vpop.permute.xlu0 %2266
    %2268 = vrot.lane.b32.xlu0 %v1528, 32
    %v2269 = vpop.permute.xlu0 %2268
    %2270 = vrot.lane.b32.xlu0 %v1530, 32
    %v2271 = vpop.permute.xlu0 %2270
    %2272 = vrot.lane.b32.xlu0 %v1532, 32
    %v2273 = vpop.permute.xlu0 %2272
    %2274 = vrot.lane.b32.xlu0 %v1534, 32
    %v2275 = vpop.permute.xlu0 %2274
    %2276 = vrot.lane.b32.xlu0 %v1536, 32
    %v2277 = vpop.permute.xlu0 %2276
    %2278 = vrot.lane.b32.xlu0 %v1538, 32
    %v2279 = vpop.permute.xlu0 %2278
    %2280 = vrot.lane.b32.xlu0 %v1540, 32
    %v2281 = vpop.permute.xlu0 %2280
    %2282 = vrot.lane.b32.xlu0 %v1542, 32
    %v2283 = vpop.permute.xlu0 %2282
    %2284 = vrot.lane.b32.xlu0 %v1544, 32
    %v2285 = vpop.permute.xlu0 %2284
    %2286 = vrot.lane.b32.xlu0 %v1546, 32
    %v2287 = vpop.permute.xlu0 %2286
    %2288 = vrot.lane.b32.xlu0 %v1548, 32
    %v2289 = vpop.permute.xlu0 %2288
    %2290 = vrot.lane.b32.xlu0 %v1550, 32
    %v2291 = vpop.permute.xlu0 %2290
    %2292 = vrot.lane.b32.xlu0 %v1552, 32
    %v2293 = vpop.permute.xlu0 %2292
    %2294 = vrot.lane.b32.xlu0 %v1554, 32
    %v2295 = vpop.permute.xlu0 %2294
    %2296 = vrot.lane.b32.xlu0 %v1556, 32
    %v2297 = vpop.permute.xlu0 %2296
    %2298 = vrot.lane.b32.xlu0 %v1558, 32
    %v2299 = vpop.permute.xlu0 %2298
    %2300 = vrot.lane.b32.xlu0 %v1560, 32
    %v2301 = vpop.permute.xlu0 %2300
    %2302 = vrot.lane.b32.xlu0 %v1562, 32
    %v2303 = vpop.permute.xlu0 %2302
    %2304 = vrot.lane.b32.xlu0 %v1564, 32
    %v2305 = vpop.permute.xlu0 %2304
    %2306 = vrot.lane.b32.xlu0 %v1566, 32
    %v2307 = vpop.permute.xlu0 %2306
    %2308 = vrot.lane.b32.xlu0 %v1568, 32
    %v2309 = vpop.permute.xlu0 %2308
    %2310 = vrot.lane.b32.xlu0 %v1570, 32
    %v2311 = vpop.permute.xlu0 %2310
    %2312 = vrot.lane.b32.xlu0 %v1572, 32
    %v2313 = vpop.permute.xlu0 %2312
    %2314 = vrot.lane.b32.xlu0 %v1574, 32
    %v2315 = vpop.permute.xlu0 %2314
    %2316 = vrot.lane.b32.xlu0 %v1576, 32
    %v2317 = vpop.permute.xlu0 %2316
    %2318 = vrot.lane.b32.xlu0 %v1578, 32
    %v2319 = vpop.permute.xlu0 %2318
    %2320 = vrot.lane.b32.xlu0 %v1580, 32
    %v2321 = vpop.permute.xlu0 %2320
    %2322 = vrot.lane.b32.xlu0 %v1582, 32
    %v2323 = vpop.permute.xlu0 %2322
    %2324 = vrot.lane.b32.xlu0 %v1584, 32
    %v2325 = vpop.permute.xlu0 %2324
    %2326 = vrot.lane.b32.xlu0 %v1586, 32
    %v2327 = vpop.permute.xlu0 %2326
    %2328 = vrot.lane.b32.xlu0 %v1588, 32
    %v2329 = vpop.permute.xlu0 %2328
    %2330 = vrot.lane.b32.xlu0 %v1590, 32
    %v2331 = vpop.permute.xlu0 %2330
    %2332 = vrot.lane.b32.xlu0 %v1592, 32
    %v2333 = vpop.permute.xlu0 %2332
    %2334 = vrot.lane.b32.xlu0 %v1594, 32
    %v2335 = vpop.permute.xlu0 %2334
    %2336 = vrot.lane.b32.xlu0 %v1596, 32
    %v2337 = vpop.permute.xlu0 %2336
    %2338 = vrot.lane.b32.xlu0 %v1598, 32
    %v2339 = vpop.permute.xlu0 %2338
    %2340 = vrot.lane.b32.xlu0 %v1600, 32
    %v2341 = vpop.permute.xlu0 %2340
    %2342 = vrot.lane.b32.xlu0 %v1602, 32
    %v2343 = vpop.permute.xlu0 %2342
    %2344 = vrot.lane.b32.xlu0 %v1604, 32
    %v2345 = vpop.permute.xlu0 %2344
    %2346 = vrot.lane.b32.xlu0 %v1606, 32
    %v2347 = vpop.permute.xlu0 %2346
    %2348 = vrot.lane.b32.xlu0 %v1608, 32
    %v2349 = vpop.permute.xlu0 %2348
    %2350 = vrot.lane.b32.xlu0 %v1610, 32
    %v2351 = vpop.permute.xlu0 %2350
    %2352 = vrot.lane.b32.xlu0 %v1612, 32
    %v2353 = vpop.permute.xlu0 %2352
    %2354 = vrot.lane.b32.xlu0 %v1614, 32
    %v2355 = vpop.permute.xlu0 %2354
    %2356 = vrot.lane.b32.xlu0 %v1616, 32
    %v2357 = vpop.permute.xlu0 %2356
    %2358 = vrot.lane.b32.xlu0 %v1618, 32
    %v2359 = vpop.permute.xlu0 %2358
    %2360 = vrot.lane.b32.xlu0 %v1620, 32
    %v2361 = vpop.permute.xlu0 %2360
    %2362 = vrot.lane.b32.xlu0 %v1622, 32
    %v2363 = vpop.permute.xlu0 %2362
    %2364 = vrot.lane.b32.xlu0 %v1624, 32
    %v2365 = vpop.permute.xlu0 %2364
    %2366 = vrot.lane.b32.xlu0 %v1626, 32
    %v2367 = vpop.permute.xlu0 %2366
    %2368 = vrot.lane.b32.xlu0 %v1628, 32
    %v2369 = vpop.permute.xlu0 %2368
    %2370 = vrot.lane.b32.xlu0 %v1630, 32
    %v2371 = vpop.permute.xlu0 %2370
    %2372 = vrot.lane.b32.xlu0 %v1632, 32
    %v2373 = vpop.permute.xlu0 %2372
    %2374 = vrot.lane.b32.xlu0 %v1634, 32
    %v2375 = vpop.permute.xlu0 %2374
    %2376 = vrot.lane.b32.xlu0 %v1636, 32
    %v2377 = vpop.permute.xlu0 %2376
    %2378 = vrot.lane.b32.xlu0 %v1638, 32
    %v2379 = vpop.permute.xlu0 %2378
    %2380 = vrot.lane.b32.xlu0 %v1640, 32
    %v2381 = vpop.permute.xlu0 %2380
    %v2382 = vsel %vm1320, %v2255, 0
    %v2384 = vsel %vm1320, %v2257, 0
    %v2386 = vsel %vm1320, %v2259, 0
    %v2388 = vsel %vm1320, %v2261, 0
    %v2390 = vsel %vm1320, %v2263, 0
    %v2392 = vsel %vm1320, %v2265, 0
    %v2394 = vsel %vm1320, %v2267, 0
    %v2396 = vsel %vm1320, %v2269, 0
    %v2398 = vsel %vm1320, %v2271, 0
    %v2400 = vsel %vm1320, %v2273, 0
    %v2402 = vsel %vm1320, %v2275, 0
    %v2404 = vsel %vm1320, %v2277, 0
    %v2406 = vsel %vm1320, %v2279, 0
    %v2408 = vsel %vm1320, %v2281, 0
    %v2410 = vsel %vm1320, %v2283, 0
    %v2412 = vsel %vm1320, %v2285, 0
    %v2414 = vsel %vm1320, %v2287, 0
    %v2416 = vsel %vm1320, %v2289, 0
    %v2418 = vsel %vm1320, %v2291, 0
    %v2420 = vsel %vm1320, %v2293, 0
    %v2422 = vsel %vm1320, %v2295, 0
    %v2424 = vsel %vm1320, %v2297, 0
    %v2426 = vsel %vm1320, %v2299, 0
    %v2428 = vsel %vm1320, %v2301, 0
    %v2430 = vsel %vm1320, %v2303, 0
    %v2432 = vsel %vm1320, %v2305, 0
    %v2434 = vsel %vm1320, %v2307, 0
    %v2436 = vsel %vm1320, %v2309, 0
    %v2438 = vsel %vm1320, %v2311, 0
    %v2440 = vsel %vm1320, %v2313, 0
    %v2442 = vsel %vm1320, %v2315, 0
    %v2444 = vsel %vm1320, %v2317, 0
    %v2446 = vsel %vm1320, %v2319, 0
    %v2448 = vsel %vm1320, %v2321, 0
    %v2450 = vsel %vm1320, %v2323, 0
    %v2452 = vsel %vm1320, %v2325, 0
    %v2454 = vsel %vm1320, %v2327, 0
    %v2456 = vsel %vm1320, %v2329, 0
    %v2458 = vsel %vm1320, %v2331, 0
    %v2460 = vsel %vm1320, %v2333, 0
    %v2462 = vsel %vm1320, %v2335, 0
    %v2464 = vsel %vm1320, %v2337, 0
    %v2466 = vsel %vm1320, %v2339, 0
    %v2468 = vsel %vm1320, %v2341, 0
    %v2470 = vsel %vm1320, %v2343, 0
    %v2472 = vsel %vm1320, %v2345, 0
    %v2474 = vsel %vm1320, %v2347, 0
    %v2476 = vsel %vm1320, %v2349, 0
    %v2478 = vsel %vm1320, %v2351, 0
    %v2480 = vsel %vm1320, %v2353, 0
    %v2482 = vsel %vm1320, %v2355, 0
    %v2484 = vsel %vm1320, %v2357, 0
    %v2486 = vsel %vm1320, %v2359, 0
    %v2488 = vsel %vm1320, %v2361, 0
    %v2490 = vsel %vm1320, %v2363, 0
    %v2492 = vsel %vm1320, %v2365, 0
    %v2494 = vsel %vm1320, %v2367, 0
    %v2496 = vsel %vm1320, %v2369, 0
    %v2498 = vsel %vm1320, %v2371, 0
    %v2500 = vsel %vm1320, %v2373, 0
    %v2502 = vsel %vm1320, %v2375, 0
    %v2504 = vsel %vm1320, %v2377, 0
    %v2506 = vsel %vm1320, %v2379, 0
    %v2508 = vsel %vm1320, %v2381, 0
    %2510 = vmatprep.subr.mxu0 0.0
    %2511 = vmatpush1.msra.mxu0 %v2189
    %2512 = vmatprep.subr.mxu0 0.0
    %2513 = vmatpush1.msra.mxu0 0.0
    %2514 = vmatprep.subr.mxu0 0.0
    %2515 = vmatpush1.msra.mxu0 0.0
    %2516 = vmatprep.subr.mxu0 0.0
    %2517 = vmatpush1.msra.mxu0 0.0
    %2518 = vmatprep.subr.mxu0 0.0
    %2519 = vmatpush1.msra.mxu0 0.0
    %2520 = vmatprep.subr.mxu0 0.0
    %2521 = vmatpush1.msra.mxu0 0.0
    %2522 = vmatprep.subr.mxu0 0.0
    %2523 = vmatpush1.msra.mxu0 0.0
    %2524 = vmatprep.subr.mxu0 0.0
    %2525 = vmatpush1.msra.mxu0 0.0
    %2526 = vmatprep.subr.mxu0 0.0
    %2527 = vmatpush1.msra.mxu0 0.0
    %2528 = vmatprep.subr.mxu0 0.0
    %2529 = vmatpush1.msra.mxu0 0.0
    %2530 = vmatprep.subr.mxu0 0.0
    %2531 = vmatpush1.msra.mxu0 0.0
    %2532 = vmatprep.subr.mxu0 0.0
    %2533 = vmatpush1.msra.mxu0 0.0
    %2534 = vmatprep.subr.mxu0 0.0
    %2535 = vmatpush1.msra.mxu0 0.0
    %2536 = vmatprep.subr.mxu0 0.0
    %2537 = vmatpush1.msra.mxu0 0.0
    %2538 = vmatprep.subr.mxu0 0.0
    %2539 = vmatpush1.msra.mxu0 0.0
    %2540 = vmatprep.subr.mxu0 0.0
    %2541 = vmatpush1.msra.mxu0 0.0
    %2542 = vmatprep.subr.mxu0 0.0
    %2543 = vmatpush1.msra.mxu0 0.0
    %2544 = vmatprep.subr.mxu0 0.0
    %2545 = vmatpush1.msra.mxu0 0.0
    %2546 = vmatprep.subr.mxu0 0.0
    %2547 = vmatpush1.msra.mxu0 0.0
    %2548 = vmatprep.subr.mxu0 0.0
    %2549 = vmatpush1.msra.mxu0 0.0
    %2550 = vmatprep.subr.mxu0 0.0
    %2551 = vmatpush1.msra.mxu0 0.0
    %2552 = vmatprep.subr.mxu0 0.0
    %2553 = vmatpush1.msra.mxu0 0.0
    %2554 = vmatprep.subr.mxu0 0.0
    %2555 = vmatpush1.msra.mxu0 0.0
    %2556 = vmatprep.subr.mxu0 0.0
    %2557 = vmatpush1.msra.mxu0 0.0
    %2558 = vmatprep.subr.mxu0 0.0
    %2559 = vmatpush1.msra.mxu0 0.0
    %2560 = vmatprep.subr.mxu0 0.0
    %2561 = vmatpush1.msra.mxu0 0.0
    %2562 = vmatprep.subr.mxu0 0.0
    %2563 = vmatpush1.msra.mxu0 0.0
    %2564 = vmatprep.subr.mxu0 0.0
    %2565 = vmatpush1.msra.mxu0 0.0
    %2566 = vmatprep.subr.mxu0 0.0
    %2567 = vmatpush1.msra.mxu0 0.0
    %2568 = vmatprep.subr.mxu0 0.0
    %2569 = vmatpush1.msra.mxu0 0.0
    %2570 = vmatprep.subr.mxu0 0.0
    %2571 = vmatpush1.msra.mxu0 0.0
    %2572 = vmatprep.subr.mxu0 0.0
    %2573 = vmatpush1.msra.mxu0 0.0
    %2574 = vmatprep.mubr.f32.mxu0 0.0
    %2575 = vmatmul.mubr.f32.gmra.mrb[0].mxu0 %v2382
    %v2576 = vpop.f32.mrb[0].mxu0
    %v2577 = vadd.f32 0.0, %v2576
    %v2578 = vpop.f32.mrb[0].mxu0
    %2579 = vmatprep.mubr.f32.mxu0 0.0
    %2580 = vmatmul.mubr.f32.gmra.mrb[0].mxu0 %v2384
    %v2581 = vpop.f32.mrb[0].mxu0
    %v2582 = vadd.f32 0.0, %v2581
    %v2583 = vpop.f32.mrb[0].mxu0
    %2584 = vmatprep.mubr.f32.mxu0 0.0
    %2585 = vmatmul.mubr.f32.gmra.mrb[0].mxu0 %v2386
    %v2586 = vpop.f32.mrb[0].mxu0
    %v2587 = vadd.f32 0.0, %v2586
    %v2588 = vpop.f32.mrb[0].mxu0
    %2589 = vmatprep.mubr.f32.mxu0 0.0
    %2590 = vmatmul.mubr.f32.gmra.mrb[0].mxu0 %v2388
    %v2591 = vpop.f32.mrb[0].mxu0
    %v2592 = vadd.f32 0.0, %v2591
    %v2593 = vpop.f32.mrb[0].mxu0
    %2594 = vmatprep.mubr.f32.mxu0 0.0
    %2595 = vmatmul.mubr.f32.gmra.mrb[0].mxu0 %v2390
    %v2596 = vpop.f32.mrb[0].mxu0
    %v2597 = vadd.f32 0.0, %v2596
    %v2598 = vpop.f32.mrb[0].mxu0
    %2599 = vmatprep.mubr.f32.mxu0 0.0
    %2600 = vmatmul.mubr.f32.gmra.mrb[0].mxu0 %v2392
    %v2601 = vpop.f32.mrb[0].mxu0
    %v2602 = vadd.f32 0.0, %v2601
    %v2603 = vpop.f32.mrb[0].mxu0
    %2604 = vmatprep.mubr.f32.mxu0 0.0
    %2605 = vmatmul.mubr.f32.gmra.mrb[0].mxu0 %v2394
    %v2606 = vpop.f32.mrb[0].mxu0
    %v2607 = vadd.f32 0.0, %v2606
    %v2608 = vpop.f32.mrb[0].mxu0
    %2609 = vmatprep.mubr.f32.mxu0 0.0
    %2610 = vmatmul.mubr.f32.gmra.mrb[0].mxu0 %v2396
    %v2611 = vpop.f32.mrb[0].mxu0
    %v2612 = vadd.f32 0.0, %v2611
    %v2613 = vpop.f32.mrb[0].mxu0
    %2614 = vmatprep.mubr.f32.mxu0 0.0
    %2615 = vmatmul.mubr.f32.gmra.mrb[0].mxu0 %v2398
    %v2616 = vpop.f32.mrb[0].mxu0
    %v2617 = vadd.f32 0.0, %v2616
    %v2618 = vpop.f32.mrb[0].mxu0
    %2619 = vmatprep.mubr.f32.mxu0 0.0
    %2620 = vmatmul.mubr.f32.gmra.mrb[0].mxu0 %v2400
    %v2621 = vpop.f32.mrb[0].mxu0
    %v2622 = vadd.f32 0.0, %v2621
    %v2623 = vpop.f32.mrb[0].mxu0
    %2624 = vmatprep.mubr.f32.mxu0 0.0
    %2625 = vmatmul.mubr.f32.gmra.mrb[0].mxu0 %v2402
    %v2626 = vpop.f32.mrb[0].mxu0
    %v2627 = vadd.f32 0.0, %v2626
    %v2628 = vpop.f32.mrb[0].mxu0
    %2629 = vmatprep.mubr.f32.mxu0 0.0
    %2630 = vmatmul.mubr.f32.gmra.mrb[0].mxu0 %v2404
    %v2631 = vpop.f32.mrb[0].mxu0
    %v2632 = vadd.f32 0.0, %v2631
    %v2633 = vpop.f32.mrb[0].mxu0
    %2634 = vmatprep.mubr.f32.mxu0 0.0
    %2635 = vmatmul.mubr.f32.gmra.mrb[0].mxu0 %v2406
    %v2636 = vpop.f32.mrb[0].mxu0
    %v2637 = vadd.f32 0.0, %v2636
    %v2638 = vpop.f32.mrb[0].mxu0
    %2639 = vmatprep.mubr.f32.mxu0 0.0
    %2640 = vmatmul.mubr.f32.gmra.mrb[0].mxu0 %v2408
    %v2641 = vpop.f32.mrb[0].mxu0
    %v2642 = vadd.f32 0.0, %v2641
    %v2643 = vpop.f32.mrb[0].mxu0
    %2644 = vmatprep.mubr.f32.mxu0 0.0
    %2645 = vmatmul.mubr.f32.gmra.mrb[0].mxu0 %v2410
    %v2646 = vpop.f32.mrb[0].mxu0
    %v2647 = vadd.f32 0.0, %v2646
    %v2648 = vpop.f32.mrb[0].mxu0
    %2649 = vmatprep.mubr.f32.mxu0 0.0
    %2650 = vmatmul.mubr.f32.gmra.mrb[0].mxu0 %v2412
    %v2651 = vpop.f32.mrb[0].mxu0
    %v2652 = vadd.f32 0.0, %v2651
    %v2653 = vpop.f32.mrb[0].mxu0
    %2654 = vmatprep.mubr.f32.mxu0 0.0
    %2655 = vmatmul.mubr.f32.gmra.mrb[0].mxu0 %v2414
    %v2656 = vpop.f32.mrb[0].mxu0
    %v2657 = vadd.f32 0.0, %v2656
    %v2658 = vpop.f32.mrb[0].mxu0
    %2659 = vmatprep.mubr.f32.mxu0 0.0
    %2660 = vmatmul.mubr.f32.gmra.mrb[0].mxu0 %v2416
    %v2661 = vpop.f32.mrb[0].mxu0
    %v2662 = vadd.f32 0.0, %v2661
    %v2663 = vpop.f32.mrb[0].mxu0
    %2664 = vmatprep.mubr.f32.mxu0 0.0
    %2665 = vmatmul.mubr.f32.gmra.mrb[0].mxu0 %v2418
    %v2666 = vpop.f32.mrb[0].mxu0
    %v2667 = vadd.f32 0.0, %v2666
    %v2668 = vpop.f32.mrb[0].mxu0
    %2669 = vmatprep.mubr.f32.mxu0 0.0
    %2670 = vmatmul.mubr.f32.gmra.mrb[0].mxu0 %v2420
    %v2671 = vpop.f32.mrb[0].mxu0
    %v2672 = vadd.f32 0.0, %v2671
    %v2673 = vpop.f32.mrb[0].mxu0
    %2674 = vmatprep.mubr.f32.mxu0 0.0
    %2675 = vmatmul.mubr.f32.gmra.mrb[0].mxu0 %v2422
    %v2676 = vpop.f32.mrb[0].mxu0
    %v2677 = vadd.f32 0.0, %v2676
    %v2678 = vpop.f32.mrb[0].mxu0
    %2679 = vmatprep.mubr.f32.mxu0 0.0
    %2680 = vmatmul.mubr.f32.gmra.mrb[0].mxu0 %v2424
    %v2681 = vpop.f32.mrb[0].mxu0
    %v2682 = vadd.f32 0.0, %v2681
    %v2683 = vpop.f32.mrb[0].mxu0
    %2684 = vmatprep.mubr.f32.mxu0 0.0
    %2685 = vmatmul.mubr.f32.gmra.mrb[0].mxu0 %v2426
    %v2686 = vpop.f32.mrb[0].mxu0
    %v2687 = vadd.f32 0.0, %v2686
    %v2688 = vpop.f32.mrb[0].mxu0
    %2689 = vmatprep.mubr.f32.mxu0 0.0
    %2690 = vmatmul.mubr.f32.gmra.mrb[0].mxu0 %v2428
    %v2691 = vpop.f32.mrb[0].mxu0
    %v2692 = vadd.f32 0.0, %v2691
    %v2693 = vpop.f32.mrb[0].mxu0
    %2694 = vmatprep.mubr.f32.mxu0 0.0
    %2695 = vmatmul.mubr.f32.gmra.mrb[0].mxu0 %v2430
    %v2696 = vpop.f32.mrb[0].mxu0
    %v2697 = vadd.f32 0.0, %v2696
    %v2698 = vpop.f32.mrb[0].mxu0
    %2699 = vmatprep.mubr.f32.mxu0 0.0
    %2700 = vmatmul.mubr.f32.gmra.mrb[0].mxu0 %v2432
    %v2701 = vpop.f32.mrb[0].mxu0
    %v2702 = vadd.f32 0.0, %v2701
    %v2703 = vpop.f32.mrb[0].mxu0
    %2704 = vmatprep.mubr.f32.mxu0 0.0
    %2705 = vmatmul.mubr.f32.gmra.mrb[0].mxu0 %v2434
    %v2706 = vpop.f32.mrb[0].mxu0
    %v2707 = vadd.f32 0.0, %v2706
    %v2708 = vpop.f32.mrb[0].mxu0
    %2709 = vmatprep.mubr.f32.mxu0 0.0
    %2710 = vmatmul.mubr.f32.gmra.mrb[0].mxu0 %v2436
    %v2711 = vpop.f32.mrb[0].mxu0
    %v2712 = vadd.f32 0.0, %v2711
    %v2713 = vpop.f32.mrb[0].mxu0
    %2714 = vmatprep.mubr.f32.mxu0 0.0
    %2715 = vmatmul.mubr.f32.gmra.mrb[0].mxu0 %v2438
    %v2716 = vpop.f32.mrb[0].mxu0
    %v2717 = vadd.f32 0.0, %v2716
    %v2718 = vpop.f32.mrb[0].mxu0
    %2719 = vmatprep.mubr.f32.mxu0 0.0
    %2720 = vmatmul.mubr.f32.gmra.mrb[0].mxu0 %v2440
    %v2721 = vpop.f32.mrb[0].mxu0
    %v2722 = vadd.f32 0.0, %v2721
    %v2723 = vpop.f32.mrb[0].mxu0
    %2724 = vmatprep.mubr.f32.mxu0 0.0
    %2725 = vmatmul.mubr.f32.gmra.mrb[0].mxu0 %v2442
    %v2726 = vpop.f32.mrb[0].mxu0
    %v2727 = vadd.f32 0.0, %v2726
    %v2728 = vpop.f32.mrb[0].mxu0
    %2729 = vmatprep.mubr.f32.mxu0 0.0
    %2730 = vmatmul.mubr.f32.gmra.mrb[0].mxu0 %v2444
    %v2731 = vpop.f32.mrb[0].mxu0
    %v2732 = vadd.f32 0.0, %v2731
    %v2733 = vpop.f32.mrb[0].mxu0
    %2734 = vmatprep.mubr.f32.mxu0 0.0
    %2735 = vmatmul.mubr.f32.gmra.mrb[0].mxu0 %v2446
    %v2736 = vpop.f32.mrb[0].mxu0
    %v2737 = vadd.f32 0.0, %v2736
    %v2738 = vpop.f32.mrb[0].mxu0
    %2739 = vmatprep.mubr.f32.mxu0 0.0
    %2740 = vmatmul.mubr.f32.gmra.mrb[0].mxu0 %v2448
    %v2741 = vpop.f32.mrb[0].mxu0
    %v2742 = vadd.f32 0.0, %v2741
    %v2743 = vpop.f32.mrb[0].mxu0
    %2744 = vmatprep.mubr.f32.mxu0 0.0
    %2745 = vmatmul.mubr.f32.gmra.mrb[0].mxu0 %v2450
    %v2746 = vpop.f32.mrb[0].mxu0
    %v2747 = vadd.f32 0.0, %v2746
    %v2748 = vpop.f32.mrb[0].mxu0
    %2749 = vmatprep.mubr.f32.mxu0 0.0
    %2750 = vmatmul.mubr.f32.gmra.mrb[0].mxu0 %v2452
    %v2751 = vpop.f32.mrb[0].mxu0
    %v2752 = vadd.f32 0.0, %v2751
    %v2753 = vpop.f32.mrb[0].mxu0
    %2754 = vmatprep.mubr.f32.mxu0 0.0
    %2755 = vmatmul.mubr.f32.gmra.mrb[0].mxu0 %v2454
    %v2756 = vpop.f32.mrb[0].mxu0
    %v2757 = vadd.f32 0.0, %v2756
    %v2758 = vpop.f32.mrb[0].mxu0
    %2759 = vmatprep.mubr.f32.mxu0 0.0
    %2760 = vmatmul.mubr.f32.gmra.mrb[0].mxu0 %v2456
    %v2761 = vpop.f32.mrb[0].mxu0
    %v2762 = vadd.f32 0.0, %v2761
    %v2763 = vpop.f32.mrb[0].mxu0
    %2764 = vmatprep.mubr.f32.mxu0 0.0
    %2765 = vmatmul.mubr.f32.gmra.mrb[0].mxu0 %v2458
    %v2766 = vpop.f32.mrb[0].mxu0
    %v2767 = vadd.f32 0.0, %v2766
    %v2768 = vpop.f32.mrb[0].mxu0
    %2769 = vmatprep.mubr.f32.mxu0 0.0
    %2770 = vmatmul.mubr.f32.gmra.mrb[0].mxu0 %v2460
    %v2771 = vpop.f32.mrb[0].mxu0
    %v2772 = vadd.f32 0.0, %v2771
    %v2773 = vpop.f32.mrb[0].mxu0
    %2774 = vmatprep.mubr.f32.mxu0 0.0
    %2775 = vmatmul.mubr.f32.gmra.mrb[0].mxu0 %v2462
    %v2776 = vpop.f32.mrb[0].mxu0
    %v2777 = vadd.f32 0.0, %v2776
    %v2778 = vpop.f32.mrb[0].mxu0
    %2779 = vmatprep.mubr.f32.mxu0 0.0
    %2780 = vmatmul.mubr.f32.gmra.mrb[0].mxu0 %v2464
    %v2781 = vpop.f32.mrb[0].mxu0
    %v2782 = vadd.f32 0.0, %v2781
    %v2783 = vpop.f32.mrb[0].mxu0
    %2784 = vmatprep.mubr.f32.mxu0 0.0
    %2785 = vmatmul.mubr.f32.gmra.mrb[0].mxu0 %v2466
    %v2786 = vpop.f32.mrb[0].mxu0
    %v2787 = vadd.f32 0.0, %v2786
    %v2788 = vpop.f32.mrb[0].mxu0
    %2789 = vmatprep.mubr.f32.mxu0 0.0
    %2790 = vmatmul.mubr.f32.gmra.mrb[0].mxu0 %v2468
    %v2791 = vpop.f32.mrb[0].mxu0
    %v2792 = vadd.f32 0.0, %v2791
    %v2793 = vpop.f32.mrb[0].mxu0
    %2794 = vmatprep.mubr.f32.mxu0 0.0
    %2795 = vmatmul.mubr.f32.gmra.mrb[0].mxu0 %v2470
    %v2796 = vpop.f32.mrb[0].mxu0
    %v2797 = vadd.f32 0.0, %v2796
    %v2798 = vpop.f32.mrb[0].mxu0
    %2799 = vmatprep.mubr.f32.mxu0 0.0
    %2800 = vmatmul.mubr.f32.gmra.mrb[0].mxu0 %v2472
    %v2801 = vpop.f32.mrb[0].mxu0
    %v2802 = vadd.f32 0.0, %v2801
    %v2803 = vpop.f32.mrb[0].mxu0
    %2804 = vmatprep.mubr.f32.mxu0 0.0
    %2805 = vmatmul.mubr.f32.gmra.mrb[0].mxu0 %v2474
    %v2806 = vpop.f32.mrb[0].mxu0
    %v2807 = vadd.f32 0.0, %v2806
    %v2808 = vpop.f32.mrb[0].mxu0
    %2809 = vmatprep.mubr.f32.mxu0 0.0
    %2810 = vmatmul.mubr.f32.gmra.mrb[0].mxu0 %v2476
    %v2811 = vpop.f32.mrb[0].mxu0
    %v2812 = vadd.f32 0.0, %v2811
    %v2813 = vpop.f32.mrb[0].mxu0
    %2814 = vmatprep.mubr.f32.mxu0 0.0
    %2815 = vmatmul.mubr.f32.gmra.mrb[0].mxu0 %v2478
    %v2816 = vpop.f32.mrb[0].mxu0
    %v2817 = vadd.f32 0.0, %v2816
    %v2818 = vpop.f32.mrb[0].mxu0
    %2819 = vmatprep.mubr.f32.mxu0 0.0
    %2820 = vmatmul.mubr.f32.gmra.mrb[0].mxu0 %v2480
    %v2821 = vpop.f32.mrb[0].mxu0
    %v2822 = vadd.f32 0.0, %v2821
    %v2823 = vpop.f32.mrb[0].mxu0
    %2824 = vmatprep.mubr.f32.mxu0 0.0
    %2825 = vmatmul.mubr.f32.gmra.mrb[0].mxu0 %v2482
    %v2826 = vpop.f32.mrb[0].mxu0
    %v2827 = vadd.f32 0.0, %v2826
    %v2828 = vpop.f32.mrb[0].mxu0
    %2829 = vmatprep.mubr.f32.mxu0 0.0
    %2830 = vmatmul.mubr.f32.gmra.mrb[0].mxu0 %v2484
    %v2831 = vpop.f32.mrb[0].mxu0
    %v2832 = vadd.f32 0.0, %v2831
    %v2833 = vpop.f32.mrb[0].mxu0
    %2834 = vmatprep.mubr.f32.mxu0 0.0
    %2835 = vmatmul.mubr.f32.gmra.mrb[0].mxu0 %v2486
    %v2836 = vpop.f32.mrb[0].mxu0
    %v2837 = vadd.f32 0.0, %v2836
    %v2838 = vpop.f32.mrb[0].mxu0
    %2839 = vmatprep.mubr.f32.mxu0 0.0
    %2840 = vmatmul.mubr.f32.gmra.mrb[0].mxu0 %v2488
    %v2841 = vpop.f32.mrb[0].mxu0
    %v2842 = vadd.f32 0.0, %v2841
    %v2843 = vpop.f32.mrb[0].mxu0
    %2844 = vmatprep.mubr.f32.mxu0 0.0
    %2845 = vmatmul.mubr.f32.gmra.mrb[0].mxu0 %v2490
    %v2846 = vpop.f32.mrb[0].mxu0
    %v2847 = vadd.f32 0.0, %v2846
    %v2848 = vpop.f32.mrb[0].mxu0
    %2849 = vmatprep.mubr.f32.mxu0 0.0
    %2850 = vmatmul.mubr.f32.gmra.mrb[0].mxu0 %v2492
    %v2851 = vpop.f32.mrb[0].mxu0
    %v2852 = vadd.f32 0.0, %v2851
    %v2853 = vpop.f32.mrb[0].mxu0
    %2854 = vmatprep.mubr.f32.mxu0 0.0
    %2855 = vmatmul.mubr.f32.gmra.mrb[0].mxu0 %v2494
    %v2856 = vpop.f32.mrb[0].mxu0
    %v2857 = vadd.f32 0.0, %v2856
    %v2858 = vpop.f32.mrb[0].mxu0
    %2859 = vmatprep.mubr.f32.mxu0 0.0
    %2860 = vmatmul.mubr.f32.gmra.mrb[0].mxu0 %v2496
    %v2861 = vpop.f32.mrb[0].mxu0
    %v2862 = vadd.f32 0.0, %v2861
    %v2863 = vpop.f32.mrb[0].mxu0
    %2864 = vmatprep.mubr.f32.mxu0 0.0
    %2865 = vmatmul.mubr.f32.gmra.mrb[0].mxu0 %v2498
    %v2866 = vpop.f32.mrb[0].mxu0
    %v2867 = vadd.f32 0.0, %v2866
    %v2868 = vpop.f32.mrb[0].mxu0
    %2869 = vmatprep.mubr.f32.mxu0 0.0
    %2870 = vmatmul.mubr.f32.gmra.mrb[0].mxu0 %v2500
    %v2871 = vpop.f32.mrb[0].mxu0
    %v2872 = vadd.f32 0.0, %v2871
    %v2873 = vpop.f32.mrb[0].mxu0
    %2874 = vmatprep.mubr.f32.mxu0 0.0
    %2875 = vmatmul.mubr.f32.gmra.mrb[0].mxu0 %v2502
    %v2876 = vpop.f32.mrb[0].mxu0
    %v2877 = vadd.f32 0.0, %v2876
    %v2878 = vpop.f32.mrb[0].mxu0
    %2879 = vmatprep.mubr.f32.mxu0 0.0
    %2880 = vmatmul.mubr.f32.gmra.mrb[0].mxu0 %v2504
    %v2881 = vpop.f32.mrb[0].mxu0
    %v2882 = vadd.f32 0.0, %v2881
    %v2883 = vpop.f32.mrb[0].mxu0
    %2884 = vmatprep.mubr.f32.mxu0 0.0
    %2885 = vmatmul.mubr.f32.gmra.mrb[0].mxu0 %v2506
    %v2886 = vpop.f32.mrb[0].mxu0
    %v2887 = vadd.f32 0.0, %v2886
    %v2888 = vpop.f32.mrb[0].mxu0
    %2889 = vmatprep.mubr.f32.mxu0 0.0
    %2890 = vmatmul.mubr.f32.gmra.mrb[0].mxu0 %v2508
    %v2891 = vpop.f32.mrb[0].mxu0
    %v2892 = vadd.f32 0.0, %v2891
    %v2893 = vpop.f32.mrb[0].mxu0
    %2894 = vdwg.mxu0
    %v2895 = vmul.f32 %v2113, %v2577
    %v2896 = vmul.f32 %v2114, %v2582
    %v2897 = vmul.f32 %v2115, %v2587
    %v2898 = vmul.f32 %v2116, %v2592
    %v2899 = vmul.f32 %v2117, %v2597
    %v2900 = vmul.f32 %v2118, %v2602
    %v2901 = vmul.f32 %v2119, %v2607
    %v2902 = vmul.f32 %v2120, %v2612
    %v2903 = vmul.f32 %v2121, %v2617
    %v2904 = vmul.f32 %v2122, %v2622
    %v2905 = vmul.f32 %v2123, %v2627
    %v2906 = vmul.f32 %v2124, %v2632
    %v2907 = vmul.f32 %v2125, %v2637
    %v2908 = vmul.f32 %v2126, %v2642
    %v2909 = vmul.f32 %v2127, %v2647
    %v2910 = vmul.f32 %v2128, %v2652
    %v2911 = vmul.f32 %v2129, %v2657
    %v2912 = vmul.f32 %v2130, %v2662
    %v2913 = vmul.f32 %v2131, %v2667
    %v2914 = vmul.f32 %v2132, %v2672
    %v2915 = vmul.f32 %v2133, %v2677
    %v2916 = vmul.f32 %v2134, %v2682
    %v2917 = vmul.f32 %v2135, %v2687
    %v2918 = vmul.f32 %v2136, %v2692
    %v2919 = vmul.f32 %v2137, %v2697
    %v2920 = vmul.f32 %v2138, %v2702
    %v2921 = vmul.f32 %v2139, %v2707
    %v2922 = vmul.f32 %v2140, %v2712
    %v2923 = vmul.f32 %v2141, %v2717
    %v2924 = vmul.f32 %v2142, %v2722
    %v2925 = vmul.f32 %v2143, %v2727
    %v2926 = vmul.f32 %v2144, %v2732
    %v2927 = vmul.f32 %v2145, %v2737
    %v2928 = vmul.f32 %v2146, %v2742
    %v2929 = vmul.f32 %v2147, %v2747
    %v2930 = vmul.f32 %v2148, %v2752
    %v2931 = vmul.f32 %v2149, %v2757
    %v2932 = vmul.f32 %v2150, %v2762
    %v2933 = vmul.f32 %v2151, %v2767
    %v2934 = vmul.f32 %v2152, %v2772
    %v2935 = vmul.f32 %v2153, %v2777
    %v2936 = vmul.f32 %v2154, %v2782
    %v2937 = vmul.f32 %v2155, %v2787
    %v2938 = vmul.f32 %v2156, %v2792
    %v2939 = vmul.f32 %v2157, %v2797
    %v2940 = vmul.f32 %v2158, %v2802
    %v2941 = vmul.f32 %v2159, %v2807
    %v2942 = vmul.f32 %v2160, %v2812
    %v2943 = vmul.f32 %v2161, %v2817
    %v2944 = vmul.f32 %v2162, %v2822
    %v2945 = vmul.f32 %v2163, %v2827
    %v2946 = vmul.f32 %v2164, %v2832
    %v2947 = vmul.f32 %v2165, %v2837
    %v2948 = vmul.f32 %v2166, %v2842
    %v2949 = vmul.f32 %v2167, %v2847
    %v2950 = vmul.f32 %v2168, %v2852
    %v2951 = vmul.f32 %v2169, %v2857
    %v2952 = vmul.f32 %v2170, %v2862
    %v2953 = vmul.f32 %v2171, %v2867
    %v2954 = vmul.f32 %v2172, %v2872
    %v2955 = vmul.f32 %v2173, %v2877
    %v2956 = vmul.f32 %v2174, %v2882
    %v2957 = vmul.f32 %v2175, %v2887
    %v2958 = vmul.f32 %v2176, %v2892
    %v2959 = vadd.s32 %v2178, 8
    %v2960 = vadd.s32 %v2178, 16
    %v2961 = vadd.s32 %v2178, 24
    %v2962 = vadd.s32 %v2178, 32
    %v2963 = vadd.s32 %v2178, 40
    %v2964 = vadd.s32 %v2178, 48
    %v2965 = vadd.s32 %v2178, 56
    %v2966 = vadd.s32 %v2178, 64
    %v2967 = vadd.s32 %v2178, 72
    %v2968 = vadd.s32 %v2178, 80
    %v2969 = vadd.s32 %v2178, 88
    %v2970 = vadd.s32 %v2178, 96
    %v2971 = vadd.s32 %v2178, 104
    %v2972 = vadd.s32 %v2178, 112
    %v2973 = vadd.s32 %v2178, 120
    %vm2974 = vcmp.eq.s32.totalorder %v2178, %v2180
    %vm2975 = vcmp.eq.s32.totalorder %v2959, %v2180
    %vm2976 = vcmp.eq.s32.totalorder %v2960, %v2180
    %vm2977 = vcmp.eq.s32.totalorder %v2961, %v2180
    %vm2978 = vcmp.eq.s32.totalorder %v2962, %v2180
    %vm2979 = vcmp.eq.s32.totalorder %v2963, %v2180
    %vm2980 = vcmp.eq.s32.totalorder %v2964, %v2180
    %vm2981 = vcmp.eq.s32.totalorder %v2965, %v2180
    %vm2982 = vcmp.eq.s32.totalorder %v2966, %v2180
    %vm2983 = vcmp.eq.s32.totalorder %v2967, %v2180
    %vm2984 = vcmp.eq.s32.totalorder %v2968, %v2180
    %vm2985 = vcmp.eq.s32.totalorder %v2969, %v2180
    %vm2986 = vcmp.eq.s32.totalorder %v2970, %v2180
    %vm2987 = vcmp.eq.s32.totalorder %v2971, %v2180
    %vm2988 = vcmp.eq.s32.totalorder %v2972, %v2180
    %vm2989 = vcmp.eq.s32.totalorder %v2973, %v2180
    %v2990 = vadd.s32 %v2180, 32
    %vm2991 = vcmp.eq.s32.totalorder %v2178, %v2990
    %vm2992 = vcmp.eq.s32.totalorder %v2959, %v2990
    %vm2993 = vcmp.eq.s32.totalorder %v2960, %v2990
    %vm2994 = vcmp.eq.s32.totalorder %v2961, %v2990
    %vm2995 = vcmp.eq.s32.totalorder %v2962, %v2990
    %vm2996 = vcmp.eq.s32.totalorder %v2963, %v2990
    %vm2997 = vcmp.eq.s32.totalorder %v2964, %v2990
    %vm2998 = vcmp.eq.s32.totalorder %v2965, %v2990
    %vm2999 = vcmp.eq.s32.totalorder %v2966, %v2990
    %vm3000 = vcmp.eq.s32.totalorder %v2967, %v2990
    %vm3001 = vcmp.eq.s32.totalorder %v2968, %v2990
    %vm3002 = vcmp.eq.s32.totalorder %v2969, %v2990
    %vm3003 = vcmp.eq.s32.totalorder %v2970, %v2990
    %vm3004 = vcmp.eq.s32.totalorder %v2971, %v2990
    %vm3005 = vcmp.eq.s32.totalorder %v2972, %v2990
    %vm3006 = vcmp.eq.s32.totalorder %v2973, %v2990
    %vm3007 = vmor %vm2974, %vm2991
    %vm3008 = vmor %vm2975, %vm2992
    %vm3009 = vmor %vm2976, %vm2993
    %vm3010 = vmor %vm2977, %vm2994
    %vm3011 = vmor %vm2978, %vm2995
    %vm3012 = vmor %vm2979, %vm2996
    %vm3013 = vmor %vm2980, %vm2997
    %vm3014 = vmor %vm2981, %vm2998
    %vm3015 = vmor %vm2982, %vm2999
    %vm3016 = vmor %vm2983, %vm3000
    %vm3017 = vmor %vm2984, %vm3001
    %vm3018 = vmor %vm2985, %vm3002
    %vm3019 = vmor %vm2986, %vm3003
    %vm3020 = vmor %vm2987, %vm3004
    %vm3021 = vmor %vm2988, %vm3005
    %vm3022 = vmor %vm2989, %vm3006
    %v3023 = vadd.s32 %v2180, 64
    %vm3024 = vcmp.eq.s32.totalorder %v2178, %v3023
    %vm3025 = vcmp.eq.s32.totalorder %v2959, %v3023
    %vm3026 = vcmp.eq.s32.totalorder %v2960, %v3023
    %vm3027 = vcmp.eq.s32.totalorder %v2961, %v3023
    %vm3028 = vcmp.eq.s32.totalorder %v2962, %v3023
    %vm3029 = vcmp.eq.s32.totalorder %v2963, %v3023
    %vm3030 = vcmp.eq.s32.totalorder %v2964, %v3023
    %vm3031 = vcmp.eq.s32.totalorder %v2965, %v3023
    %vm3032 = vcmp.eq.s32.totalorder %v2966, %v3023
    %vm3033 = vcmp.eq.s32.totalorder %v2967, %v3023
    %vm3034 = vcmp.eq.s32.totalorder %v2968, %v3023
    %vm3035 = vcmp.eq.s32.totalorder %v2969, %v3023
    %vm3036 = vcmp.eq.s32.totalorder %v2970, %v3023
    %vm3037 = vcmp.eq.s32.totalorder %v2971, %v3023
    %vm3038 = vcmp.eq.s32.totalorder %v2972, %v3023
    %vm3039 = vcmp.eq.s32.totalorder %v2973, %v3023
    %vm3040 = vmor %vm3007, %vm3024
    %vm3041 = vmor %vm3008, %vm3025
    %vm3042 = vmor %vm3009, %vm3026
    %vm3043 = vmor %vm3010, %vm3027
    %vm3044 = vmor %vm3011, %vm3028
    %vm3045 = vmor %vm3012, %vm3029
    %vm3046 = vmor %vm3013, %vm3030
    %vm3047 = vmor %vm3014, %vm3031
    %vm3048 = vmor %vm3015, %vm3032
    %vm3049 = vmor %vm3016, %vm3033
    %vm3050 = vmor %vm3017, %vm3034
    %vm3051 = vmor %vm3018, %vm3035
    %vm3052 = vmor %vm3019, %vm3036
    %vm3053 = vmor %vm3020, %vm3037
    %vm3054 = vmor %vm3021, %vm3038
    %vm3055 = vmor %vm3022, %vm3039
    %vm3056 = vcmp.lt.s32.totalorder %v2180, 32
    %vm3057 = vmand %vm3040, %vm3056
    %vm3058 = vmand %vm3041, %vm3056
    %vm3059 = vmand %vm3042, %vm3056
    %vm3060 = vmand %vm3043, %vm3056
    %vm3061 = vmand %vm3044, %vm3056
    %vm3062 = vmand %vm3045, %vm3056
    %vm3063 = vmand %vm3046, %vm3056
    %vm3064 = vmand %vm3047, %vm3056
    %vm3065 = vmand %vm3048, %vm3056
    %vm3066 = vmand %vm3049, %vm3056
    %vm3067 = vmand %vm3050, %vm3056
    %vm3068 = vmand %vm3051, %vm3056
    %vm3069 = vmand %vm3052, %vm3056
    %vm3070 = vmand %vm3053, %vm3056
    %vm3071 = vmand %vm3054, %vm3056
    %vm3072 = vmand %vm3055, %vm3056
    %v3073 = vsel %vm3057, 1.0, 0.0
    %v3074 = vsel %vm3058, 1.0, 0.0
    %v3075 = vsel %vm3059, 1.0, 0.0
    %v3076 = vsel %vm3060, 1.0, 0.0
    %v3077 = vsel %vm3061, 1.0, 0.0
    %v3078 = vsel %vm3062, 1.0, 0.0
    %v3079 = vsel %vm3063, 1.0, 0.0
    %v3080 = vsel %vm3064, 1.0, 0.0
    %v3081 = vsel %vm3065, 1.0, 0.0
    %v3082 = vsel %vm3066, 1.0, 0.0
    %v3083 = vsel %vm3067, 1.0, 0.0
    %v3084 = vsel %vm3068, 1.0, 0.0
    %v3085 = vsel %vm3069, 1.0, 0.0
    %v3086 = vsel %vm3070, 1.0, 0.0
    %v3087 = vsel %vm3071, 1.0, 0.0
    %v3088 = vsel %vm3072, 1.0, 0.0
    %3089 = vmatprep.subr.mxu0 0.0
    %3090 = vmatpush1.msra.mxu0 %v3073
    %3091 = vmatprep.subr.mxu0 0.0
    %3092 = vmatpush1.msra.mxu0 %v3074
    %3093 = vmatprep.subr.mxu0 0.0
    %3094 = vmatpush1.msra.mxu0 %v3075
    %3095 = vmatprep.subr.mxu0 0.0
    %3096 = vmatpush1.msra.mxu0 %v3076
    %3097 = vmatprep.subr.mxu0 0.0
    %3098 = vmatpush1.msra.mxu0 %v3077
    %3099 = vmatprep.subr.mxu0 0.0
    %3100 = vmatpush1.msra.mxu0 %v3078
    %3101 = vmatprep.subr.mxu0 0.0
    %3102 = vmatpush1.msra.mxu0 %v3079
    %3103 = vmatprep.subr.mxu0 0.0
    %3104 = vmatpush1.msra.mxu0 %v3080
    %3105 = vmatprep.subr.mxu0 0.0
    %3106 = vmatpush1.msra.mxu0 %v3081
    %3107 = vmatprep.subr.mxu0 0.0
    %3108 = vmatpush1.msra.mxu0 %v3082
    %3109 = vmatprep.subr.mxu0 0.0
    %3110 = vmatpush1.msra.mxu0 %v3083
    %3111 = vmatprep.subr.mxu0 0.0
    %3112 = vmatpush1.msra.mxu0 %v3084
    %3113 = vmatprep.subr.mxu0 0.0
    %3114 = vmatpush1.msra.mxu0 %v3085
    %3115 = vmatprep.subr.mxu0 0.0
    %3116 = vmatpush1.msra.mxu0 %v3086
    %3117 = vmatprep.subr.mxu0 0.0
    %3118 = vmatpush1.msra.mxu0 %v3087
    %3119 = vmatprep.subr.mxu0 0.0
    %3120 = vmatpush1.msra.mxu0 %v3088
    %3121 = vmatprep.subr.mxu0 0.0
    %3122 = vmatpush1.msra.mxu0 0.0
    %3123 = vmatprep.subr.mxu0 0.0
    %3124 = vmatpush1.msra.mxu0 0.0
    %3125 = vmatprep.subr.mxu0 0.0
    %3126 = vmatpush1.msra.mxu0 0.0
    %3127 = vmatprep.subr.mxu0 0.0
    %3128 = vmatpush1.msra.mxu0 0.0
    %3129 = vmatprep.subr.mxu0 0.0
    %3130 = vmatpush1.msra.mxu0 0.0
    %3131 = vmatprep.subr.mxu0 0.0
    %3132 = vmatpush1.msra.mxu0 0.0
    %3133 = vmatprep.subr.mxu0 0.0
    %3134 = vmatpush1.msra.mxu0 0.0
    %3135 = vmatprep.subr.mxu0 0.0
    %3136 = vmatpush1.msra.mxu0 0.0
    %3137 = vmatprep.subr.mxu0 0.0
    %3138 = vmatpush1.msra.mxu0 0.0
    %3139 = vmatprep.subr.mxu0 0.0
    %3140 = vmatpush1.msra.mxu0 0.0
    %3141 = vmatprep.subr.mxu0 0.0
    %3142 = vmatpush1.msra.mxu0 0.0
    %3143 = vmatprep.subr.mxu0 0.0
    %3144 = vmatpush1.msra.mxu0 0.0
    %3145 = vmatprep.subr.mxu0 0.0
    %3146 = vmatpush1.msra.mxu0 0.0
    %3147 = vmatprep.subr.mxu0 0.0
    %3148 = vmatpush1.msra.mxu0 0.0
    %3149 = vmatprep.subr.mxu0 0.0
    %3150 = vmatpush1.msra.mxu0 0.0
    %3151 = vmatprep.subr.mxu0 0.0
    %3152 = vmatpush1.msra.mxu0 0.0
    %3153 = vmatprep.mubr.f32.mxu0 0.0
    %3154 = vmatmul.mubr.f32.gmra.mrb[0].mxu0 %v2895
    %v3155 = vpop.f32.mrb[0].mxu0
    %v3156 = vadd.f32 0.0, %v3155
    %v3157 = vpop.f32.mrb[0].mxu0
    %3158 = vmatprep.mubr.f32.mxu0 0.0
    %3159 = vmatmul.mubr.f32.gmra.mrb[0].mxu0 %v2896
    %v3160 = vpop.f32.mrb[0].mxu0
    %v3161 = vadd.f32 0.0, %v3160
    %v3162 = vpop.f32.mrb[0].mxu0
    %3163 = vmatprep.mubr.f32.mxu0 0.0
    %3164 = vmatmul.mubr.f32.gmra.mrb[0].mxu0 %v2897
    %v3165 = vpop.f32.mrb[0].mxu0
    %v3166 = vadd.f32 0.0, %v3165
    %v3167 = vpop.f32.mrb[0].mxu0
    %3168 = vmatprep.mubr.f32.mxu0 0.0
    %3169 = vmatmul.mubr.f32.gmra.mrb[0].mxu0 %v2898
    %v3170 = vpop.f32.mrb[0].mxu0
    %v3171 = vadd.f32 0.0, %v3170
    %v3172 = vpop.f32.mrb[0].mxu0
    %3173 = vmatprep.mubr.f32.mxu0 0.0
    %3174 = vmatmul.mubr.f32.gmra.mrb[0].mxu0 %v2899
    %v3175 = vpop.f32.mrb[0].mxu0
    %v3176 = vadd.f32 0.0, %v3175
    %v3177 = vpop.f32.mrb[0].mxu0
    %3178 = vmatprep.mubr.f32.mxu0 0.0
    %3179 = vmatmul.mubr.f32.gmra.mrb[0].mxu0 %v2900
    %v3180 = vpop.f32.mrb[0].mxu0
    %v3181 = vadd.f32 0.0, %v3180
    %v3182 = vpop.f32.mrb[0].mxu0
    %3183 = vmatprep.mubr.f32.mxu0 0.0
    %3184 = vmatmul.mubr.f32.gmra.mrb[0].mxu0 %v2901
    %v3185 = vpop.f32.mrb[0].mxu0
    %v3186 = vadd.f32 0.0, %v3185
    %v3187 = vpop.f32.mrb[0].mxu0
    %3188 = vmatprep.mubr.f32.mxu0 0.0
    %3189 = vmatmul.mubr.f32.gmra.mrb[0].mxu0 %v2902
    %v3190 = vpop.f32.mrb[0].mxu0
    %v3191 = vadd.f32 0.0, %v3190
    %v3192 = vpop.f32.mrb[0].mxu0
    %3193 = vmatprep.mubr.f32.mxu0 0.0
    %3194 = vmatmul.mubr.f32.gmra.mrb[0].mxu0 %v2903
    %v3195 = vpop.f32.mrb[0].mxu0
    %v3196 = vadd.f32 0.0, %v3195
    %v3197 = vpop.f32.mrb[0].mxu0
    %3198 = vmatprep.mubr.f32.mxu0 0.0
    %3199 = vmatmul.mubr.f32.gmra.mrb[0].mxu0 %v2904
    %v3200 = vpop.f32.mrb[0].mxu0
    %v3201 = vadd.f32 0.0, %v3200
    %v3202 = vpop.f32.mrb[0].mxu0
    %3203 = vmatprep.mubr.f32.mxu0 0.0
    %3204 = vmatmul.mubr.f32.gmra.mrb[0].mxu0 %v2905
    %v3205 = vpop.f32.mrb[0].mxu0
    %v3206 = vadd.f32 0.0, %v3205
    %v3207 = vpop.f32.mrb[0].mxu0
    %3208 = vmatprep.mubr.f32.mxu0 0.0
    %3209 = vmatmul.mubr.f32.gmra.mrb[0].mxu0 %v2906
    %v3210 = vpop.f32.mrb[0].mxu0
    %v3211 = vadd.f32 0.0, %v3210
    %v3212 = vpop.f32.mrb[0].mxu0
    %3213 = vmatprep.mubr.f32.mxu0 0.0
    %3214 = vmatmul.mubr.f32.gmra.mrb[0].mxu0 %v2907
    %v3215 = vpop.f32.mrb[0].mxu0
    %v3216 = vadd.f32 0.0, %v3215
    %v3217 = vpop.f32.mrb[0].mxu0
    %3218 = vmatprep.mubr.f32.mxu0 0.0
    %3219 = vmatmul.mubr.f32.gmra.mrb[0].mxu0 %v2908
    %v3220 = vpop.f32.mrb[0].mxu0
    %v3221 = vadd.f32 0.0, %v3220
    %v3222 = vpop.f32.mrb[0].mxu0
    %3223 = vmatprep.mubr.f32.mxu0 0.0
    %3224 = vmatmul.mubr.f32.gmra.mrb[0].mxu0 %v2909
    %v3225 = vpop.f32.mrb[0].mxu0
    %v3226 = vadd.f32 0.0, %v3225
    %v3227 = vpop.f32.mrb[0].mxu0
    %3228 = vmatprep.mubr.f32.mxu0 0.0
    %3229 = vmatmul.mubr.f32.gmra.mrb[0].mxu0 %v2910
    %v3230 = vpop.f32.mrb[0].mxu0
    %v3231 = vadd.f32 0.0, %v3230
    %v3232 = vpop.f32.mrb[0].mxu0
    %3233 = vmatprep.mubr.f32.mxu0 0.0
    %3234 = vmatmul.mubr.f32.gmra.mrb[0].mxu0 %v2911
    %v3235 = vpop.f32.mrb[0].mxu0
    %v3236 = vadd.f32 0.0, %v3235
    %v3237 = vpop.f32.mrb[0].mxu0
    %3238 = vmatprep.mubr.f32.mxu0 0.0
    %3239 = vmatmul.mubr.f32.gmra.mrb[0].mxu0 %v2912
    %v3240 = vpop.f32.mrb[0].mxu0
    %v3241 = vadd.f32 0.0, %v3240
    %v3242 = vpop.f32.mrb[0].mxu0
    %3243 = vmatprep.mubr.f32.mxu0 0.0
    %3244 = vmatmul.mubr.f32.gmra.mrb[0].mxu0 %v2913
    %v3245 = vpop.f32.mrb[0].mxu0
    %v3246 = vadd.f32 0.0, %v3245
    %v3247 = vpop.f32.mrb[0].mxu0
    %3248 = vmatprep.mubr.f32.mxu0 0.0
    %3249 = vmatmul.mubr.f32.gmra.mrb[0].mxu0 %v2914
    %v3250 = vpop.f32.mrb[0].mxu0
    %v3251 = vadd.f32 0.0, %v3250
    %v3252 = vpop.f32.mrb[0].mxu0
    %3253 = vmatprep.mubr.f32.mxu0 0.0
    %3254 = vmatmul.mubr.f32.gmra.mrb[0].mxu0 %v2915
    %v3255 = vpop.f32.mrb[0].mxu0
    %v3256 = vadd.f32 0.0, %v3255
    %v3257 = vpop.f32.mrb[0].mxu0
    %3258 = vmatprep.mubr.f32.mxu0 0.0
    %3259 = vmatmul.mubr.f32.gmra.mrb[0].mxu0 %v2916
    %v3260 = vpop.f32.mrb[0].mxu0
    %v3261 = vadd.f32 0.0, %v3260
    %v3262 = vpop.f32.mrb[0].mxu0
    %3263 = vmatprep.mubr.f32.mxu0 0.0
    %3264 = vmatmul.mubr.f32.gmra.mrb[0].mxu0 %v2917
    %v3265 = vpop.f32.mrb[0].mxu0
    %v3266 = vadd.f32 0.0, %v3265
    %v3267 = vpop.f32.mrb[0].mxu0
    %3268 = vmatprep.mubr.f32.mxu0 0.0
    %3269 = vmatmul.mubr.f32.gmra.mrb[0].mxu0 %v2918
    %v3270 = vpop.f32.mrb[0].mxu0
    %v3271 = vadd.f32 0.0, %v3270
    %v3272 = vpop.f32.mrb[0].mxu0
    %3273 = vmatprep.mubr.f32.mxu0 0.0
    %3274 = vmatmul.mubr.f32.gmra.mrb[0].mxu0 %v2919
    %v3275 = vpop.f32.mrb[0].mxu0
    %v3276 = vadd.f32 0.0, %v3275
    %v3277 = vpop.f32.mrb[0].mxu0
    %3278 = vmatprep.mubr.f32.mxu0 0.0
    %3279 = vmatmul.mubr.f32.gmra.mrb[0].mxu0 %v2920
    %v3280 = vpop.f32.mrb[0].mxu0
    %v3281 = vadd.f32 0.0, %v3280
    %v3282 = vpop.f32.mrb[0].mxu0
    %3283 = vmatprep.mubr.f32.mxu0 0.0
    %3284 = vmatmul.mubr.f32.gmra.mrb[0].mxu0 %v2921
    %v3285 = vpop.f32.mrb[0].mxu0
    %v3286 = vadd.f32 0.0, %v3285
    %v3287 = vpop.f32.mrb[0].mxu0
    %3288 = vmatprep.mubr.f32.mxu0 0.0
    %3289 = vmatmul.mubr.f32.gmra.mrb[0].mxu0 %v2922
    %v3290 = vpop.f32.mrb[0].mxu0
    %v3291 = vadd.f32 0.0, %v3290
    %v3292 = vpop.f32.mrb[0].mxu0
    %3293 = vmatprep.mubr.f32.mxu0 0.0
    %3294 = vmatmul.mubr.f32.gmra.mrb[0].mxu0 %v2923
    %v3295 = vpop.f32.mrb[0].mxu0
    %v3296 = vadd.f32 0.0, %v3295
    %v3297 = vpop.f32.mrb[0].mxu0
    %3298 = vmatprep.mubr.f32.mxu0 0.0
    %3299 = vmatmul.mubr.f32.gmra.mrb[0].mxu0 %v2924
    %v3300 = vpop.f32.mrb[0].mxu0
    %v3301 = vadd.f32 0.0, %v3300
    %v3302 = vpop.f32.mrb[0].mxu0
    %3303 = vmatprep.mubr.f32.mxu0 0.0
    %3304 = vmatmul.mubr.f32.gmra.mrb[0].mxu0 %v2925
    %v3305 = vpop.f32.mrb[0].mxu0
    %v3306 = vadd.f32 0.0, %v3305
    %v3307 = vpop.f32.mrb[0].mxu0
    %3308 = vmatprep.mubr.f32.mxu0 0.0
    %3309 = vmatmul.mubr.f32.gmra.mrb[0].mxu0 %v2926
    %v3310 = vpop.f32.mrb[0].mxu0
    %v3311 = vadd.f32 0.0, %v3310
    %v3312 = vpop.f32.mrb[0].mxu0
    %3313 = vmatprep.mubr.f32.mxu0 0.0
    %3314 = vmatmul.mubr.f32.gmra.mrb[0].mxu0 %v2927
    %v3315 = vpop.f32.mrb[0].mxu0
    %v3316 = vadd.f32 0.0, %v3315
    %v3317 = vpop.f32.mrb[0].mxu0
    %3318 = vmatprep.mubr.f32.mxu0 0.0
    %3319 = vmatmul.mubr.f32.gmra.mrb[0].mxu0 %v2928
    %v3320 = vpop.f32.mrb[0].mxu0
    %v3321 = vadd.f32 0.0, %v3320
    %v3322 = vpop.f32.mrb[0].mxu0
    %3323 = vmatprep.mubr.f32.mxu0 0.0
    %3324 = vmatmul.mubr.f32.gmra.mrb[0].mxu0 %v2929
    %v3325 = vpop.f32.mrb[0].mxu0
    %v3326 = vadd.f32 0.0, %v3325
    %v3327 = vpop.f32.mrb[0].mxu0
    %3328 = vmatprep.mubr.f32.mxu0 0.0
    %3329 = vmatmul.mubr.f32.gmra.mrb[0].mxu0 %v2930
    %v3330 = vpop.f32.mrb[0].mxu0
    %v3331 = vadd.f32 0.0, %v3330
    %v3332 = vpop.f32.mrb[0].mxu0
    %3333 = vmatprep.mubr.f32.mxu0 0.0
    %3334 = vmatmul.mubr.f32.gmra.mrb[0].mxu0 %v2931
    %v3335 = vpop.f32.mrb[0].mxu0
    %v3336 = vadd.f32 0.0, %v3335
    %v3337 = vpop.f32.mrb[0].mxu0
    %3338 = vmatprep.mubr.f32.mxu0 0.0
    %3339 = vmatmul.mubr.f32.gmra.mrb[0].mxu0 %v2932
    %v3340 = vpop.f32.mrb[0].mxu0
    %v3341 = vadd.f32 0.0, %v3340
    %v3342 = vpop.f32.mrb[0].mxu0
    %3343 = vmatprep.mubr.f32.mxu0 0.0
    %3344 = vmatmul.mubr.f32.gmra.mrb[0].mxu0 %v2933
    %v3345 = vpop.f32.mrb[0].mxu0
    %v3346 = vadd.f32 0.0, %v3345
    %v3347 = vpop.f32.mrb[0].mxu0
    %3348 = vmatprep.mubr.f32.mxu0 0.0
    %3349 = vmatmul.mubr.f32.gmra.mrb[0].mxu0 %v2934
    %v3350 = vpop.f32.mrb[0].mxu0
    %v3351 = vadd.f32 0.0, %v3350
    %v3352 = vpop.f32.mrb[0].mxu0
    %3353 = vmatprep.mubr.f32.mxu0 0.0
    %3354 = vmatmul.mubr.f32.gmra.mrb[0].mxu0 %v2935
    %v3355 = vpop.f32.mrb[0].mxu0
    %v3356 = vadd.f32 0.0, %v3355
    %v3357 = vpop.f32.mrb[0].mxu0
    %3358 = vmatprep.mubr.f32.mxu0 0.0
    %3359 = vmatmul.mubr.f32.gmra.mrb[0].mxu0 %v2936
    %v3360 = vpop.f32.mrb[0].mxu0
    %v3361 = vadd.f32 0.0, %v3360
    %v3362 = vpop.f32.mrb[0].mxu0
    %3363 = vmatprep.mubr.f32.mxu0 0.0
    %3364 = vmatmul.mubr.f32.gmra.mrb[0].mxu0 %v2937
    %v3365 = vpop.f32.mrb[0].mxu0
    %v3366 = vadd.f32 0.0, %v3365
    %v3367 = vpop.f32.mrb[0].mxu0
    %3368 = vmatprep.mubr.f32.mxu0 0.0
    %3369 = vmatmul.mubr.f32.gmra.mrb[0].mxu0 %v2938
    %v3370 = vpop.f32.mrb[0].mxu0
    %v3371 = vadd.f32 0.0, %v3370
    %v3372 = vpop.f32.mrb[0].mxu0
    %3373 = vmatprep.mubr.f32.mxu0 0.0
    %3374 = vmatmul.mubr.f32.gmra.mrb[0].mxu0 %v2939
    %v3375 = vpop.f32.mrb[0].mxu0
    %v3376 = vadd.f32 0.0, %v3375
    %v3377 = vpop.f32.mrb[0].mxu0
    %3378 = vmatprep.mubr.f32.mxu0 0.0
    %3379 = vmatmul.mubr.f32.gmra.mrb[0].mxu0 %v2940
    %v3380 = vpop.f32.mrb[0].mxu0
    %v3381 = vadd.f32 0.0, %v3380
    %v3382 = vpop.f32.mrb[0].mxu0
    %3383 = vmatprep.mubr.f32.mxu0 0.0
    %3384 = vmatmul.mubr.f32.gmra.mrb[0].mxu0 %v2941
    %v3385 = vpop.f32.mrb[0].mxu0
    %v3386 = vadd.f32 0.0, %v3385
    %v3387 = vpop.f32.mrb[0].mxu0
    %3388 = vmatprep.mubr.f32.mxu0 0.0
    %3389 = vmatmul.mubr.f32.gmra.mrb[0].mxu0 %v2942
    %v3390 = vpop.f32.mrb[0].mxu0
    %v3391 = vadd.f32 0.0, %v3390
    %v3392 = vpop.f32.mrb[0].mxu0
    %3393 = vmatprep.mubr.f32.mxu0 0.0
    %3394 = vmatmul.mubr.f32.gmra.mrb[0].mxu0 %v2943
    %v3395 = vpop.f32.mrb[0].mxu0
    %v3396 = vadd.f32 0.0, %v3395
    %v3397 = vpop.f32.mrb[0].mxu0
    %3398 = vmatprep.mubr.f32.mxu0 0.0
    %3399 = vmatmul.mubr.f32.gmra.mrb[0].mxu0 %v2944
    %v3400 = vpop.f32.mrb[0].mxu0
    %v3401 = vadd.f32 0.0, %v3400
    %v3402 = vpop.f32.mrb[0].mxu0
    %3403 = vmatprep.mubr.f32.mxu0 0.0
    %3404 = vmatmul.mubr.f32.gmra.mrb[0].mxu0 %v2945
    %v3405 = vpop.f32.mrb[0].mxu0
    %v3406 = vadd.f32 0.0, %v3405
    %v3407 = vpop.f32.mrb[0].mxu0
    %3408 = vmatprep.mubr.f32.mxu0 0.0
    %3409 = vmatmul.mubr.f32.gmra.mrb[0].mxu0 %v2946
    %v3410 = vpop.f32.mrb[0].mxu0
    %v3411 = vadd.f32 0.0, %v3410
    %v3412 = vpop.f32.mrb[0].mxu0
    %3413 = vmatprep.mubr.f32.mxu0 0.0
    %3414 = vmatmul.mubr.f32.gmra.mrb[0].mxu0 %v2947
    %v3415 = vpop.f32.mrb[0].mxu0
    %v3416 = vadd.f32 0.0, %v3415
    %v3417 = vpop.f32.mrb[0].mxu0
    %3418 = vmatprep.mubr.f32.mxu0 0.0
    %3419 = vmatmul.mubr.f32.gmra.mrb[0].mxu0 %v2948
    %v3420 = vpop.f32.mrb[0].mxu0
    %v3421 = vadd.f32 0.0, %v3420
    %v3422 = vpop.f32.mrb[0].mxu0
    %3423 = vmatprep.mubr.f32.mxu0 0.0
    %3424 = vmatmul.mubr.f32.gmra.mrb[0].mxu0 %v2949
    %v3425 = vpop.f32.mrb[0].mxu0
    %v3426 = vadd.f32 0.0, %v3425
    %v3427 = vpop.f32.mrb[0].mxu0
    %3428 = vmatprep.mubr.f32.mxu0 0.0
    %3429 = vmatmul.mubr.f32.gmra.mrb[0].mxu0 %v2950
    %v3430 = vpop.f32.mrb[0].mxu0
    %v3431 = vadd.f32 0.0, %v3430
    %v3432 = vpop.f32.mrb[0].mxu0
    %3433 = vmatprep.mubr.f32.mxu0 0.0
    %3434 = vmatmul.mubr.f32.gmra.mrb[0].mxu0 %v2951
    %v3435 = vpop.f32.mrb[0].mxu0
    %v3436 = vadd.f32 0.0, %v3435
    %v3437 = vpop.f32.mrb[0].mxu0
    %3438 = vmatprep.mubr.f32.mxu0 0.0
    %3439 = vmatmul.mubr.f32.gmra.mrb[0].mxu0 %v2952
    %v3440 = vpop.f32.mrb[0].mxu0
    %v3441 = vadd.f32 0.0, %v3440
    %v3442 = vpop.f32.mrb[0].mxu0
    %3443 = vmatprep.mubr.f32.mxu0 0.0
    %3444 = vmatmul.mubr.f32.gmra.mrb[0].mxu0 %v2953
    %v3445 = vpop.f32.mrb[0].mxu0
    %v3446 = vadd.f32 0.0, %v3445
    %v3447 = vpop.f32.mrb[0].mxu0
    %3448 = vmatprep.mubr.f32.mxu0 0.0
    %3449 = vmatmul.mubr.f32.gmra.mrb[0].mxu0 %v2954
    %v3450 = vpop.f32.mrb[0].mxu0
    %v3451 = vadd.f32 0.0, %v3450
    %v3452 = vpop.f32.mrb[0].mxu0
    %3453 = vmatprep.mubr.f32.mxu0 0.0
    %3454 = vmatmul.mubr.f32.gmra.mrb[0].mxu0 %v2955
    %v3455 = vpop.f32.mrb[0].mxu0
    %v3456 = vadd.f32 0.0, %v3455
    %v3457 = vpop.f32.mrb[0].mxu0
    %3458 = vmatprep.mubr.f32.mxu0 0.0
    %3459 = vmatmul.mubr.f32.gmra.mrb[0].mxu0 %v2956
    %v3460 = vpop.f32.mrb[0].mxu0
    %v3461 = vadd.f32 0.0, %v3460
    %v3462 = vpop.f32.mrb[0].mxu0
    %3463 = vmatprep.mubr.f32.mxu0 0.0
    %3464 = vmatmul.mubr.f32.gmra.mrb[0].mxu0 %v2957
    %v3465 = vpop.f32.mrb[0].mxu0
    %v3466 = vadd.f32 0.0, %v3465
    %v3467 = vpop.f32.mrb[0].mxu0
    %3468 = vmatprep.mubr.f32.mxu0 0.0
    %3469 = vmatmul.mubr.f32.gmra.mrb[0].mxu0 %v2958
    %v3470 = vpop.f32.mrb[0].mxu0
    %v3471 = vadd.f32 0.0, %v3470
    %v3472 = vpop.f32.mrb[0].mxu0
    %3473 = vdwg.mxu0
    %vm3474 = vcmp.lt.s32.totalorder %v2180, 3
    %3539 = vrot.lane.b32.xlu0 %v361, 32
    %v3540 = vpop.permute.xlu0 %3539
    %3541 = vrot.lane.b32.xlu0 %v366, 32
    %v3542 = vpop.permute.xlu0 %3541
    %3543 = vrot.lane.b32.xlu0 %v371, 32
    %v3544 = vpop.permute.xlu0 %3543
    %3545 = vrot.lane.b32.xlu0 %v376, 32
    %v3546 = vpop.permute.xlu0 %3545
    %3547 = vrot.lane.b32.xlu0 %v381, 32
    %v3548 = vpop.permute.xlu0 %3547
    %3549 = vrot.lane.b32.xlu0 %v386, 32
    %v3550 = vpop.permute.xlu0 %3549
    %3551 = vrot.lane.b32.xlu0 %v391, 32
    %v3552 = vpop.permute.xlu0 %3551
    %3553 = vrot.lane.b32.xlu0 %v396, 32
    %v3554 = vpop.permute.xlu0 %3553
    %3555 = vrot.lane.b32.xlu0 %v401, 32
    %v3556 = vpop.permute.xlu0 %3555
    %3557 = vrot.lane.b32.xlu0 %v406, 32
    %v3558 = vpop.permute.xlu0 %3557
    %3559 = vrot.lane.b32.xlu0 %v411, 32
    %v3560 = vpop.permute.xlu0 %3559
    %3561 = vrot.lane.b32.xlu0 %v416, 32
    %v3562 = vpop.permute.xlu0 %3561
    %3563 = vrot.lane.b32.xlu0 %v421, 32
    %v3564 = vpop.permute.xlu0 %3563
    %3565 = vrot.lane.b32.xlu0 %v426, 32
    %v3566 = vpop.permute.xlu0 %3565
    %3567 = vrot.lane.b32.xlu0 %v431, 32
    %v3568 = vpop.permute.xlu0 %3567
    %3569 = vrot.lane.b32.xlu0 %v436, 32
    %v3570 = vpop.permute.xlu0 %3569
    %3571 = vrot.lane.b32.xlu0 %v441, 32
    %v3572 = vpop.permute.xlu0 %3571
    %3573 = vrot.lane.b32.xlu0 %v446, 32
    %v3574 = vpop.permute.xlu0 %3573
    %3575 = vrot.lane.b32.xlu0 %v451, 32
    %v3576 = vpop.permute.xlu0 %3575
    %3577 = vrot.lane.b32.xlu0 %v456, 32
    %v3578 = vpop.permute.xlu0 %3577
    %3579 = vrot.lane.b32.xlu0 %v461, 32
    %v3580 = vpop.permute.xlu0 %3579
    %3581 = vrot.lane.b32.xlu0 %v466, 32
    %v3582 = vpop.permute.xlu0 %3581
    %3583 = vrot.lane.b32.xlu0 %v471, 32
    %v3584 = vpop.permute.xlu0 %3583
    %3585 = vrot.lane.b32.xlu0 %v476, 32
    %v3586 = vpop.permute.xlu0 %3585
    %3587 = vrot.lane.b32.xlu0 %v481, 32
    %v3588 = vpop.permute.xlu0 %3587
    %3589 = vrot.lane.b32.xlu0 %v486, 32
    %v3590 = vpop.permute.xlu0 %3589
    %3591 = vrot.lane.b32.xlu0 %v491, 32
    %v3592 = vpop.permute.xlu0 %3591
    %3593 = vrot.lane.b32.xlu0 %v496, 32
    %v3594 = vpop.permute.xlu0 %3593
    %3595 = vrot.lane.b32.xlu0 %v501, 32
    %v3596 = vpop.permute.xlu0 %3595
    %3597 = vrot.lane.b32.xlu0 %v506, 32
    %v3598 = vpop.permute.xlu0 %3597
    %3599 = vrot.lane.b32.xlu0 %v511, 32
    %v3600 = vpop.permute.xlu0 %3599
    %3601 = vrot.lane.b32.xlu0 %v516, 32
    %v3602 = vpop.permute.xlu0 %3601
    %3603 = vrot.lane.b32.xlu0 %v521, 32
    %v3604 = vpop.permute.xlu0 %3603
    %3605 = vrot.lane.b32.xlu0 %v526, 32
    %v3606 = vpop.permute.xlu0 %3605
    %3607 = vrot.lane.b32.xlu0 %v531, 32
    %v3608 = vpop.permute.xlu0 %3607
    %3609 = vrot.lane.b32.xlu0 %v536, 32
    %v3610 = vpop.permute.xlu0 %3609
    %3611 = vrot.lane.b32.xlu0 %v541, 32
    %v3612 = vpop.permute.xlu0 %3611
    %3613 = vrot.lane.b32.xlu0 %v546, 32
    %v3614 = vpop.permute.xlu0 %3613
    %3615 = vrot.lane.b32.xlu0 %v551, 32
    %v3616 = vpop.permute.xlu0 %3615
    %3617 = vrot.lane.b32.xlu0 %v556, 32
    %v3618 = vpop.permute.xlu0 %3617
    %3619 = vrot.lane.b32.xlu0 %v561, 32
    %v3620 = vpop.permute.xlu0 %3619
    %3621 = vrot.lane.b32.xlu0 %v566, 32
    %v3622 = vpop.permute.xlu0 %3621
    %3623 = vrot.lane.b32.xlu0 %v571, 32
    %v3624 = vpop.permute.xlu0 %3623
    %3625 = vrot.lane.b32.xlu0 %v576, 32
    %v3626 = vpop.permute.xlu0 %3625
    %3627 = vrot.lane.b32.xlu0 %v581, 32
    %v3628 = vpop.permute.xlu0 %3627
    %3629 = vrot.lane.b32.xlu0 %v586, 32
    %v3630 = vpop.permute.xlu0 %3629
    %3631 = vrot.lane.b32.xlu0 %v591, 32
    %v3632 = vpop.permute.xlu0 %3631
    %3633 = vrot.lane.b32.xlu0 %v596, 32
    %v3634 = vpop.permute.xlu0 %3633
    %3635 = vrot.lane.b32.xlu0 %v601, 32
    %v3636 = vpop.permute.xlu0 %3635
    %3637 = vrot.lane.b32.xlu0 %v606, 32
    %v3638 = vpop.permute.xlu0 %3637
    %3639 = vrot.lane.b32.xlu0 %v611, 32
    %v3640 = vpop.permute.xlu0 %3639
    %3641 = vrot.lane.b32.xlu0 %v616, 32
    %v3642 = vpop.permute.xlu0 %3641
    %3643 = vrot.lane.b32.xlu0 %v621, 32
    %v3644 = vpop.permute.xlu0 %3643
    %3645 = vrot.lane.b32.xlu0 %v626, 32
    %v3646 = vpop.permute.xlu0 %3645
    %3647 = vrot.lane.b32.xlu0 %v631, 32
    %v3648 = vpop.permute.xlu0 %3647
    %3649 = vrot.lane.b32.xlu0 %v636, 32
    %v3650 = vpop.permute.xlu0 %3649
    %3651 = vrot.lane.b32.xlu0 %v641, 32
    %v3652 = vpop.permute.xlu0 %3651
    %3653 = vrot.lane.b32.xlu0 %v646, 32
    %v3654 = vpop.permute.xlu0 %3653
    %3655 = vrot.lane.b32.xlu0 %v651, 32
    %v3656 = vpop.permute.xlu0 %3655
    %3657 = vrot.lane.b32.xlu0 %v656, 32
    %v3658 = vpop.permute.xlu0 %3657
    %3659 = vrot.lane.b32.xlu0 %v661, 32
    %v3660 = vpop.permute.xlu0 %3659
    %3661 = vrot.lane.b32.xlu0 %v666, 32
    %v3662 = vpop.permute.xlu0 %3661
    %3663 = vrot.lane.b32.xlu0 %v671, 32
    %v3664 = vpop.permute.xlu0 %3663
    %3665 = vrot.lane.b32.xlu0 %v676, 32
    %v3666 = vpop.permute.xlu0 %3665
    %v3731 = vsel %vm3474, %v3540, 0.0
    %v3732 = vsel %vm3474, %v3542, 0.0
    %v3733 = vsel %vm3474, %v3544, 0.0
    %v3734 = vsel %vm3474, %v3546, 0.0
    %v3735 = vsel %vm3474, %v3548, 0.0
    %v3736 = vsel %vm3474, %v3550, 0.0
    %v3737 = vsel %vm3474, %v3552, 0.0
    %v3738 = vsel %vm3474, %v3554, 0.0
    %v3739 = vsel %vm3474, %v3556, 0.0
    %v3740 = vsel %vm3474, %v3558, 0.0
    %v3741 = vsel %vm3474, %v3560, 0.0
    %v3742 = vsel %vm3474, %v3562, 0.0
    %v3743 = vsel %vm3474, %v3564, 0.0
    %v3744 = vsel %vm3474, %v3566, 0.0
    %v3745 = vsel %vm3474, %v3568, 0.0
    %v3746 = vsel %vm3474, %v3570, 0.0
    %v3747 = vsel %vm3474, %v3572, 0.0
    %v3748 = vsel %vm3474, %v3574, 0.0
    %v3749 = vsel %vm3474, %v3576, 0.0
    %v3750 = vsel %vm3474, %v3578, 0.0
    %v3751 = vsel %vm3474, %v3580, 0.0
    %v3752 = vsel %vm3474, %v3582, 0.0
    %v3753 = vsel %vm3474, %v3584, 0.0
    %v3754 = vsel %vm3474, %v3586, 0.0
    %v3755 = vsel %vm3474, %v3588, 0.0
    %v3756 = vsel %vm3474, %v3590, 0.0
    %v3757 = vsel %vm3474, %v3592, 0.0
    %v3758 = vsel %vm3474, %v3594, 0.0
    %v3759 = vsel %vm3474, %v3596, 0.0
    %v3760 = vsel %vm3474, %v3598, 0.0
    %v3761 = vsel %vm3474, %v3600, 0.0
    %v3762 = vsel %vm3474, %v3602, 0.0
    %v3763 = vsel %vm3474, %v3604, 0.0
    %v3764 = vsel %vm3474, %v3606, 0.0
    %v3765 = vsel %vm3474, %v3608, 0.0
    %v3766 = vsel %vm3474, %v3610, 0.0
    %v3767 = vsel %vm3474, %v3612, 0.0
    %v3768 = vsel %vm3474, %v3614, 0.0
    %v3769 = vsel %vm3474, %v3616, 0.0
    %v3770 = vsel %vm3474, %v3618, 0.0
    %v3771 = vsel %vm3474, %v3620, 0.0
    %v3772 = vsel %vm3474, %v3622, 0.0
    %v3773 = vsel %vm3474, %v3624, 0.0
    %v3774 = vsel %vm3474, %v3626, 0.0
    %v3775 = vsel %vm3474, %v3628, 0.0
    %v3776 = vsel %vm3474, %v3630, 0.0
    %v3777 = vsel %vm3474, %v3632, 0.0
    %v3778 = vsel %vm3474, %v3634, 0.0
    %v3779 = vsel %vm3474, %v3636, 0.0
    %v3780 = vsel %vm3474, %v3638, 0.0
    %v3781 = vsel %vm3474, %v3640, 0.0
    %v3782 = vsel %vm3474, %v3642, 0.0
    %v3783 = vsel %vm3474, %v3644, 0.0
    %v3784 = vsel %vm3474, %v3646, 0.0
    %v3785 = vsel %vm3474, %v3648, 0.0
    %v3786 = vsel %vm3474, %v3650, 0.0
    %v3787 = vsel %vm3474, %v3652, 0.0
    %v3788 = vsel %vm3474, %v3654, 0.0
    %v3789 = vsel %vm3474, %v3656, 0.0
    %v3790 = vsel %vm3474, %v3658, 0.0
    %v3791 = vsel %vm3474, %v3660, 0.0
    %v3792 = vsel %vm3474, %v3662, 0.0
    %v3793 = vsel %vm3474, %v3664, 0.0
    %v3794 = vsel %vm3474, %v3666, 0.0
    %v3795 = vsel %vm1320, %v3731, 0.0
    %3796 = vadd.xlane.f32.xlu0 %v3795
    %v3797 = vpop.xlane.xlu0 %3796
    %v3798 = vsel %vm1320, %v3732, 0.0
    %3799 = vadd.xlane.f32.xlu0 %v3798
    %v3800 = vpop.xlane.xlu0 %3799
    %v3801 = vsel %vm1320, %v3733, 0.0
    %3802 = vadd.xlane.f32.xlu0 %v3801
    %v3803 = vpop.xlane.xlu0 %3802
    %v3804 = vsel %vm1320, %v3734, 0.0
    %3805 = vadd.xlane.f32.xlu0 %v3804
    %v3806 = vpop.xlane.xlu0 %3805
    %v3807 = vsel %vm1320, %v3735, 0.0
    %3808 = vadd.xlane.f32.xlu0 %v3807
    %v3809 = vpop.xlane.xlu0 %3808
    %v3810 = vsel %vm1320, %v3736, 0.0
    %3811 = vadd.xlane.f32.xlu0 %v3810
    %v3812 = vpop.xlane.xlu0 %3811
    %v3813 = vsel %vm1320, %v3737, 0.0
    %3814 = vadd.xlane.f32.xlu0 %v3813
    %v3815 = vpop.xlane.xlu0 %3814
    %v3816 = vsel %vm1320, %v3738, 0.0
    %3817 = vadd.xlane.f32.xlu0 %v3816
    %v3818 = vpop.xlane.xlu0 %3817
    %v3819 = vsel %vm1320, %v3739, 0.0
    %3820 = vadd.xlane.f32.xlu0 %v3819
    %v3821 = vpop.xlane.xlu0 %3820
    %v3822 = vsel %vm1320, %v3740, 0.0
    %3823 = vadd.xlane.f32.xlu0 %v3822
    %v3824 = vpop.xlane.xlu0 %3823
    %v3825 = vsel %vm1320, %v3741, 0.0
    %3826 = vadd.xlane.f32.xlu0 %v3825
    %v3827 = vpop.xlane.xlu0 %3826
    %v3828 = vsel %vm1320, %v3742, 0.0
    %3829 = vadd.xlane.f32.xlu0 %v3828
    %v3830 = vpop.xlane.xlu0 %3829
    %v3831 = vsel %vm1320, %v3743, 0.0
    %3832 = vadd.xlane.f32.xlu0 %v3831
    %v3833 = vpop.xlane.xlu0 %3832
    %v3834 = vsel %vm1320, %v3744, 0.0
    %3835 = vadd.xlane.f32.xlu0 %v3834
    %v3836 = vpop.xlane.xlu0 %3835
    %v3837 = vsel %vm1320, %v3745, 0.0
    %3838 = vadd.xlane.f32.xlu0 %v3837
    %v3839 = vpop.xlane.xlu0 %3838
    %v3840 = vsel %vm1320, %v3746, 0.0
    %3841 = vadd.xlane.f32.xlu0 %v3840
    %v3842 = vpop.xlane.xlu0 %3841
    %v3843 = vsel %vm1320, %v3747, 0.0
    %3844 = vadd.xlane.f32.xlu0 %v3843
    %v3845 = vpop.xlane.xlu0 %3844
    %v3846 = vsel %vm1320, %v3748, 0.0
    %3847 = vadd.xlane.f32.xlu0 %v3846
    %v3848 = vpop.xlane.xlu0 %3847
    %v3849 = vsel %vm1320, %v3749, 0.0
    %3850 = vadd.xlane.f32.xlu0 %v3849
    %v3851 = vpop.xlane.xlu0 %3850
    %v3852 = vsel %vm1320, %v3750, 0.0
    %3853 = vadd.xlane.f32.xlu0 %v3852
    %v3854 = vpop.xlane.xlu0 %3853
    %v3855 = vsel %vm1320, %v3751, 0.0
    %3856 = vadd.xlane.f32.xlu0 %v3855
    %v3857 = vpop.xlane.xlu0 %3856
    %v3858 = vsel %vm1320, %v3752, 0.0
    %3859 = vadd.xlane.f32.xlu0 %v3858
    %v3860 = vpop.xlane.xlu0 %3859
    %v3861 = vsel %vm1320, %v3753, 0.0
    %3862 = vadd.xlane.f32.xlu0 %v3861
    %v3863 = vpop.xlane.xlu0 %3862
    %v3864 = vsel %vm1320, %v3754, 0.0
    %3865 = vadd.xlane.f32.xlu0 %v3864
    %v3866 = vpop.xlane.xlu0 %3865
    %v3867 = vsel %vm1320, %v3755, 0.0
    %3868 = vadd.xlane.f32.xlu0 %v3867
    %v3869 = vpop.xlane.xlu0 %3868
    %v3870 = vsel %vm1320, %v3756, 0.0
    %3871 = vadd.xlane.f32.xlu0 %v3870
    %v3872 = vpop.xlane.xlu0 %3871
    %v3873 = vsel %vm1320, %v3757, 0.0
    %3874 = vadd.xlane.f32.xlu0 %v3873
    %v3875 = vpop.xlane.xlu0 %3874
    %v3876 = vsel %vm1320, %v3758, 0.0
    %3877 = vadd.xlane.f32.xlu0 %v3876
    %v3878 = vpop.xlane.xlu0 %3877
    %v3879 = vsel %vm1320, %v3759, 0.0
    %3880 = vadd.xlane.f32.xlu0 %v3879
    %v3881 = vpop.xlane.xlu0 %3880
    %v3882 = vsel %vm1320, %v3760, 0.0
    %3883 = vadd.xlane.f32.xlu0 %v3882
    %v3884 = vpop.xlane.xlu0 %3883
    %v3885 = vsel %vm1320, %v3761, 0.0
    %3886 = vadd.xlane.f32.xlu0 %v3885
    %v3887 = vpop.xlane.xlu0 %3886
    %v3888 = vsel %vm1320, %v3762, 0.0
    %3889 = vadd.xlane.f32.xlu0 %v3888
    %v3890 = vpop.xlane.xlu0 %3889
    %v3891 = vsel %vm1320, %v3763, 0.0
    %3892 = vadd.xlane.f32.xlu0 %v3891
    %v3893 = vpop.xlane.xlu0 %3892
    %v3894 = vsel %vm1320, %v3764, 0.0
    %3895 = vadd.xlane.f32.xlu0 %v3894
    %v3896 = vpop.xlane.xlu0 %3895
    %v3897 = vsel %vm1320, %v3765, 0.0
    %3898 = vadd.xlane.f32.xlu0 %v3897
    %v3899 = vpop.xlane.xlu0 %3898
    %v3900 = vsel %vm1320, %v3766, 0.0
    %3901 = vadd.xlane.f32.xlu0 %v3900
    %v3902 = vpop.xlane.xlu0 %3901
    %v3903 = vsel %vm1320, %v3767, 0.0
    %3904 = vadd.xlane.f32.xlu0 %v3903
    %v3905 = vpop.xlane.xlu0 %3904
    %v3906 = vsel %vm1320, %v3768, 0.0
    %3907 = vadd.xlane.f32.xlu0 %v3906
    %v3908 = vpop.xlane.xlu0 %3907
    %v3909 = vsel %vm1320, %v3769, 0.0
    %3910 = vadd.xlane.f32.xlu0 %v3909
    %v3911 = vpop.xlane.xlu0 %3910
    %v3912 = vsel %vm1320, %v3770, 0.0
    %3913 = vadd.xlane.f32.xlu0 %v3912
    %v3914 = vpop.xlane.xlu0 %3913
    %v3915 = vsel %vm1320, %v3771, 0.0
    %3916 = vadd.xlane.f32.xlu0 %v3915
    %v3917 = vpop.xlane.xlu0 %3916
    %v3918 = vsel %vm1320, %v3772, 0.0
    %3919 = vadd.xlane.f32.xlu0 %v3918
    %v3920 = vpop.xlane.xlu0 %3919
    %v3921 = vsel %vm1320, %v3773, 0.0
    %3922 = vadd.xlane.f32.xlu0 %v3921
    %v3923 = vpop.xlane.xlu0 %3922
    %v3924 = vsel %vm1320, %v3774, 0.0
    %3925 = vadd.xlane.f32.xlu0 %v3924
    %v3926 = vpop.xlane.xlu0 %3925
    %v3927 = vsel %vm1320, %v3775, 0.0
    %3928 = vadd.xlane.f32.xlu0 %v3927
    %v3929 = vpop.xlane.xlu0 %3928
    %v3930 = vsel %vm1320, %v3776, 0.0
    %3931 = vadd.xlane.f32.xlu0 %v3930
    %v3932 = vpop.xlane.xlu0 %3931
    %v3933 = vsel %vm1320, %v3777, 0.0
    %3934 = vadd.xlane.f32.xlu0 %v3933
    %v3935 = vpop.xlane.xlu0 %3934
    %v3936 = vsel %vm1320, %v3778, 0.0
    %3937 = vadd.xlane.f32.xlu0 %v3936
    %v3938 = vpop.xlane.xlu0 %3937
    %v3939 = vsel %vm1320, %v3779, 0.0
    %3940 = vadd.xlane.f32.xlu0 %v3939
    %v3941 = vpop.xlane.xlu0 %3940
    %v3942 = vsel %vm1320, %v3780, 0.0
    %3943 = vadd.xlane.f32.xlu0 %v3942
    %v3944 = vpop.xlane.xlu0 %3943
    %v3945 = vsel %vm1320, %v3781, 0.0
    %3946 = vadd.xlane.f32.xlu0 %v3945
    %v3947 = vpop.xlane.xlu0 %3946
    %v3948 = vsel %vm1320, %v3782, 0.0
    %3949 = vadd.xlane.f32.xlu0 %v3948
    %v3950 = vpop.xlane.xlu0 %3949
    %v3951 = vsel %vm1320, %v3783, 0.0
    %3952 = vadd.xlane.f32.xlu0 %v3951
    %v3953 = vpop.xlane.xlu0 %3952
    %v3954 = vsel %vm1320, %v3784, 0.0
    %3955 = vadd.xlane.f32.xlu0 %v3954
    %v3956 = vpop.xlane.xlu0 %3955
    %v3957 = vsel %vm1320, %v3785, 0.0
    %3958 = vadd.xlane.f32.xlu0 %v3957
    %v3959 = vpop.xlane.xlu0 %3958
    %v3960 = vsel %vm1320, %v3786, 0.0
    %3961 = vadd.xlane.f32.xlu0 %v3960
    %v3962 = vpop.xlane.xlu0 %3961
    %v3963 = vsel %vm1320, %v3787, 0.0
    %3964 = vadd.xlane.f32.xlu0 %v3963
    %v3965 = vpop.xlane.xlu0 %3964
    %v3966 = vsel %vm1320, %v3788, 0.0
    %3967 = vadd.xlane.f32.xlu0 %v3966
    %v3968 = vpop.xlane.xlu0 %3967
    %v3969 = vsel %vm1320, %v3789, 0.0
    %3970 = vadd.xlane.f32.xlu0 %v3969
    %v3971 = vpop.xlane.xlu0 %3970
    %v3972 = vsel %vm1320, %v3790, 0.0
    %3973 = vadd.xlane.f32.xlu0 %v3972
    %v3974 = vpop.xlane.xlu0 %3973
    %v3975 = vsel %vm1320, %v3791, 0.0
    %3976 = vadd.xlane.f32.xlu0 %v3975
    %v3977 = vpop.xlane.xlu0 %3976
    %v3978 = vsel %vm1320, %v3792, 0.0
    %3979 = vadd.xlane.f32.xlu0 %v3978
    %v3980 = vpop.xlane.xlu0 %3979
    %v3981 = vsel %vm1320, %v3793, 0.0
    %3982 = vadd.xlane.f32.xlu0 %v3981
    %v3983 = vpop.xlane.xlu0 %3982
    %v3984 = vsel %vm1320, %v3794, 0.0
    %3985 = vadd.xlane.f32.xlu0 %v3984
    %v3986 = vpop.xlane.xlu0 %3985
    %v3987 = vlog2.pop %v1323
    %v3988 = vmul.f32 %v3987, 0.6931472
    %v3989 = vlog2.pop %v1326
    %v3990 = vmul.f32 %v3989, 0.6931472
    %v3991 = vlog2.pop %v1329
    %v3992 = vmul.f32 %v3991, 0.6931472
    %v3993 = vlog2.pop %v1332
    %v3994 = vmul.f32 %v3993, 0.6931472
    %v3995 = vlog2.pop %v1335
    %v3996 = vmul.f32 %v3995, 0.6931472
    %v3997 = vlog2.pop %v1338
    %v3998 = vmul.f32 %v3997, 0.6931472
    %v3999 = vlog2.pop %v1341
    %v4000 = vmul.f32 %v3999, 0.6931472
    %v4001 = vlog2.pop %v1344
    %v4002 = vmul.f32 %v4001, 0.6931472
    %v4003 = vlog2.pop %v1347
    %v4004 = vmul.f32 %v4003, 0.6931472
    %v4005 = vlog2.pop %v1350
    %v4006 = vmul.f32 %v4005, 0.6931472
    %v4007 = vlog2.pop %v1353
    %v4008 = vmul.f32 %v4007, 0.6931472
    %v4009 = vlog2.pop %v1356
    %v4010 = vmul.f32 %v4009, 0.6931472
    %v4011 = vlog2.pop %v1359
    %v4012 = vmul.f32 %v4011, 0.6931472
    %v4013 = vlog2.pop %v1362
    %v4014 = vmul.f32 %v4013, 0.6931472
    %v4015 = vlog2.pop %v1365
    %v4016 = vmul.f32 %v4015, 0.6931472
    %v4017 = vlog2.pop %v1368
    %v4018 = vmul.f32 %v4017, 0.6931472
    %v4019 = vlog2.pop %v1371
    %v4020 = vmul.f32 %v4019, 0.6931472
    %v4021 = vlog2.pop %v1374
    %v4022 = vmul.f32 %v4021, 0.6931472
    %v4023 = vlog2.pop %v1377
    %v4024 = vmul.f32 %v4023, 0.6931472
    %v4025 = vlog2.pop %v1380
    %v4026 = vmul.f32 %v4025, 0.6931472
    %v4027 = vlog2.pop %v1383
    %v4028 = vmul.f32 %v4027, 0.6931472
    %v4029 = vlog2.pop %v1386
    %v4030 = vmul.f32 %v4029, 0.6931472
    %v4031 = vlog2.pop %v1389
    %v4032 = vmul.f32 %v4031, 0.6931472
    %v4033 = vlog2.pop %v1392
    %v4034 = vmul.f32 %v4033, 0.6931472
    %v4035 = vlog2.pop %v1395
    %v4036 = vmul.f32 %v4035, 0.6931472
    %v4037 = vlog2.pop %v1398
    %v4038 = vmul.f32 %v4037, 0.6931472
    %v4039 = vlog2.pop %v1401
    %v4040 = vmul.f32 %v4039, 0.6931472
    %v4041 = vlog2.pop %v1404
    %v4042 = vmul.f32 %v4041, 0.6931472
    %v4043 = vlog2.pop %v1407
    %v4044 = vmul.f32 %v4043, 0.6931472
    %v4045 = vlog2.pop %v1410
    %v4046 = vmul.f32 %v4045, 0.6931472
    %v4047 = vlog2.pop %v1413
    %v4048 = vmul.f32 %v4047, 0.6931472
    %v4049 = vlog2.pop %v1416
    %v4050 = vmul.f32 %v4049, 0.6931472
    %v4051 = vlog2.pop %v1419
    %v4052 = vmul.f32 %v4051, 0.6931472
    %v4053 = vlog2.pop %v1422
    %v4054 = vmul.f32 %v4053, 0.6931472
    %v4055 = vlog2.pop %v1425
    %v4056 = vmul.f32 %v4055, 0.6931472
    %v4057 = vlog2.pop %v1428
    %v4058 = vmul.f32 %v4057, 0.6931472
    %v4059 = vlog2.pop %v1431
    %v4060 = vmul.f32 %v4059, 0.6931472
    %v4061 = vlog2.pop %v1434
    %v4062 = vmul.f32 %v4061, 0.6931472
    %v4063 = vlog2.pop %v1437
    %v4064 = vmul.f32 %v4063, 0.6931472
    %v4065 = vlog2.pop %v1440
    %v4066 = vmul.f32 %v4065, 0.6931472
    %v4067 = vlog2.pop %v1443
    %v4068 = vmul.f32 %v4067, 0.6931472
    %v4069 = vlog2.pop %v1446
    %v4070 = vmul.f32 %v4069, 0.6931472
    %v4071 = vlog2.pop %v1449
    %v4072 = vmul.f32 %v4071, 0.6931472
    %v4073 = vlog2.pop %v1452
    %v4074 = vmul.f32 %v4073, 0.6931472
    %v4075 = vlog2.pop %v1455
    %v4076 = vmul.f32 %v4075, 0.6931472
    %v4077 = vlog2.pop %v1458
    %v4078 = vmul.f32 %v4077, 0.6931472
    %v4079 = vlog2.pop %v1461
    %v4080 = vmul.f32 %v4079, 0.6931472
    %v4081 = vlog2.pop %v1464
    %v4082 = vmul.f32 %v4081, 0.6931472
    %v4083 = vlog2.pop %v1467
    %v4084 = vmul.f32 %v4083, 0.6931472
    %v4085 = vlog2.pop %v1470
    %v4086 = vmul.f32 %v4085, 0.6931472
    %v4087 = vlog2.pop %v1473
    %v4088 = vmul.f32 %v4087, 0.6931472
    %v4089 = vlog2.pop %v1476
    %v4090 = vmul.f32 %v4089, 0.6931472
    %v4091 = vlog2.pop %v1479
    %v4092 = vmul.f32 %v4091, 0.6931472
    %v4093 = vlog2.pop %v1482
    %v4094 = vmul.f32 %v4093, 0.6931472
    %v4095 = vlog2.pop %v1485
    %v4096 = vmul.f32 %v4095, 0.6931472
    %v4097 = vlog2.pop %v1488
    %v4098 = vmul.f32 %v4097, 0.6931472
    %v4099 = vlog2.pop %v1491
    %v4100 = vmul.f32 %v4099, 0.6931472
    %v4101 = vlog2.pop %v1494
    %v4102 = vmul.f32 %v4101, 0.6931472
    %v4103 = vlog2.pop %v1497
    %v4104 = vmul.f32 %v4103, 0.6931472
    %v4105 = vlog2.pop %v1500
    %v4106 = vmul.f32 %v4105, 0.6931472
    %v4107 = vlog2.pop %v1503
    %v4108 = vmul.f32 %v4107, 0.6931472
    %v4109 = vlog2.pop %v1506
    %v4110 = vmul.f32 %v4109, 0.6931472
    %v4111 = vlog2.pop %v1509
    %v4112 = vmul.f32 %v4111, 0.6931472
    %v4113 = vlog2.pop %v1512
    %v4114 = vmul.f32 %v4113, 0.6931472
    %v4115 = vadd.f32 %v682, %v3988
    %v4116 = vadd.f32 %v685, %v3990
    %v4117 = vadd.f32 %v688, %v3992
    %v4118 = vadd.f32 %v691, %v3994
    %v4119 = vadd.f32 %v694, %v3996
    %v4120 = vadd.f32 %v697, %v3998
    %v4121 = vadd.f32 %v700, %v4000
    %v4122 = vadd.f32 %v703, %v4002
    %v4123 = vadd.f32 %v706, %v4004
    %v4124 = vadd.f32 %v709, %v4006
    %v4125 = vadd.f32 %v712, %v4008
    %v4126 = vadd.f32 %v715, %v4010
    %v4127 = vadd.f32 %v718, %v4012
    %v4128 = vadd.f32 %v721, %v4014
    %v4129 = vadd.f32 %v724, %v4016
    %v4130 = vadd.f32 %v727, %v4018
    %v4131 = vadd.f32 %v730, %v4020
    %v4132 = vadd.f32 %v733, %v4022
    %v4133 = vadd.f32 %v736, %v4024
    %v4134 = vadd.f32 %v739, %v4026
    %v4135 = vadd.f32 %v742, %v4028
    %v4136 = vadd.f32 %v745, %v4030
    %v4137 = vadd.f32 %v748, %v4032
    %v4138 = vadd.f32 %v751, %v4034
    %v4139 = vadd.f32 %v754, %v4036
    %v4140 = vadd.f32 %v757, %v4038
    %v4141 = vadd.f32 %v760, %v4040
    %v4142 = vadd.f32 %v763, %v4042
    %v4143 = vadd.f32 %v766, %v4044
    %v4144 = vadd.f32 %v769, %v4046
    %v4145 = vadd.f32 %v772, %v4048
    %v4146 = vadd.f32 %v775, %v4050
    %v4147 = vadd.f32 %v778, %v4052
    %v4148 = vadd.f32 %v781, %v4054
    %v4149 = vadd.f32 %v784, %v4056
    %v4150 = vadd.f32 %v787, %v4058
    %v4151 = vadd.f32 %v790, %v4060
    %v4152 = vadd.f32 %v793, %v4062
    %v4153 = vadd.f32 %v796, %v4064
    %v4154 = vadd.f32 %v799, %v4066
    %v4155 = vadd.f32 %v802, %v4068
    %v4156 = vadd.f32 %v805, %v4070
    %v4157 = vadd.f32 %v808, %v4072
    %v4158 = vadd.f32 %v811, %v4074
    %v4159 = vadd.f32 %v814, %v4076
    %v4160 = vadd.f32 %v817, %v4078
    %v4161 = vadd.f32 %v820, %v4080
    %v4162 = vadd.f32 %v823, %v4082
    %v4163 = vadd.f32 %v826, %v4084
    %v4164 = vadd.f32 %v829, %v4086
    %v4165 = vadd.f32 %v832, %v4088
    %v4166 = vadd.f32 %v835, %v4090
    %v4167 = vadd.f32 %v838, %v4092
    %v4168 = vadd.f32 %v841, %v4094
    %v4169 = vadd.f32 %v844, %v4096
    %v4170 = vadd.f32 %v847, %v4098
    %v4171 = vadd.f32 %v850, %v4100
    %v4172 = vadd.f32 %v853, %v4102
    %v4173 = vadd.f32 %v856, %v4104
    %v4174 = vadd.f32 %v859, %v4106
    %v4175 = vadd.f32 %v862, %v4108
    %v4176 = vadd.f32 %v865, %v4110
    %v4177 = vadd.f32 %v868, %v4112
    %v4178 = vadd.f32 %v871, %v4114
    %v4179 = vmul.f32 %v4115, 3.0
    %v4180 = vmul.f32 %v4116, 3.0
    %v4181 = vmul.f32 %v4117, 3.0
    %v4182 = vmul.f32 %v4118, 3.0
    %v4183 = vmul.f32 %v4119, 3.0
    %v4184 = vmul.f32 %v4120, 3.0
    %v4185 = vmul.f32 %v4121, 3.0
    %v4186 = vmul.f32 %v4122, 3.0
    %v4187 = vmul.f32 %v4123, 3.0
    %v4188 = vmul.f32 %v4124, 3.0
    %v4189 = vmul.f32 %v4125, 3.0
    %v4190 = vmul.f32 %v4126, 3.0
    %v4191 = vmul.f32 %v4127, 3.0
    %v4192 = vmul.f32 %v4128, 3.0
    %v4193 = vmul.f32 %v4129, 3.0
    %v4194 = vmul.f32 %v4130, 3.0
    %v4195 = vmul.f32 %v4131, 3.0
    %v4196 = vmul.f32 %v4132, 3.0
    %v4197 = vmul.f32 %v4133, 3.0
    %v4198 = vmul.f32 %v4134, 3.0
    %v4199 = vmul.f32 %v4135, 3.0
    %v4200 = vmul.f32 %v4136, 3.0
    %v4201 = vmul.f32 %v4137, 3.0
    %v4202 = vmul.f32 %v4138, 3.0
    %v4203 = vmul.f32 %v4139, 3.0
    %v4204 = vmul.f32 %v4140, 3.0
    %v4205 = vmul.f32 %v4141, 3.0
    %v4206 = vmul.f32 %v4142, 3.0
    %v4207 = vmul.f32 %v4143, 3.0
    %v4208 = vmul.f32 %v4144, 3.0
    %v4209 = vmul.f32 %v4145, 3.0
    %v4210 = vmul.f32 %v4146, 3.0
    %v4211 = vmul.f32 %v4147, 3.0
    %v4212 = vmul.f32 %v4148, 3.0
    %v4213 = vmul.f32 %v4149, 3.0
    %v4214 = vmul.f32 %v4150, 3.0
    %v4215 = vmul.f32 %v4151, 3.0
    %v4216 = vmul.f32 %v4152, 3.0
    %v4217 = vmul.f32 %v4153, 3.0
    %v4218 = vmul.f32 %v4154, 3.0
    %v4219 = vmul.f32 %v4155, 3.0
    %v4220 = vmul.f32 %v4156, 3.0
    %v4221 = vmul.f32 %v4157, 3.0
    %v4222 = vmul.f32 %v4158, 3.0
    %v4223 = vmul.f32 %v4159, 3.0
    %v4224 = vmul.f32 %v4160, 3.0
    %v4225 = vmul.f32 %v4161, 3.0
    %v4226 = vmul.f32 %v4162, 3.0
    %v4227 = vmul.f32 %v4163, 3.0
    %v4228 = vmul.f32 %v4164, 3.0
    %v4229 = vmul.f32 %v4165, 3.0
    %v4230 = vmul.f32 %v4166, 3.0
    %v4231 = vmul.f32 %v4167, 3.0
    %v4232 = vmul.f32 %v4168, 3.0
    %v4233 = vmul.f32 %v4169, 3.0
    %v4234 = vmul.f32 %v4170, 3.0
    %v4235 = vmul.f32 %v4171, 3.0
    %v4236 = vmul.f32 %v4172, 3.0
    %v4237 = vmul.f32 %v4173, 3.0
    %v4238 = vmul.f32 %v4174, 3.0
    %v4239 = vmul.f32 %v4175, 3.0
    %v4240 = vmul.f32 %v4176, 3.0
    %v4241 = vmul.f32 %v4177, 3.0
    %v4242 = vmul.f32 %v4178, 3.0
    %v4243 = vsub.f32 %v3797, %v4179
    %v4244 = vsub.f32 %v3800, %v4180
    %v4245 = vsub.f32 %v3803, %v4181
    %v4246 = vsub.f32 %v3806, %v4182
    %v4247 = vsub.f32 %v3809, %v4183
    %v4248 = vsub.f32 %v3812, %v4184
    %v4249 = vsub.f32 %v3815, %v4185
    %v4250 = vsub.f32 %v3818, %v4186
    %v4251 = vsub.f32 %v3821, %v4187
    %v4252 = vsub.f32 %v3824, %v4188
    %v4253 = vsub.f32 %v3827, %v4189
    %v4254 = vsub.f32 %v3830, %v4190
    %v4255 = vsub.f32 %v3833, %v4191
    %v4256 = vsub.f32 %v3836, %v4192
    %v4257 = vsub.f32 %v3839, %v4193
    %v4258 = vsub.f32 %v3842, %v4194
    %v4259 = vsub.f32 %v3845, %v4195
    %v4260 = vsub.f32 %v3848, %v4196
    %v4261 = vsub.f32 %v3851, %v4197
    %v4262 = vsub.f32 %v3854, %v4198
    %v4263 = vsub.f32 %v3857, %v4199
    %v4264 = vsub.f32 %v3860, %v4200
    %v4265 = vsub.f32 %v3863, %v4201
    %v4266 = vsub.f32 %v3866, %v4202
    %v4267 = vsub.f32 %v3869, %v4203
    %v4268 = vsub.f32 %v3872, %v4204
    %v4269 = vsub.f32 %v3875, %v4205
    %v4270 = vsub.f32 %v3878, %v4206
    %v4271 = vsub.f32 %v3881, %v4207
    %v4272 = vsub.f32 %v3884, %v4208
    %v4273 = vsub.f32 %v3887, %v4209
    %v4274 = vsub.f32 %v3890, %v4210
    %v4275 = vsub.f32 %v3893, %v4211
    %v4276 = vsub.f32 %v3896, %v4212
    %v4277 = vsub.f32 %v3899, %v4213
    %v4278 = vsub.f32 %v3902, %v4214
    %v4279 = vsub.f32 %v3905, %v4215
    %v4280 = vsub.f32 %v3908, %v4216
    %v4281 = vsub.f32 %v3911, %v4217
    %v4282 = vsub.f32 %v3914, %v4218
    %v4283 = vsub.f32 %v3917, %v4219
    %v4284 = vsub.f32 %v3920, %v4220
    %v4285 = vsub.f32 %v3923, %v4221
    %v4286 = vsub.f32 %v3926, %v4222
    %v4287 = vsub.f32 %v3929, %v4223
    %v4288 = vsub.f32 %v3932, %v4224
    %v4289 = vsub.f32 %v3935, %v4225
    %v4290 = vsub.f32 %v3938, %v4226
    %v4291 = vsub.f32 %v3941, %v4227
    %v4292 = vsub.f32 %v3944, %v4228
    %v4293 = vsub.f32 %v3947, %v4229
    %v4294 = vsub.f32 %v3950, %v4230
    %v4295 = vsub.f32 %v3953, %v4231
    %v4296 = vsub.f32 %v3956, %v4232
    %v4297 = vsub.f32 %v3959, %v4233
    %v4298 = vsub.f32 %v3962, %v4234
    %v4299 = vsub.f32 %v3965, %v4235
    %v4300 = vsub.f32 %v3968, %v4236
    %v4301 = vsub.f32 %v3971, %v4237
    %v4302 = vsub.f32 %v3974, %v4238
    %v4303 = vsub.f32 %v3977, %v4239
    %v4304 = vsub.f32 %v3980, %v4240
    %v4305 = vsub.f32 %v3983, %v4241
    %v4306 = vsub.f32 %v3986, %v4242
    %v4307 = vmul.f32 %v4243, -0.0033333334
    %v4308 = vmul.f32 %v4244, -0.0033333334
    %v4309 = vmul.f32 %v4245, -0.0033333334
    %v4310 = vmul.f32 %v4246, -0.0033333334
    %v4311 = vmul.f32 %v4247, -0.0033333334
    %v4312 = vmul.f32 %v4248, -0.0033333334
    %v4313 = vmul.f32 %v4249, -0.0033333334
    %v4314 = vmul.f32 %v4250, -0.0033333334
    %v4315 = vmul.f32 %v4251, -0.0033333334
    %v4316 = vmul.f32 %v4252, -0.0033333334
    %v4317 = vmul.f32 %v4253, -0.0033333334
    %v4318 = vmul.f32 %v4254, -0.0033333334
    %v4319 = vmul.f32 %v4255, -0.0033333334
    %v4320 = vmul.f32 %v4256, -0.0033333334
    %v4321 = vmul.f32 %v4257, -0.0033333334
    %v4322 = vmul.f32 %v4258, -0.0033333334
    %v4323 = vmul.f32 %v4259, -0.0033333334
    %v4324 = vmul.f32 %v4260, -0.0033333334
    %v4325 = vmul.f32 %v4261, -0.0033333334
    %v4326 = vmul.f32 %v4262, -0.0033333334
    %v4327 = vmul.f32 %v4263, -0.0033333334
    %v4328 = vmul.f32 %v4264, -0.0033333334
    %v4329 = vmul.f32 %v4265, -0.0033333334
    %v4330 = vmul.f32 %v4266, -0.0033333334
    %v4331 = vmul.f32 %v4267, -0.0033333334
    %v4332 = vmul.f32 %v4268, -0.0033333334
    %v4333 = vmul.f32 %v4269, -0.0033333334
    %v4334 = vmul.f32 %v4270, -0.0033333334
    %v4335 = vmul.f32 %v4271, -0.0033333334
    %v4336 = vmul.f32 %v4272, -0.0033333334
    %v4337 = vmul.f32 %v4273, -0.0033333334
    %v4338 = vmul.f32 %v4274, -0.0033333334
    %v4339 = vmul.f32 %v4275, -0.0033333334
    %v4340 = vmul.f32 %v4276, -0.0033333334
    %v4341 = vmul.f32 %v4277, -0.0033333334
    %v4342 = vmul.f32 %v4278, -0.0033333334
    %v4343 = vmul.f32 %v4279, -0.0033333334
    %v4344 = vmul.f32 %v4280, -0.0033333334
    %v4345 = vmul.f32 %v4281, -0.0033333334
    %v4346 = vmul.f32 %v4282, -0.0033333334
    %v4347 = vmul.f32 %v4283, -0.0033333334
    %v4348 = vmul.f32 %v4284, -0.0033333334
    %v4349 = vmul.f32 %v4285, -0.0033333334
    %v4350 = vmul.f32 %v4286, -0.0033333334
    %v4351 = vmul.f32 %v4287, -0.0033333334
    %v4352 = vmul.f32 %v4288, -0.0033333334
    %v4353 = vmul.f32 %v4289, -0.0033333334
    %v4354 = vmul.f32 %v4290, -0.0033333334
    %v4355 = vmul.f32 %v4291, -0.0033333334
    %v4356 = vmul.f32 %v4292, -0.0033333334
    %v4357 = vmul.f32 %v4293, -0.0033333334
    %v4358 = vmul.f32 %v4294, -0.0033333334
    %v4359 = vmul.f32 %v4295, -0.0033333334
    %v4360 = vmul.f32 %v4296, -0.0033333334
    %v4361 = vmul.f32 %v4297, -0.0033333334
    %v4362 = vmul.f32 %v4298, -0.0033333334
    %v4363 = vmul.f32 %v4299, -0.0033333334
    %v4364 = vmul.f32 %v4300, -0.0033333334
    %v4365 = vmul.f32 %v4301, -0.0033333334
    %v4366 = vmul.f32 %v4302, -0.0033333334
    %v4367 = vmul.f32 %v4303, -0.0033333334
    %v4368 = vmul.f32 %v4304, -0.0033333334
    %v4369 = vmul.f32 %v4305, -0.0033333334
    %v4370 = vmul.f32 %v4306, -0.0033333334
    %vm4371 = vcmp.eq.s32.totalorder %v2180, 32
    %v4372 = vsel %vm4371, %v4307, %v3156
    %v4373 = vsel %vm4371, %v4308, %v3161
    %v4374 = vsel %vm4371, %v4309, %v3166
    %v4375 = vsel %vm4371, %v4310, %v3171
    %v4376 = vsel %vm4371, %v4311, %v3176
    %v4377 = vsel %vm4371, %v4312, %v3181
    %v4378 = vsel %vm4371, %v4313, %v3186
    %v4379 = vsel %vm4371, %v4314, %v3191
    %v4380 = vsel %vm4371, %v4315, %v3196
    %v4381 = vsel %vm4371, %v4316, %v3201
    %v4382 = vsel %vm4371, %v4317, %v3206
    %v4383 = vsel %vm4371, %v4318, %v3211
    %v4384 = vsel %vm4371, %v4319, %v3216
    %v4385 = vsel %vm4371, %v4320, %v3221
    %v4386 = vsel %vm4371, %v4321, %v3226
    %v4387 = vsel %vm4371, %v4322, %v3231
    %v4388 = vsel %vm4371, %v4323, %v3236
    %v4389 = vsel %vm4371, %v4324, %v3241
    %v4390 = vsel %vm4371, %v4325, %v3246
    %v4391 = vsel %vm4371, %v4326, %v3251
    %v4392 = vsel %vm4371, %v4327, %v3256
    %v4393 = vsel %vm4371, %v4328, %v3261
    %v4394 = vsel %vm4371, %v4329, %v3266
    %v4395 = vsel %vm4371, %v4330, %v3271
    %v4396 = vsel %vm4371, %v4331, %v3276
    %v4397 = vsel %vm4371, %v4332, %v3281
    %v4398 = vsel %vm4371, %v4333, %v3286
    %v4399 = vsel %vm4371, %v4334, %v3291
    %v4400 = vsel %vm4371, %v4335, %v3296
    %v4401 = vsel %vm4371, %v4336, %v3301
    %v4402 = vsel %vm4371, %v4337, %v3306
    %v4403 = vsel %vm4371, %v4338, %v3311
    %v4404 = vsel %vm4371, %v4339, %v3316
    %v4405 = vsel %vm4371, %v4340, %v3321
    %v4406 = vsel %vm4371, %v4341, %v3326
    %v4407 = vsel %vm4371, %v4342, %v3331
    %v4408 = vsel %vm4371, %v4343, %v3336
    %v4409 = vsel %vm4371, %v4344, %v3341
    %v4410 = vsel %vm4371, %v4345, %v3346
    %v4411 = vsel %vm4371, %v4346, %v3351
    %v4412 = vsel %vm4371, %v4347, %v3356
    %v4413 = vsel %vm4371, %v4348, %v3361
    %v4414 = vsel %vm4371, %v4349, %v3366
    %v4415 = vsel %vm4371, %v4350, %v3371
    %v4416 = vsel %vm4371, %v4351, %v3376
    %v4417 = vsel %vm4371, %v4352, %v3381
    %v4418 = vsel %vm4371, %v4353, %v3386
    %v4419 = vsel %vm4371, %v4354, %v3391
    %v4420 = vsel %vm4371, %v4355, %v3396
    %v4421 = vsel %vm4371, %v4356, %v3401
    %v4422 = vsel %vm4371, %v4357, %v3406
    %v4423 = vsel %vm4371, %v4358, %v3411
    %v4424 = vsel %vm4371, %v4359, %v3416
    %v4425 = vsel %vm4371, %v4360, %v3421
    %v4426 = vsel %vm4371, %v4361, %v3426
    %v4427 = vsel %vm4371, %v4362, %v3431
    %v4428 = vsel %vm4371, %v4363, %v3436
    %v4429 = vsel %vm4371, %v4364, %v3441
    %v4430 = vsel %vm4371, %v4365, %v3446
    %v4431 = vsel %vm4371, %v4366, %v3451
    %v4432 = vsel %vm4371, %v4367, %v3456
    %v4433 = vsel %vm4371, %v4368, %v3461
    %v4434 = vsel %vm4371, %v4369, %v3466
    %v4435 = vsel %vm4371, %v4370, %v3471
    %4436 = vst [vmem:[#allocation2] sm:$0xff] %v4372
    %4437 = vst [vmem:[#allocation2 + $0x8] sm:$0xff] %v4373
    %4438 = vst [vmem:[#allocation2 + $0x10] sm:$0xff] %v4374
    %4439 = vst [vmem:[#allocation2 + $0x18] sm:$0xff] %v4375
    %4440 = vst [vmem:[#allocation2 + $0x20] sm:$0xff] %v4376
    %4441 = vst [vmem:[#allocation2 + $0x28] sm:$0xff] %v4377
    %4442 = vst [vmem:[#allocation2 + $0x30] sm:$0xff] %v4378
    %4443 = vst [vmem:[#allocation2 + $0x38] sm:$0xff] %v4379
    %4444 = vst [vmem:[#allocation2 + $0x40] sm:$0xff] %v4380
    %4445 = vst [vmem:[#allocation2 + $0x48] sm:$0xff] %v4381
    %4446 = vst [vmem:[#allocation2 + $0x50] sm:$0xff] %v4382
    %4447 = vst [vmem:[#allocation2 + $0x58] sm:$0xff] %v4383
    %4448 = vst [vmem:[#allocation2 + $0x60] sm:$0xff] %v4384
    %4449 = vst [vmem:[#allocation2 + $0x68] sm:$0xff] %v4385
    %4450 = vst [vmem:[#allocation2 + $0x70] sm:$0xff] %v4386
    %4451 = vst [vmem:[#allocation2 + $0x78] sm:$0xff] %v4387
    %4452 = vst [vmem:[#allocation2 + $0x80] sm:$0xff] %v4388
    %4453 = vst [vmem:[#allocation2 + $0x88] sm:$0xff] %v4389
    %4454 = vst [vmem:[#allocation2 + $0x90] sm:$0xff] %v4390
    %4455 = vst [vmem:[#allocation2 + $0x98] sm:$0xff] %v4391
    %4456 = vst [vmem:[#allocation2 + $0xa0] sm:$0xff] %v4392
    %4457 = vst [vmem:[#allocation2 + $0xa8] sm:$0xff] %v4393
    %4458 = vst [vmem:[#allocation2 + $0xb0] sm:$0xff] %v4394
    %4459 = vst [vmem:[#allocation2 + $0xb8] sm:$0xff] %v4395
    %4460 = vst [vmem:[#allocation2 + $0xc0] sm:$0xff] %v4396
    %4461 = vst [vmem:[#allocation2 + $0xc8] sm:$0xff] %v4397
    %4462 = vst [vmem:[#allocation2 + $0xd0] sm:$0xff] %v4398
    %4463 = vst [vmem:[#allocation2 + $0xd8] sm:$0xff] %v4399
    %4464 = vst [vmem:[#allocation2 + $0xe0] sm:$0xff] %v4400
    %4465 = vst [vmem:[#allocation2 + $0xe8] sm:$0xff] %v4401
    %4466 = vst [vmem:[#allocation2 + $0xf0] sm:$0xff] %v4402
    %4467 = vst [vmem:[#allocation2 + $0xf8] sm:$0xff] %v4403
    %4468 = vst [vmem:[#allocation2 + $0x100] sm:$0xff] %v4404
    %4469 = vst [vmem:[#allocation2 + $0x108] sm:$0xff] %v4405
    %4470 = vst [vmem:[#allocation2 + $0x110] sm:$0xff] %v4406
    %4471 = vst [vmem:[#allocation2 + $0x118] sm:$0xff] %v4407
    %4472 = vst [vmem:[#allocation2 + $0x120] sm:$0xff] %v4408
    %4473 = vst [vmem:[#allocation2 + $0x128] sm:$0xff] %v4409
    %4474 = vst [vmem:[#allocation2 + $0x130] sm:$0xff] %v4410
    %4475 = vst [vmem:[#allocation2 + $0x138] sm:$0xff] %v4411
    %4476 = vst [vmem:[#allocation2 + $0x140] sm:$0xff] %v4412
    %4477 = vst [vmem:[#allocation2 + $0x148] sm:$0xff] %v4413
    %4478 = vst [vmem:[#allocation2 + $0x150] sm:$0xff] %v4414
    %4479 = vst [vmem:[#allocation2 + $0x158] sm:$0xff] %v4415
    %4480 = vst [vmem:[#allocation2 + $0x160] sm:$0xff] %v4416
    %4481 = vst [vmem:[#allocation2 + $0x168] sm:$0xff] %v4417
    %4482 = vst [vmem:[#allocation2 + $0x170] sm:$0xff] %v4418
    %4483 = vst [vmem:[#allocation2 + $0x178] sm:$0xff] %v4419
    %4484 = vst [vmem:[#allocation2 + $0x180] sm:$0xff] %v4420
    %4485 = vst [vmem:[#allocation2 + $0x188] sm:$0xff] %v4421
    %4486 = vst [vmem:[#allocation2 + $0x190] sm:$0xff] %v4422
    %4487 = vst [vmem:[#allocation2 + $0x198] sm:$0xff] %v4423
    %4488 = vst [vmem:[#allocation2 + $0x1a0] sm:$0xff] %v4424
    %4489 = vst [vmem:[#allocation2 + $0x1a8] sm:$0xff] %v4425
    %4490 = vst [vmem:[#allocation2 + $0x1b0] sm:$0xff] %v4426
    %4491 = vst [vmem:[#allocation2 + $0x1b8] sm:$0xff] %v4427
    %4492 = vst [vmem:[#allocation2 + $0x1c0] sm:$0xff] %v4428
    %4493 = vst [vmem:[#allocation2 + $0x1c8] sm:$0xff] %v4429
    %4494 = vst [vmem:[#allocation2 + $0x1d0] sm:$0xff] %v4430
    %4495 = vst [vmem:[#allocation2 + $0x1d8] sm:$0xff] %v4431
    %4496 = vst [vmem:[#allocation2 + $0x1e0] sm:$0xff] %v4432
    %4497 = vst [vmem:[#allocation2 + $0x1e8] sm:$0xff] %v4433
    %4498 = vst [vmem:[#allocation2 + $0x1f0] sm:$0xff] %v4434
    %4499 = vst [vmem:[#allocation2 + $0x1f8] sm:$0xff] %v4435
    // Predicated region
    $region22: #{tpu_custom_call.1} parent=1 // pred_check
      _
    $region23: #{tpu_custom_call.1} parent=1 // pred_check_branch
      %4501 = sbr.rel (0) target = $region25
    $region24: #{tpu_custom_call.1} parent=1 // pred_region
      %s4503 = ssub.s32 8192, 8192
      %4504 = vsyncadd [#allocation3], %s4503
      %s4505 = sshll.u32 [#allocation2], 4
      %s4506 = int_to_ptr.vmem [resolvable:$true] %s4505
      %4511 = dma.vmem_to_hbm [thread:$0]  %s4506, 8192, %s5, [#allocation3], 128, 128, 8
    $region25: #{tpu_custom_call.1} parent=1 // pred_fallthru
      _
    // Predicated region
    $region26: #{tpu_custom_call.1} parent=1 // pred_check
      _
    $region27: #{tpu_custom_call.1} parent=1 // pred_check_branch
      %4513 = sbr.rel (0) target = $region29
    $region28: #{tpu_custom_call.1} parent=1 // pred_region
      %4514 = dma.done [#allocation3], 8192
    $region29: #{tpu_custom_call.1} parent=1 // pred_fallthru
      _
    %4515 = vsyncpa [#allocation3], 1

</llo_original>
